<compile_context>
chip_gen: v7x
topology: tpu7x:2x2x1
jax: 0.10.0
libtpu: 0.0.40
codegen_flags: <defaults>
</compile_context>

<pallas_src>
import functools

import jax
import jax.numpy as jnp
from jax import lax
from jax.experimental import pallas as pl
from jax.experimental.pallas import tpu as pltpu


def _round_up(x, m):
    return ((x + m - 1) // m) * m


_NCORES = 2  # leading "parallel" grid axis -> both TensorCores on v7x


def basic_conv2d(x_nchw, weight, gamma, beta, *, padding=1, stride=1, tm=512):
    """Conv2d(bias=False) + training-mode BatchNorm2d(eps=1e-3) + ReLU.

    x_nchw: (N, C_in, H, W) f32; weight: (C_out, C_in, kh, kw) (PyTorch OIHW).
    Returns (N, C_out, H_out, W_out) f32 (NCHW, like the PyTorch module).
    """
    assert stride == 1, "this kernel implements stride=1"
    N, C_in, H, W = x_nchw.shape
    C_out, C_in_w, kh, kw = weight.shape
    assert C_in == C_in_w
    eps = 1e-3
    f32, bf16 = jnp.float32, jnp.bfloat16

    Hp, Wp = H + 2 * padding, W + 2 * padding
    H_out, W_out = Hp - kh + 1, Wp - kw + 1
    assert H_out > 0 and W_out > 0

    # Conv is evaluated on the padded (Hp, Wp) grid so each tap is a constant flat-row
    # offset.  Rows whose (h, w) fall outside the valid H_out x W_out window compute
    # garbage; they are masked out of the batch stats and sliced away in the epilogue.
    M_in = N * Hp * Wp                       # rows of the padded output grid
    M_valid = N * H_out * W_out              # rows that are real conv outputs

    Cin_p = _round_up(C_in, 128)             # lane-pad once (keep 128-mult; v5e note)
    Cp = _round_up(C_out, 128)

    TM = max(16, min(int(tm), _round_up(M_in, 16)))
    TM = _round_up(TM, 16)
    n_tiles = pl.cdiv(M_in, TM)
    n_inner = pl.cdiv(n_tiles, _NCORES)
    Mp = _NCORES * n_inner * TM              # padded number of output-grid rows

    HALO = (kh - 1) * Wp + (kw - 1)          # extra rows a tile needs beyond its TM rows
    HALO_PAD = _round_up(HALO, 16)
    SLAB = TM + HALO_PAD                     # rows DMA'd per grid step
    M_alloc = Mp + HALO_PAD                  # activation rows incl. the last tile's halo

    # ---- Activation: NCHW -> zero-padded NHWC -> flat (M_alloc, Cin_p) bf16 slab. ----
    x_nhwc = jnp.transpose(x_nchw, (0, 2, 3, 1))
    x_pad = jnp.pad(x_nhwc, ((0, 0), (padding, padding), (padding, padding), (0, 0)))
    xf = x_pad.reshape(M_in, C_in)
    xf = jnp.pad(xf, ((0, M_alloc - M_in), (0, Cin_p - C_in))).astype(bf16)

    # ---- Weights: OIHW -> (kh*kw, Cin_p, Cp) bf16 per-tap matrices. ----
    n_taps = kh * kw
    w_taps = jnp.transpose(weight, (2, 3, 1, 0)).reshape(n_taps, C_in, C_out)
    w_taps = jnp.pad(w_taps, ((0, 0), (0, Cin_p - C_in), (0, Cp - C_out))).astype(bf16)

    # ---- Row-validity mask (1.0 on real conv outputs) for the batch statistics. ----
    valid_hw = (jnp.arange(Hp)[:, None] < H_out) & (jnp.arange(Wp)[None, :] < W_out)
    mask = jnp.broadcast_to(valid_hw[None], (N, Hp, Wp)).reshape(M_in, 1).astype(f32)
    mask = jnp.pad(mask, ((0, Mp - M_in), (0, 0)))

    def kernel(xf_ref, w_ref, mask_ref, conv_ref, sum_ref, sq_ref, xbuf, sem):
        c = pl.program_id(0)
        j = pl.program_id(1)
        nj = pl.num_programs(1)
        tile = c * nj + j                    # flat tile index over the Mp rows

        def slab_copy(tile_idx, slot):
            start = pl.multiple_of(tile_idx * TM, TM)
            return pltpu.make_async_copy(
                xf_ref.at[pl.ds(start, SLAB), :], xbuf.at[slot], sem.at[slot])

        @pl.when(j == 0)
        def _():
            # New core-range: reset this core's partial stats and prime slot 0.
            sum_ref[...] = jnp.zeros_like(sum_ref)
            sq_ref[...] = jnp.zeros_like(sq_ref)
            slab_copy(tile, 0).start()

        @pl.when(j + 1 < nj)
        def _():
            # Prefetch the next tile's slab into the other slot while this one computes.
            slab_copy(tile + 1, (j + 1) & 1).start()

        slot = j & 1
        slab_copy(tile, slot).wait()         # current tile's slab is now in VMEM

        acc = None
        for t in range(n_taps):              # unrolled: kh*kw MXU matmuls, f32 accumulate
            off = (t // kw) * Wp + (t % kw)  # constant row offset of this tap
            lhs = xbuf[slot, pl.ds(off, TM), :]                       # (TM, Cin_p) bf16
            d = jnp.dot(lhs, w_ref[t], preferred_element_type=f32)    # (TM, Cp) f32
            acc = d if acc is None else acc + d

        conv_ref[...] = acc.astype(conv_ref.dtype)                    # bf16 conv slab

        # Masked per-channel batch statistics from the f32 accumulator.
        # NOTE: single-pass E[x]/E[x^2] in f32 (var = E[x^2]-E[x]^2 clamped at 0 in the
        # wrapper); switch to a per-tile Chan combine if |mean| >> std in production.
        m = mask_ref[...]                                             # (TM, 1) f32
        cm = acc * m
        sum_ref[...] += jnp.sum(cm, axis=0, keepdims=True)
        sq_ref[...] += jnp.sum(cm * acc, axis=0, keepdims=True)

    grid = (_NCORES, n_inner)
    conv_spec = pl.BlockSpec((TM, Cp), lambda c, j: (c * n_inner + j, 0))
    mask_spec = pl.BlockSpec((TM, 1), lambda c, j: (c * n_inner + j, 0))
    stat_spec = pl.BlockSpec((1, 8, Cp), lambda c, j: (c, 0, 0))      # per-core partials
    # Weight block is grid-invariant, so it is fetched once.  (Could additionally pin it
    # to a single buffer with pipeline_mode=pl.Buffered(1) to drop its second VMEM copy.)
    w_spec = pl.BlockSpec((n_taps, Cin_p, Cp), lambda c, j: (0, 0, 0))

    flops = 2 * Mp * Cin_p * Cp * n_taps
    bytes_acc = (grid[0] * grid[1] * SLAB * Cin_p * 2 + n_taps * Cin_p * Cp * 2
                 + Mp * Cp * 2 + Mp * 4 + 2 * _NCORES * 8 * Cp * 4)

    conv_flat, part_sum, part_sq = pl.pallas_call(
        kernel,
        out_shape=(jax.ShapeDtypeStruct((Mp, Cp), bf16),
                   jax.ShapeDtypeStruct((_NCORES, 8, Cp), f32),
                   jax.ShapeDtypeStruct((_NCORES, 8, Cp), f32)),
        grid_spec=pltpu.PrefetchScalarGridSpec(
            num_scalar_prefetch=0,
            grid=grid,
            in_specs=[pl.BlockSpec(memory_space=pl.ANY),   # activation slab stays in HBM
                      w_spec,
                      mask_spec],
            out_specs=[conv_spec, stat_spec, stat_spec],
            scratch_shapes=[pltpu.VMEM((2, SLAB, Cin_p), bf16),       # double-buffered slab
                            pltpu.SemaphoreType.DMA((2,))]),
        compiler_params=pltpu.CompilerParams(
            dimension_semantics=("parallel", "arbitrary")),
        cost_estimate=pl.CostEstimate(flops=flops, transcendentals=0,
                                      bytes_accessed=bytes_acc),
    )(xf, w_taps, mask)

    # ---- Fold BN (training-mode batch stats, biased variance) into scale/shift. ----
    ch_sum = part_sum[:, 0, :].sum(axis=0)                            # (Cp,)
    ch_sq = part_sq[:, 0, :].sum(axis=0)
    mean = ch_sum / float(M_valid)
    var = jnp.maximum(ch_sq / float(M_valid) - mean * mean, 0.0)
    inv_std = lax.rsqrt(var + eps)
    scale = jnp.pad(gamma.astype(f32), (0, Cp - C_out)) * inv_std
    shift = jnp.pad(beta.astype(f32), (0, Cp - C_out)) - mean * scale

    # ---- Fused XLA epilogue: slice valid rows, normalize + ReLU, NCHW transpose. ----
    conv_v = conv_flat[:M_in].reshape(N, Hp, Wp, Cp)[:, :H_out, :W_out, :C_out]
    y = jnp.maximum(conv_v.astype(f32) * scale[:C_out] + shift[:C_out], 0.0)
    return jnp.transpose(y, (0, 3, 1, 2))


def basic_conv2d_ref(x_nchw, weight, gamma, beta, *, padding=1):
    """Pure-JAX reference mirroring the PyTorch forward; conv operands rounded to bf16
    like the kernel's MXU inputs (documented precision trade), f32 accumulation."""
    xq = x_nchw.astype(jnp.bfloat16).astype(jnp.float32)
    wq = weight.astype(jnp.bfloat16).astype(jnp.float32)
    conv = lax.conv_general_dilated(
        xq, wq, window_strides=(1, 1),
        padding=((padding, padding), (padding, padding)),
        dimension_numbers=("NCHW", "OIHW", "NCHW"))
    mean = conv.mean(axis=(0, 2, 3), keepdims=True)
    var = ((conv - mean) ** 2).mean(axis=(0, 2, 3), keepdims=True)    # biased, like BN
    y = (conv - mean) / jnp.sqrt(var + 1e-3)
    y = y * gamma.reshape(1, -1, 1, 1) + beta.reshape(1, -1, 1, 1)
    return jnp.maximum(y, 0.0)


if __name__ == "__main__":
    # BasicConv2d(in_channels=4, out_channels=8, kernel_size=3, padding=1) on a
    # (2, 4, 16, 16) NCHW input.
    N, C_in, H, W = 2, 4, 16, 16
    C_out, kh, kw = 8, 3, 3

    key = jax.random.PRNGKey(0)
    kx, kw_ = jax.random.split(key)
    x = jax.random.normal(kx, (N, C_in, H, W), dtype=jnp.float32)
    weight = jax.random.normal(kw_, (C_out, C_in, kh, kw), dtype=jnp.float32) * 0.1
    gamma = jnp.ones((C_out,), dtype=jnp.float32)   # BatchNorm2d default weight
    beta = jnp.zeros((C_out,), dtype=jnp.float32)   # BatchNorm2d default bias

    ref = basic_conv2d_ref(x, weight, gamma, beta, padding=1)

    # Production-ish default tile, plus a small tile that exercises the multi-tile
    # double-buffered DMA (prefetch) path on this toy shape.
    for tm in (512, 128):
        fwd = jax.jit(functools.partial(basic_conv2d, padding=1, tm=tm))
        out = jax.block_until_ready(fwd(x, weight, gamma, beta))
        assert out.shape == (N, C_out, H, W), out.shape
        max_err = float(jnp.max(jnp.abs(out - ref)))
        assert jnp.allclose(out, ref, atol=2e-2, rtol=2e-2), \
            f"tm={tm} mismatch vs reference: {max_err}"

    print("KERNEL_OK")
</pallas_src>

<mosaic_0001>
module attributes {stable_mosaic.version = 11 : i64} {
  func.func @kernel(%arg0: i32, %arg1: i32, %arg2: memref<1072x128xbf16, #tpu.memory_space<any>>, %arg3: memref<9x128x128xbf16, #tpu.memory_space<vmem>>, %arg4: memref<512x1xf32, #tpu.memory_space<vmem>>, %arg5: memref<512x128xbf16, #tpu.memory_space<vmem>>, %arg6: memref<1x8x128xf32, #tpu.memory_space<vmem>>, %arg7: memref<1x8x128xf32, #tpu.memory_space<vmem>>, %arg8: memref<2x560x128xbf16, #tpu.memory_space<vmem>>, %arg9: memref<2x!tpu.dma_semaphore, #tpu.memory_space<semaphore_mem>>) attributes {dimension_semantics = [#tpu.dimension_semantics<parallel>, #tpu.dimension_semantics<arbitrary>], iteration_bounds = array<i64: 2, 1>, scalar_prefetch = 0 : i64, scratch_operands = 2 : i64, tpu.core_type = #tpu.core_type<tc>, window_params = [{}, {pipeline_mode = #tpu.pipeline_mode<synchronous>, transform_indices = @transform_1, window_bounds = array<i64: 9, 128, 128>}, {transform_indices = @transform_2, window_bounds = array<i64: 512, 1>}, {transform_indices = @transform_3, window_bounds = array<i64: 512, 128>}, {transform_indices = @transform_4, window_bounds = array<i64: 1, 8, 128>}, {transform_indices = @transform_5, window_bounds = array<i64: 1, 8, 128>}]} {
    %c1_i32 = arith.constant 1 : i32
    %0 = arith.muli %arg0, %c1_i32 : i32
    %1 = arith.addi %0, %arg1 : i32
    %c0_i32 = arith.constant 0 : i32
    %2 = arith.cmpi eq, %arg1, %c0_i32 : i32
    %3 = arith.extui %2 : i1 to i32
    %c0_i32_0 = arith.constant 0 : i32
    %4 = arith.cmpi ne, %3, %c0_i32_0 : i32
    scf.if %4 {
      %cst_64 = arith.constant 0.000000e+00 : f32
      %99 = vector.broadcast %cst_64 : f32 to vector<1x8x128xf32>
      %c0_65 = arith.constant 0 : index
      %c0_66 = arith.constant 0 : index
      %c0_67 = arith.constant 0 : index
      %100 = vector.load %arg6[%c0_65, %c0_66, %c0_67] : memref<1x8x128xf32, #tpu.memory_space<vmem>>, vector<1x8x128xf32>
      tpu.vector_store %arg6[%c0_65, %c0_66, %c0_67], %99 {strides = array<i32>} : memref<1x8x128xf32, #tpu.memory_space<vmem>>, vector<1x8x128xf32>,
      %cst_68 = arith.constant 0.000000e+00 : f32
      %101 = vector.broadcast %cst_68 : f32 to vector<1x8x128xf32>
      %c0_69 = arith.constant 0 : index
      %c0_70 = arith.constant 0 : index
      %c0_71 = arith.constant 0 : index
      %102 = vector.load %arg7[%c0_69, %c0_70, %c0_71] : memref<1x8x128xf32, #tpu.memory_space<vmem>>, vector<1x8x128xf32>
      tpu.vector_store %arg7[%c0_69, %c0_70, %c0_71], %101 {strides = array<i32>} : memref<1x8x128xf32, #tpu.memory_space<vmem>>, vector<1x8x128xf32>,
      %c512_i32_72 = arith.constant 512 : i32
      %103 = arith.muli %1, %c512_i32_72 : i32
      %104 = tpu.assume_multiple %103, 512 : i32
      %c0_i32_73 = arith.constant 0 : i32
      %c0_i32_74 = arith.constant 0 : i32
      %c0_i32_75 = arith.constant 0 : i32
      %105 = tpu.memref_slice %arg2[%104, %c0_i32_75] : memref<1072x128xbf16, #tpu.memory_space<any>> -> memref<560x128xbf16, #tpu.memory_space<any>>
      %c0_i32_76 = arith.constant 0 : i32
      %c0_i32_77 = arith.constant 0 : i32
      %106 = tpu.memref_slice %arg8[%c0_i32_73, %c0_i32_76, %c0_i32_77] : memref<2x560x128xbf16, #tpu.memory_space<vmem>> -> memref<1x560x128xbf16, #tpu.memory_space<vmem>>
      %107 = tpu.memref_squeeze %106 : memref<1x560x128xbf16, #tpu.memory_space<vmem>> -> memref<560x128xbf16, #tpu.memory_space<vmem>>
      %108 = tpu.memref_slice %arg9[%c0_i32_74] : memref<2x!tpu.dma_semaphore, #tpu.memory_space<semaphore_mem>> -> memref<1x!tpu.dma_semaphore, #tpu.memory_space<semaphore_mem>>
      %109 = tpu.memref_squeeze %108 : memref<1x!tpu.dma_semaphore, #tpu.memory_space<semaphore_mem>> -> memref<!tpu.dma_semaphore, #tpu.memory_space<semaphore_mem>>
      tpu.enqueue_dma source(%105 : memref<560x128xbf16, #tpu.memory_space<any>>) target(%107 : memref<560x128xbf16, #tpu.memory_space<vmem>>) target_semaphore(%109 : memref<!tpu.dma_semaphore, #tpu.memory_space<semaphore_mem>>)
    } else {
    }
    %c1_i32_1 = arith.constant 1 : i32
    %5 = arith.addi %arg1, %c1_i32_1 : i32
    %c1_i32_2 = arith.constant 1 : i32
    %6 = arith.cmpi slt, %5, %c1_i32_2 : i32
    %7 = arith.extui %6 : i1 to i32
    %c0_i32_3 = arith.constant 0 : i32
    %8 = arith.cmpi ne, %7, %c0_i32_3 : i32
    scf.if %8 {
      %c1_i32_64 = arith.constant 1 : i32
      %99 = arith.addi %1, %c1_i32_64 : i32
      %c1_i32_65 = arith.constant 1 : i32
      %100 = arith.addi %arg1, %c1_i32_65 : i32
      %c1_i32_66 = arith.constant 1 : i32
      %101 = arith.andi %100, %c1_i32_66 : i32
      %c512_i32_67 = arith.constant 512 : i32
      %102 = arith.muli %99, %c512_i32_67 : i32
      %103 = tpu.assume_multiple %102, 512 : i32
      %c0_i32_68 = arith.constant 0 : i32
      %104 = tpu.memref_slice %arg2[%103, %c0_i32_68] : memref<1072x128xbf16, #tpu.memory_space<any>> -> memref<560x128xbf16, #tpu.memory_space<any>>
      %c0_i32_69 = arith.constant 0 : i32
      %c0_i32_70 = arith.constant 0 : i32
      %105 = tpu.memref_slice %arg8[%101, %c0_i32_69, %c0_i32_70] : memref<2x560x128xbf16, #tpu.memory_space<vmem>> -> memref<1x560x128xbf16, #tpu.memory_space<vmem>>
      %106 = tpu.memref_squeeze %105 : memref<1x560x128xbf16, #tpu.memory_space<vmem>> -> memref<560x128xbf16, #tpu.memory_space<vmem>>
      %107 = tpu.memref_slice %arg9[%101] : memref<2x!tpu.dma_semaphore, #tpu.memory_space<semaphore_mem>> -> memref<1x!tpu.dma_semaphore, #tpu.memory_space<semaphore_mem>>
      %108 = tpu.memref_squeeze %107 : memref<1x!tpu.dma_semaphore, #tpu.memory_space<semaphore_mem>> -> memref<!tpu.dma_semaphore, #tpu.memory_space<semaphore_mem>>
      tpu.enqueue_dma source(%104 : memref<560x128xbf16, #tpu.memory_space<any>>) target(%106 : memref<560x128xbf16, #tpu.memory_space<vmem>>) target_semaphore(%108 : memref<!tpu.dma_semaphore, #tpu.memory_space<semaphore_mem>>)
    } else {
    }
    %c1_i32_4 = arith.constant 1 : i32
    %9 = arith.andi %arg1, %c1_i32_4 : i32
    %c512_i32 = arith.constant 512 : i32
    %10 = arith.muli %1, %c512_i32 : i32
    %11 = tpu.assume_multiple %10, 512 : i32
    %c0_i32_5 = arith.constant 0 : i32
    %12 = tpu.memref_slice %arg2[%11, %c0_i32_5] : memref<1072x128xbf16, #tpu.memory_space<any>> -> memref<560x128xbf16, #tpu.memory_space<any>>
    %c0_i32_6 = arith.constant 0 : i32
    %c0_i32_7 = arith.constant 0 : i32
    %13 = tpu.memref_slice %arg8[%9, %c0_i32_6, %c0_i32_7] : memref<2x560x128xbf16, #tpu.memory_space<vmem>> -> memref<1x560x128xbf16, #tpu.memory_space<vmem>>
    %14 = tpu.memref_squeeze %13 : memref<1x560x128xbf16, #tpu.memory_space<vmem>> -> memref<560x128xbf16, #tpu.memory_space<vmem>>
    %15 = tpu.memref_slice %arg9[%9] : memref<2x!tpu.dma_semaphore, #tpu.memory_space<semaphore_mem>> -> memref<1x!tpu.dma_semaphore, #tpu.memory_space<semaphore_mem>>
    %16 = tpu.memref_squeeze %15 : memref<1x!tpu.dma_semaphore, #tpu.memory_space<semaphore_mem>> -> memref<!tpu.dma_semaphore, #tpu.memory_space<semaphore_mem>>
    tpu.wait_dma2 semaphore(%16 : memref<!tpu.dma_semaphore, #tpu.memory_space<semaphore_mem>>) src(%12 : memref<560x128xbf16, #tpu.memory_space<any>>) dst(%14 : memref<560x128xbf16, #tpu.memory_space<vmem>>)
    %17 = arith.index_cast %9 : i32 to index
    %c0 = arith.constant 0 : index
    %c0_8 = arith.constant 0 : index
    %18 = vector.load %arg8[%17, %c0, %c0_8] : memref<2x560x128xbf16, #tpu.memory_space<vmem>>, vector<1x512x128xbf16>
    %19 = vector.shape_cast %18 : vector<1x512x128xbf16> to vector<512x128xbf16>
    %c0_9 = arith.constant 0 : index
    %c0_10 = arith.constant 0 : index
    %c0_11 = arith.constant 0 : index
    %20 = vector.load %arg3[%c0_9, %c0_10, %c0_11] : memref<9x128x128xbf16, #tpu.memory_space<vmem>>, vector<1x128x128xbf16>
    %21 = vector.shape_cast %20 : vector<1x128x128xbf16> to vector<128x128xbf16>
    %cst = arith.constant dense<0.000000e+00> : vector<512x128xf32>
    %22 = tpu.matmul %19, %21, %cst {dimension_numbers = #tpu.dot_dimension_numbers<[1], [0], [0], [1], [0, 0, 1, 1], [], []>} : vector<512x128xbf16>, vector<128x128xbf16>, vector<512x128xf32> -> vector<512x128xf32>
    %23 = arith.index_cast %9 : i32 to index
    %c1 = arith.constant 1 : index
    %c0_12 = arith.constant 0 : index
    %24 = vector.load %arg8[%23, %c1, %c0_12] : memref<2x560x128xbf16, #tpu.memory_space<vmem>>, vector<1x512x128xbf16>
    %25 = vector.shape_cast %24 : vector<1x512x128xbf16> to vector<512x128xbf16>
    %c1_13 = arith.constant 1 : index
    %c0_14 = arith.constant 0 : index
    %c0_15 = arith.constant 0 : index
    %26 = vector.load %arg3[%c1_13, %c0_14, %c0_15] : memref<9x128x128xbf16, #tpu.memory_space<vmem>>, vector<1x128x128xbf16>
    %27 = vector.shape_cast %26 : vector<1x128x128xbf16> to vector<128x128xbf16>
    %cst_16 = arith.constant dense<0.000000e+00> : vector<512x128xf32>
    %28 = tpu.matmul %25, %27, %cst_16 {dimension_numbers = #tpu.dot_dimension_numbers<[1], [0], [0], [1], [0, 0, 1, 1], [], []>} : vector<512x128xbf16>, vector<128x128xbf16>, vector<512x128xf32> -> vector<512x128xf32>
    %29 = arith.addf %22, %28 : vector<512x128xf32>
    %30 = arith.index_cast %9 : i32 to index
    %c2 = arith.constant 2 : index
    %c0_17 = arith.constant 0 : index
    %31 = vector.load %arg8[%30, %c2, %c0_17] : memref<2x560x128xbf16, #tpu.memory_space<vmem>>, vector<1x512x128xbf16>
    %32 = vector.shape_cast %31 : vector<1x512x128xbf16> to vector<512x128xbf16>
    %c2_18 = arith.constant 2 : index
    %c0_19 = arith.constant 0 : index
    %c0_20 = arith.constant 0 : index
    %33 = vector.load %arg3[%c2_18, %c0_19, %c0_20] : memref<9x128x128xbf16, #tpu.memory_space<vmem>>, vector<1x128x128xbf16>
    %34 = vector.shape_cast %33 : vector<1x128x128xbf16> to vector<128x128xbf16>
    %cst_21 = arith.constant dense<0.000000e+00> : vector<512x128xf32>
    %35 = tpu.matmul %32, %34, %cst_21 {dimension_numbers = #tpu.dot_dimension_numbers<[1], [0], [0], [1], [0, 0, 1, 1], [], []>} : vector<512x128xbf16>, vector<128x128xbf16>, vector<512x128xf32> -> vector<512x128xf32>
    %36 = arith.addf %29, %35 : vector<512x128xf32>
    %37 = arith.index_cast %9 : i32 to index
    %c18 = arith.constant 18 : index
    %c0_22 = arith.constant 0 : index
    %38 = vector.load %arg8[%37, %c18, %c0_22] : memref<2x560x128xbf16, #tpu.memory_space<vmem>>, vector<1x512x128xbf16>
    %39 = vector.shape_cast %38 : vector<1x512x128xbf16> to vector<512x128xbf16>
    %c3 = arith.constant 3 : index
    %c0_23 = arith.constant 0 : index
    %c0_24 = arith.constant 0 : index
    %40 = vector.load %arg3[%c3, %c0_23, %c0_24] : memref<9x128x128xbf16, #tpu.memory_space<vmem>>, vector<1x128x128xbf16>
    %41 = vector.shape_cast %40 : vector<1x128x128xbf16> to vector<128x128xbf16>
    %cst_25 = arith.constant dense<0.000000e+00> : vector<512x128xf32>
    %42 = tpu.matmul %39, %41, %cst_25 {dimension_numbers = #tpu.dot_dimension_numbers<[1], [0], [0], [1], [0, 0, 1, 1], [], []>} : vector<512x128xbf16>, vector<128x128xbf16>, vector<512x128xf32> -> vector<512x128xf32>
    %43 = arith.addf %36, %42 : vector<512x128xf32>
    %44 = arith.index_cast %9 : i32 to index
    %c19 = arith.constant 19 : index
    %c0_26 = arith.constant 0 : index
    %45 = vector.load %arg8[%44, %c19, %c0_26] : memref<2x560x128xbf16, #tpu.memory_space<vmem>>, vector<1x512x128xbf16>
    %46 = vector.shape_cast %45 : vector<1x512x128xbf16> to vector<512x128xbf16>
    %c4 = arith.constant 4 : index
    %c0_27 = arith.constant 0 : index
    %c0_28 = arith.constant 0 : index
    %47 = vector.load %arg3[%c4, %c0_27, %c0_28] : memref<9x128x128xbf16, #tpu.memory_space<vmem>>, vector<1x128x128xbf16>
    %48 = vector.shape_cast %47 : vector<1x128x128xbf16> to vector<128x128xbf16>
    %cst_29 = arith.constant dense<0.000000e+00> : vector<512x128xf32>
    %49 = tpu.matmul %46, %48, %cst_29 {dimension_numbers = #tpu.dot_dimension_numbers<[1], [0], [0], [1], [0, 0, 1, 1], [], []>} : vector<512x128xbf16>, vector<128x128xbf16>, vector<512x128xf32> -> vector<512x128xf32>
    %50 = arith.addf %43, %49 : vector<512x128xf32>
    %51 = arith.index_cast %9 : i32 to index
    %c20 = arith.constant 20 : index
    %c0_30 = arith.constant 0 : index
    %52 = vector.load %arg8[%51, %c20, %c0_30] : memref<2x560x128xbf16, #tpu.memory_space<vmem>>, vector<1x512x128xbf16>
    %53 = vector.shape_cast %52 : vector<1x512x128xbf16> to vector<512x128xbf16>
    %c5 = arith.constant 5 : index
    %c0_31 = arith.constant 0 : index
    %c0_32 = arith.constant 0 : index
    %54 = vector.load %arg3[%c5, %c0_31, %c0_32] : memref<9x128x128xbf16, #tpu.memory_space<vmem>>, vector<1x128x128xbf16>
    %55 = vector.shape_cast %54 : vector<1x128x128xbf16> to vector<128x128xbf16>
    %cst_33 = arith.constant dense<0.000000e+00> : vector<512x128xf32>
    %56 = tpu.matmul %53, %55, %cst_33 {dimension_numbers = #tpu.dot_dimension_numbers<[1], [0], [0], [1], [0, 0, 1, 1], [], []>} : vector<512x128xbf16>, vector<128x128xbf16>, vector<512x128xf32> -> vector<512x128xf32>
    %57 = arith.addf %50, %56 : vector<512x128xf32>
    %58 = arith.index_cast %9 : i32 to index
    %c36 = arith.constant 36 : index
    %c0_34 = arith.constant 0 : index
    %59 = vector.load %arg8[%58, %c36, %c0_34] : memref<2x560x128xbf16, #tpu.memory_space<vmem>>, vector<1x512x128xbf16>
    %60 = vector.shape_cast %59 : vector<1x512x128xbf16> to vector<512x128xbf16>
    %c6 = arith.constant 6 : index
    %c0_35 = arith.constant 0 : index
    %c0_36 = arith.constant 0 : index
    %61 = vector.load %arg3[%c6, %c0_35, %c0_36] : memref<9x128x128xbf16, #tpu.memory_space<vmem>>, vector<1x128x128xbf16>
    %62 = vector.shape_cast %61 : vector<1x128x128xbf16> to vector<128x128xbf16>
    %cst_37 = arith.constant dense<0.000000e+00> : vector<512x128xf32>
    %63 = tpu.matmul %60, %62, %cst_37 {dimension_numbers = #tpu.dot_dimension_numbers<[1], [0], [0], [1], [0, 0, 1, 1], [], []>} : vector<512x128xbf16>, vector<128x128xbf16>, vector<512x128xf32> -> vector<512x128xf32>
    %64 = arith.addf %57, %63 : vector<512x128xf32>
    %65 = arith.index_cast %9 : i32 to index
    %c37 = arith.constant 37 : index
    %c0_38 = arith.constant 0 : index
    %66 = vector.load %arg8[%65, %c37, %c0_38] : memref<2x560x128xbf16, #tpu.memory_space<vmem>>, vector<1x512x128xbf16>
    %67 = vector.shape_cast %66 : vector<1x512x128xbf16> to vector<512x128xbf16>
    %c7 = arith.constant 7 : index
    %c0_39 = arith.constant 0 : index
    %c0_40 = arith.constant 0 : index
    %68 = vector.load %arg3[%c7, %c0_39, %c0_40] : memref<9x128x128xbf16, #tpu.memory_space<vmem>>, vector<1x128x128xbf16>
    %69 = vector.shape_cast %68 : vector<1x128x128xbf16> to vector<128x128xbf16>
    %cst_41 = arith.constant dense<0.000000e+00> : vector<512x128xf32>
    %70 = tpu.matmul %67, %69, %cst_41 {dimension_numbers = #tpu.dot_dimension_numbers<[1], [0], [0], [1], [0, 0, 1, 1], [], []>} : vector<512x128xbf16>, vector<128x128xbf16>, vector<512x128xf32> -> vector<512x128xf32>
    %71 = arith.addf %64, %70 : vector<512x128xf32>
    %72 = arith.index_cast %9 : i32 to index
    %c38 = arith.constant 38 : index
    %c0_42 = arith.constant 0 : index
    %73 = vector.load %arg8[%72, %c38, %c0_42] : memref<2x560x128xbf16, #tpu.memory_space<vmem>>, vector<1x512x128xbf16>
    %74 = vector.shape_cast %73 : vector<1x512x128xbf16> to vector<512x128xbf16>
    %c8 = arith.constant 8 : index
    %c0_43 = arith.constant 0 : index
    %c0_44 = arith.constant 0 : index
    %75 = vector.load %arg3[%c8, %c0_43, %c0_44] : memref<9x128x128xbf16, #tpu.memory_space<vmem>>, vector<1x128x128xbf16>
    %76 = vector.shape_cast %75 : vector<1x128x128xbf16> to vector<128x128xbf16>
    %cst_45 = arith.constant dense<0.000000e+00> : vector<512x128xf32>
    %77 = tpu.matmul %74, %76, %cst_45 {dimension_numbers = #tpu.dot_dimension_numbers<[1], [0], [0], [1], [0, 0, 1, 1], [], []>} : vector<512x128xbf16>, vector<128x128xbf16>, vector<512x128xf32> -> vector<512x128xf32>
    %78 = arith.addf %71, %77 : vector<512x128xf32>
    %79 = arith.truncf %78 : vector<512x128xf32> to vector<512x128xbf16>
    %c0_46 = arith.constant 0 : index
    %c0_47 = arith.constant 0 : index
    %80 = vector.load %arg5[%c0_46, %c0_47] : memref<512x128xbf16, #tpu.memory_space<vmem>>, vector<512x128xbf16>
    tpu.vector_store %arg5[%c0_46, %c0_47], %79 {strides = array<i32>} : memref<512x128xbf16, #tpu.memory_space<vmem>>, vector<512x128xbf16>,
    %c0_48 = arith.constant 0 : index
    %c0_49 = arith.constant 0 : index
    %81 = vector.load %arg4[%c0_48, %c0_49] : memref<512x1xf32, #tpu.memory_space<vmem>>, vector<512x1xf32>
    %82 = vector.broadcast %81 : vector<512x1xf32> to vector<512x128xf32>
    %83 = arith.mulf %78, %82 : vector<512x128xf32>
    %c0_50 = arith.constant 0 : index
    %c0_51 = arith.constant 0 : index
    %c0_52 = arith.constant 0 : index
    %84 = vector.load %arg6[%c0_50, %c0_51, %c0_52] : memref<1x8x128xf32, #tpu.memory_space<vmem>>, vector<1x8x128xf32>
    %cst_53 = arith.constant dense<0.000000e+00> : vector<128xf32>
    %85 = vector.multi_reduction <add>, %83, %cst_53 [0] : vector<512x128xf32> to vector<128xf32>
    %86 = vector.shape_cast %85 : vector<128xf32> to vector<1x128xf32>
    %87 = vector.shape_cast %86 : vector<1x128xf32> to vector<1x1x128xf32>
    %88 = vector.broadcast %87 : vector<1x1x128xf32> to vector<1x8x128xf32>
    %89 = arith.addf %84, %88 : vector<1x8x128xf32>
    %c0_54 = arith.constant 0 : index
    %c0_55 = arith.constant 0 : index
    %c0_56 = arith.constant 0 : index
    %90 = vector.load %arg6[%c0_54, %c0_55, %c0_56] : memref<1x8x128xf32, #tpu.memory_space<vmem>>, vector<1x8x128xf32>
    tpu.vector_store %arg6[%c0_54, %c0_55, %c0_56], %89 {strides = array<i32>} : memref<1x8x128xf32, #tpu.memory_space<vmem>>, vector<1x8x128xf32>,
    %c0_57 = arith.constant 0 : index
    %c0_58 = arith.constant 0 : index
    %c0_59 = arith.constant 0 : index
    %91 = vector.load %arg7[%c0_57, %c0_58, %c0_59] : memref<1x8x128xf32, #tpu.memory_space<vmem>>, vector<1x8x128xf32>
    %92 = arith.mulf %83, %78 : vector<512x128xf32>
    %cst_60 = arith.constant dense<0.000000e+00> : vector<128xf32>
    %93 = vector.multi_reduction <add>, %92, %cst_60 [0] : vector<512x128xf32> to vector<128xf32>
    %94 = vector.shape_cast %93 : vector<128xf32> to vector<1x128xf32>
    %95 = vector.shape_cast %94 : vector<1x128xf32> to vector<1x1x128xf32>
    %96 = vector.broadcast %95 : vector<1x1x128xf32> to vector<1x8x128xf32>
    %97 = arith.addf %91, %96 : vector<1x8x128xf32>
    %c0_61 = arith.constant 0 : index
    %c0_62 = arith.constant 0 : index
    %c0_63 = arith.constant 0 : index
    %98 = vector.load %arg7[%c0_61, %c0_62, %c0_63] : memref<1x8x128xf32, #tpu.memory_space<vmem>>, vector<1x8x128xf32>
    tpu.vector_store %arg7[%c0_61, %c0_62, %c0_63], %97 {strides = array<i32>} : memref<1x8x128xf32, #tpu.memory_space<vmem>>, vector<1x8x128xf32>,
    return
  }
  func.func @transform_1(%arg0: i32, %arg1: i32) -> (i32, i32, i32) {
    %c0_i32 = arith.constant 0 : i32
    %c0_i32_0 = arith.constant 0 : i32
    %c0_i32_1 = arith.constant 0 : i32
    %c0_i32_2 = arith.constant 0 : i32
    return %c0_i32, %c0_i32_0, %c0_i32_1 : i32, i32, i32
  }
  func.func @transform_2(%arg0: i32, %arg1: i32) -> (i32, i32) {
    %c1_i32 = arith.constant 1 : i32
    %0 = arith.muli %arg0, %c1_i32 : i32
    %1 = arith.addi %0, %arg1 : i32
    %c0_i32 = arith.constant 0 : i32
    %c0_i32_0 = arith.constant 0 : i32
    return %1, %c0_i32 : i32, i32
  }
  func.func @transform_3(%arg0: i32, %arg1: i32) -> (i32, i32) {
    %c1_i32 = arith.constant 1 : i32
    %0 = arith.muli %arg0, %c1_i32 : i32
    %1 = arith.addi %0, %arg1 : i32
    %c0_i32 = arith.constant 0 : i32
    %c0_i32_0 = arith.constant 0 : i32
    return %1, %c0_i32 : i32, i32
  }
  func.func @transform_4(%arg0: i32, %arg1: i32) -> (i32, i32, i32) {
    %c0_i32 = arith.constant 0 : i32
    %c0_i32_0 = arith.constant 0 : i32
    %c0_i32_1 = arith.constant 0 : i32
    return %arg0, %c0_i32, %c0_i32_0 : i32, i32, i32
  }
  func.func @transform_5(%arg0: i32, %arg1: i32) -> (i32, i32, i32) {
    %c0_i32 = arith.constant 0 : i32
    %c0_i32_0 = arith.constant 0 : i32
    %c0_i32_1 = arith.constant 0 : i32
    return %arg0, %c0_i32, %c0_i32_0 : i32, i32, i32
  }
}

</mosaic_0001>

<llo_original>
// kernel: basic_conv2d.1
$region0: #{basic_conv2d.1}
  #allocation0 [shape = 'u32[]', space=smem, size = 0x4, offset = 0x4, fixed_abs, tag = 'smem constant byte address 0x4 - core index']
  #allocation1 [shape = 'u32[144,128]{1,0:T(1,128)}', space=vmem, size = 0x12000, scoped, tag = 'internal scratch']
  #allocation2 [shape = 'bf16[2,560,128]{2,1,0:T(16,128)(2,1)}', space=vmem, size = 0x46000, scoped, tag = 'scratch operand']
  #allocation3 [shape = 's32[2]{0}', space=sflag, size = 0x8, scoped, tag = 'scratch operand']
  #allocation4 [shape = 's32[]', space=sflag, size = 0x4, offset = 0, fixed_abs, tag = 'sflag constant byte address 0x0 - dummy sync flag']
  #allocation5 [shape = 's32[]', space=sflag, size = 0x4, offset = 0, fixed_abs, tag = 'sflag constant byte address 0x0 - dummy sync flag']
  %s0 = inlined_call_operand.vmem [shape: bf16[1072,128], index: 0, kind: input, shape index: {}]
  %s1 = inlined_call_operand.vmem [shape: bf16[9,128,128], index: 1, kind: input, shape index: {}]
  %s2 = inlined_call_operand.vmem [shape: f32[1024,1], index: 2, kind: input, shape index: {}]
  %s3 = inlined_call_operand.vmem [shape: bf16[1024,128], index: 3, kind: output, shape index: {0}]
  %s4 = inlined_call_operand.vmem [shape: f32[2,8,128], index: 4, kind: output, shape index: {1}]
  %s5 = inlined_call_operand.vmem [shape: f32[2,8,128], index: 5, kind: output, shape index: {2}]
  %6 = xla_tuple %s3, %s4, %s5
  %s7 = sld [smem:[#allocation0]]
  $region133: #{basic_conv2d.1} parent=0
    _
  %s9 = ssub.s32 1, %s7
  %s10 = scalar_select 0, %s9, %s7
  loop: start=0, step=1, limit=4
  $region2: #{basic_conv2d.1} parent=0 // loop_pre_header
    _
  $region3: #{basic_conv2d.1} parent=0 // loop_header
    %s12 = sphi 0, %s16
    %p13 = scmp.ge.s32.totalorder %s12, 4
    %s19 = sphi 0, %s31
    %s20 = sphi 0, %s27
    %s21 = sphi 0, %s19
    %s22 = sphi 0, %s20
    %s23 = sphi 0, %s21
    %s24 = sphi 0, %s22
    %s32 = sphi 0, %s32
    %s34 = sphi 0, %s32
    %s35 = sphi 0, %s34
    %s49 = sphi 0, %s35
    %s57 = sphi 0, %s59
    %s60 = sphi 0, %s57
    %s61 = sphi 0, %s60
    %s77 = sphi 0, %s61
    %s85 = sphi 0, %s87
    %s88 = sphi 0, %s85
    %s89 = sphi 0, %s88
    %s105 = sphi 0, %s89
    %s111 = sphi 0, %s113
    %s114 = sphi 0, %s111
    %s115 = sphi 0, %s114
    %s131 = sphi 0, %s115
    %s137 = sphi 0, %s139
    %s140 = sphi 0, %s137
    %s141 = sphi 0, %s140
    %s157 = sphi 0, %s141
  $region4: #{basic_conv2d.1} parent=0 // loop_header_branch
    %15 = sbr.rel (%p13) target = $region8
  $region5: #{basic_conv2d.1} parent=0 // loop_body
    %s17 = ssub.s32 %s12, 1
    %s18 = ssub.s32 %s12, 2
    %s25 = sadd.s32 1, %s20
    %p26 = scmp.ge.s32.totalorder %s25, 1
    %s27 = scalar_select %p26, 0, %s25
    %s28 = sadd.s32 1, %s19
    %s29 = scalar_select %p26, %s28, %s19
    %p30 = scmp.ge.s32.totalorder %s29, 2
    %s31 = scalar_select %p30, 0, %s29
    %s33 = sadd.s32 %s32, 1
    %p36 = scmp.eq.s32.totalorder %s12, 1
    %p37 = scmp.ne.s32.totalorder %s32, %s34
    %p38 = scmp.eq.s32.totalorder %s12, 0
    %p39 = por %p37, %p38
    %p40 = scmp.ne.s32.totalorder %s32, %s34
    %p41 = scmp.eq.s32.totalorder %s17, 1
    %p42 = por %p40, %p41
    %p43 = scmp.ne.s32.totalorder %s34, %s35
    %p44 = scmp.eq.s32.totalorder %s17, 0
    %p45 = por %p43, %p44
    %p46 = scmp.ne.s32.totalorder %s34, %s35
    %p47 = scmp.eq.s32.totalorder %s18, 1
    %p48 = por %p46, %p47
    %p50 = scmp.ne.s32.totalorder %s35, %s49
    %p51 = scmp.eq.s32.totalorder %s18, 0
    %p52 = por %p50, %p51
    %s53 = sadd.s32 %s19, %s20
    %s54 = sadd.s32 %s31, %s27
    %s55 = ssub.s32 %s53, %s54
    %p56 = scmp.eq.s32.totalorder %s55, 0
    %s58 = sadd.s32 %s57, 1
    %s59 = scalar_select %p56, %s57, %s58
    %p62 = pneg %p56
    %p63 = scmp.eq.s32.totalorder %s12, 1
    %p64 = por %p62, %p63
    %p65 = scmp.ne.s32.totalorder %s57, %s60
    %p66 = scmp.eq.s32.totalorder %s12, 0
    %p67 = por %p65, %p66
    %p68 = scmp.ne.s32.totalorder %s57, %s60
    %p69 = scmp.eq.s32.totalorder %s17, 1
    %p70 = por %p68, %p69
    %p71 = scmp.ne.s32.totalorder %s60, %s61
    %p72 = scmp.eq.s32.totalorder %s17, 0
    %p73 = por %p71, %p72
    %p74 = scmp.ne.s32.totalorder %s60, %s61
    %p75 = scmp.eq.s32.totalorder %s18, 1
    %p76 = por %p74, %p75
    %p78 = scmp.ne.s32.totalorder %s61, %s77
    %p79 = scmp.eq.s32.totalorder %s18, 0
    %p80 = por %p78, %p79
    %s81 = sadd.s32 %s19, %s20
    %s82 = sadd.s32 %s31, %s27
    %s83 = ssub.s32 %s81, %s82
    %p84 = scmp.eq.s32.totalorder %s83, 0
    %s86 = sadd.s32 %s85, 1
    %s87 = scalar_select %p84, %s85, %s86
    %p90 = pneg %p84
    %p91 = scmp.eq.s32.totalorder %s12, 1
    %p92 = por %p90, %p91
    %p93 = scmp.ne.s32.totalorder %s85, %s88
    %p94 = scmp.eq.s32.totalorder %s12, 0
    %p95 = por %p93, %p94
    %p96 = scmp.ne.s32.totalorder %s85, %s88
    %p97 = scmp.eq.s32.totalorder %s17, 1
    %p98 = por %p96, %p97
    %p99 = scmp.ne.s32.totalorder %s88, %s89
    %p100 = scmp.eq.s32.totalorder %s17, 0
    %p101 = por %p99, %p100
    %p102 = scmp.ne.s32.totalorder %s88, %s89
    %p103 = scmp.eq.s32.totalorder %s18, 1
    %p104 = por %p102, %p103
    %p106 = scmp.ne.s32.totalorder %s89, %s105
    %p107 = scmp.eq.s32.totalorder %s18, 0
    %p108 = por %p106, %p107
    %s109 = ssub.s32 %s19, %s31
    %p110 = scmp.eq.s32.totalorder %s109, 0
    %s112 = sadd.s32 %s111, 1
    %s113 = scalar_select %p110, %s111, %s112
    %p116 = pneg %p110
    %p117 = scmp.eq.s32.totalorder %s12, 1
    %p118 = por %p116, %p117
    %p119 = scmp.ne.s32.totalorder %s111, %s114
    %p120 = scmp.eq.s32.totalorder %s12, 0
    %p121 = por %p119, %p120
    %p122 = scmp.ne.s32.totalorder %s111, %s114
    %p123 = scmp.eq.s32.totalorder %s17, 1
    %p124 = por %p122, %p123
    %p125 = scmp.ne.s32.totalorder %s114, %s115
    %p126 = scmp.eq.s32.totalorder %s17, 0
    %p127 = por %p125, %p126
    %p128 = scmp.ne.s32.totalorder %s114, %s115
    %p129 = scmp.eq.s32.totalorder %s18, 1
    %p130 = por %p128, %p129
    %p132 = scmp.ne.s32.totalorder %s115, %s131
    %p133 = scmp.eq.s32.totalorder %s18, 0
    %p134 = por %p132, %p133
    %s135 = ssub.s32 %s19, %s31
    %p136 = scmp.eq.s32.totalorder %s135, 0
    %s138 = sadd.s32 %s137, 1
    %s139 = scalar_select %p136, %s137, %s138
    %p142 = pneg %p136
    %p143 = scmp.eq.s32.totalorder %s12, 1
    %p144 = por %p142, %p143
    %p145 = scmp.ne.s32.totalorder %s137, %s140
    %p146 = scmp.eq.s32.totalorder %s12, 0
    %p147 = por %p145, %p146
    %p148 = scmp.ne.s32.totalorder %s137, %s140
    %p149 = scmp.eq.s32.totalorder %s17, 1
    %p150 = por %p148, %p149
    %p151 = scmp.ne.s32.totalorder %s140, %s141
    %p152 = scmp.eq.s32.totalorder %s17, 0
    %p153 = por %p151, %p152
    %p154 = scmp.ne.s32.totalorder %s140, %s141
    %p155 = scmp.eq.s32.totalorder %s18, 1
    %p156 = por %p154, %p155
    %p158 = scmp.ne.s32.totalorder %s141, %s157
    %p159 = scmp.eq.s32.totalorder %s18, 0
    %p160 = por %p158, %p159
    %p161 = scmp.le.s32.totalorder 1, %s12
    %p162 = scmp.lt.s32.totalorder %s12, 3
    %p163 = pnand %p161, %p162
    %p164 = pneg %p163
    // Predicated region
    $region9: #{basic_conv2d.1} parent=5 // pred_check
      _
    $region10: #{basic_conv2d.1} parent=5 // pred_check_branch
      %166 = sbr.rel (%p163) target = $region12
    $region11: #{basic_conv2d.1} parent=5 // pred_region
      %s167 = ssub.s32 %s12, 1
      // Predicated region
      $region13: #{basic_conv2d.1} parent=11 // pred_check
        %p168 = pneg %p45
      $region14: #{basic_conv2d.1} parent=11 // pred_check_branch
        %170 = sbr.rel (%p168) target = $region16
      $region15: #{basic_conv2d.1} parent=11 // pred_region
        _
      $region16: #{basic_conv2d.1} parent=11 // pred_fallthru
        _
    $region12: #{basic_conv2d.1} parent=5 // pred_fallthru
      _
    %p171 = scmp.lt.s32.totalorder %s12, 2
    // Predicated region
    $region17: #{basic_conv2d.1} parent=5 // pred_check
      %p172 = pneg %p171
    $region18: #{basic_conv2d.1} parent=5 // pred_check_branch
      %174 = sbr.rel (%p172) target = $region20
    $region19: #{basic_conv2d.1} parent=5 // pred_region
      // Predicated region
      $region21: #{basic_conv2d.1} parent=19 // pred_check
        %p175 = pneg %p67
      $region22: #{basic_conv2d.1} parent=19 // pred_check_branch
        %177 = sbr.rel (%p175) target = $region24
      $region23: #{basic_conv2d.1} parent=19 // pred_region
        %s178 = sadd.s32 %s19, %s20
        %s179 = smul.u32 64, %s178
        %p180 = scmp.lt.s32.totalorder %s179, 127
        %s181 = scalar_select %p180, %s179, 127
        %s182 = smul.addr %s181, 8
        %s183 = scalar_lea.vmem %s2, %s182
        %s184 = sadd.s32 %s19, %s20
        %s185 = smul.u32 64, %s184
      $region24: #{basic_conv2d.1} parent=19 // pred_fallthru
        _
    $region20: #{basic_conv2d.1} parent=5 // pred_fallthru
      _
    %p186 = scmp.le.s32.totalorder 1, %s12
    %p187 = scmp.lt.s32.totalorder %s12, 3
    %p188 = pnand %p186, %p187
    %p189 = pneg %p188
    // Predicated region
    $region25: #{basic_conv2d.1} parent=5 // pred_check
      _
    $region26: #{basic_conv2d.1} parent=5 // pred_check_branch
      %191 = sbr.rel (%p188) target = $region28
    $region27: #{basic_conv2d.1} parent=5 // pred_region
      %s192 = ssub.s32 %s12, 1
      %p193 = pneg %p45
      %p194 = pneg %p42
      %s195 = sadd.s32 %s21, %s22
      %s196 = smul.u32 64, %s195
      %p197 = scmp.lt.s32.totalorder %s196, 127
      %s198 = scalar_select %p197, %s196, 127
      %s199 = smul.addr %s198, 8
      %s200 = scalar_lea.vmem %s2, %s199
      %p201 = pneg %p73
      %p202 = pneg %p70
      %p203 = pneg %p101
      %p204 = pneg %p98
      %s205 = sadd.s32 %s21, %s22
      %s206 = smul.u32 64, %s205
      %p207 = scmp.lt.s32.totalorder %s206, 127
      %s208 = scalar_select %p207, %s206, 127
      %s209 = smul.addr %s208, 4
      %s210 = scalar_lea.vmem %s3, %s209
      %p211 = pneg %p127
      %p212 = pneg %p124
      %p213 = scmp.lt.s32.totalorder %s21, 1
      %s214 = scalar_select %p213, %s21, 1
      %s215 = smul.addr %s214, 8
      %s216 = scalar_lea.vmem %s4, %s215
      %p217 = pneg %p153
      %p218 = pneg %p150
      %p219 = scmp.lt.s32.totalorder %s21, 1
      %s220 = scalar_select %p219, %s21, 1
      %s221 = smul.addr %s220, 8
      %s222 = scalar_lea.vmem %s5, %s221
      %s223 = sadd.s32 %s21, %s22
      %s224 = smul.u32 64, %s223
      %p225 = scmp.lt.s32.totalorder %s224, 127
      %s226 = scalar_select %p225, %s224, 127
      %s227 = smul.addr %s226, 8
      %s228 = scalar_lea.vmem %s2, %s227
      %s229 = sadd.s32 %s21, %s22
      %s230 = smul.u32 64, %s229
      %s231 = sadd.s32 %s21, %s22
      %s232 = smul.u32 64, %s231
      %p233 = scmp.lt.s32.totalorder %s232, 127
      %s234 = scalar_select %p233, %s232, 127
      %s235 = smul.addr %s234, 4
      %s236 = scalar_lea.vmem %s3, %s235
      %s237 = sadd.s32 %s21, %s22
      %s238 = smul.u32 64, %s237
      %p239 = scmp.lt.s32.totalorder %s21, 1
      %s240 = scalar_select %p239, %s21, 1
      %s241 = smul.addr %s240, 8
      %s242 = scalar_lea.vmem %s4, %s241
      %p243 = scmp.lt.s32.totalorder %s21, 1
      %s244 = scalar_select %p243, %s21, 1
      %s245 = smul.addr %s244, 8
      %s246 = scalar_lea.vmem %s5, %s245
      %s248 = sadd.s32 %s21, %s22
      %p249 = scmp.eq.s32.totalorder %s22, 0
      // Predicated region
      $region29: #{basic_conv2d.1} parent=27 // pred_check
        %p250 = pneg %p249
      $region30: #{basic_conv2d.1} parent=27 // pred_check_branch
        %252 = sbr.rel (%p250) target = $region32
      $region31: #{basic_conv2d.1} parent=27 // pred_region
        %253 = vst [vmem:[%s242] sm:$0xff] 0.0
        %254 = vst [vmem:[%s246] sm:$0xff] 0.0
        %s255 = smul.u32 %s248, 512
        %s256 = sshra.s32 %s255, 3
        %s257 = sand.u32 %s255, 7
        %s258 = smul.addr %s256, 4
        %s259 = scalar_lea.vmem %s0, %s258
        %p261 = scmp.lt.u32.totalorder 280, 8
        %p262 = pneg %p261
        // Predicated region
        $region33: #{basic_conv2d.1} parent=31 // pred_check
          _
        $region34: #{basic_conv2d.1} parent=31 // pred_check_branch
          %264 = sbr.rel (%p261) target = $region36
        $region35: #{basic_conv2d.1} parent=31 // pred_region
          %s279 = sand.u32 280, 7
          %p280 = scmp.eq.s32.totalorder %s279, 0
          // Predicated region
          $region48: #{basic_conv2d.1} parent=35 // pred_check
            %p281 = pneg %p280
          $region49: #{basic_conv2d.1} parent=35 // pred_check_branch
            %283 = sbr.rel (%p281) target = $region51
          $region50: #{basic_conv2d.1} parent=35 // pred_region
            loop: start=0, step=1, limit=1
            $region52: #{basic_conv2d.1} parent=50 // loop_pre_header
              _
            $region53: #{basic_conv2d.1} parent=50 // loop_header
              %s285 = sphi 0, %s289
              %p286 = scmp.ge.s32.totalorder %s285, 1
              %s290 = sphi %s259, %s259
              %s291 = sphi [#allocation2], [#allocation2]
            $region54: #{basic_conv2d.1} parent=50 // loop_header_branch
              %288 = sbr.rel (%p286) target = $region58
            $region55: #{basic_conv2d.1} parent=50 // loop_body
              %v292 = vld [vmem:[%s290] sm:$0xff]
              %293 = vst [vmem:[%s291] sm:$0xff] %v292
              %v294 = vld [vmem:[%s290 + $0x8] sm:$0xff]
              %295 = vst [vmem:[%s291 + $0x8] sm:$0xff] %v294
              %v296 = vld [vmem:[%s290 + $0x10] sm:$0xff]
              %297 = vst [vmem:[%s291 + $0x10] sm:$0xff] %v296
              %v298 = vld [vmem:[%s290 + $0x18] sm:$0xff]
              %299 = vst [vmem:[%s291 + $0x18] sm:$0xff] %v298
              %v300 = vld [vmem:[%s290 + $0x20] sm:$0xff]
              %301 = vst [vmem:[%s291 + $0x20] sm:$0xff] %v300
              %v302 = vld [vmem:[%s290 + $0x28] sm:$0xff]
              %303 = vst [vmem:[%s291 + $0x28] sm:$0xff] %v302
              %v304 = vld [vmem:[%s290 + $0x30] sm:$0xff]
              %305 = vst [vmem:[%s291 + $0x30] sm:$0xff] %v304
              %v306 = vld [vmem:[%s290 + $0x38] sm:$0xff]
              %307 = vst [vmem:[%s291 + $0x38] sm:$0xff] %v306
              %v308 = vld [vmem:[%s290 + $0x40] sm:$0xff]
              %309 = vst [vmem:[%s291 + $0x40] sm:$0xff] %v308
              %v310 = vld [vmem:[%s290 + $0x48] sm:$0xff]
              %311 = vst [vmem:[%s291 + $0x48] sm:$0xff] %v310
              %v312 = vld [vmem:[%s290 + $0x50] sm:$0xff]
              %313 = vst [vmem:[%s291 + $0x50] sm:$0xff] %v312
              %v314 = vld [vmem:[%s290 + $0x58] sm:$0xff]
              %315 = vst [vmem:[%s291 + $0x58] sm:$0xff] %v314
              %v316 = vld [vmem:[%s290 + $0x60] sm:$0xff]
              %317 = vst [vmem:[%s291 + $0x60] sm:$0xff] %v316
              %v318 = vld [vmem:[%s290 + $0x68] sm:$0xff]
              %319 = vst [vmem:[%s291 + $0x68] sm:$0xff] %v318
              %v320 = vld [vmem:[%s290 + $0x70] sm:$0xff]
              %321 = vst [vmem:[%s291 + $0x70] sm:$0xff] %v320
              %v322 = vld [vmem:[%s290 + $0x78] sm:$0xff]
              %323 = vst [vmem:[%s291 + $0x78] sm:$0xff] %v322
              %v324 = vld [vmem:[%s290 + $0x80] sm:$0xff]
              %325 = vst [vmem:[%s291 + $0x80] sm:$0xff] %v324
              %v326 = vld [vmem:[%s290 + $0x88] sm:$0xff]
              %327 = vst [vmem:[%s291 + $0x88] sm:$0xff] %v326
              %v328 = vld [vmem:[%s290 + $0x90] sm:$0xff]
              %329 = vst [vmem:[%s291 + $0x90] sm:$0xff] %v328
              %v330 = vld [vmem:[%s290 + $0x98] sm:$0xff]
              %331 = vst [vmem:[%s291 + $0x98] sm:$0xff] %v330
              %v332 = vld [vmem:[%s290 + $0xa0] sm:$0xff]
              %333 = vst [vmem:[%s291 + $0xa0] sm:$0xff] %v332
              %v334 = vld [vmem:[%s290 + $0xa8] sm:$0xff]
              %335 = vst [vmem:[%s291 + $0xa8] sm:$0xff] %v334
              %v336 = vld [vmem:[%s290 + $0xb0] sm:$0xff]
              %337 = vst [vmem:[%s291 + $0xb0] sm:$0xff] %v336
              %v338 = vld [vmem:[%s290 + $0xb8] sm:$0xff]
              %339 = vst [vmem:[%s291 + $0xb8] sm:$0xff] %v338
              %v340 = vld [vmem:[%s290 + $0xc0] sm:$0xff]
              %341 = vst [vmem:[%s291 + $0xc0] sm:$0xff] %v340
              %v342 = vld [vmem:[%s290 + $0xc8] sm:$0xff]
              %343 = vst [vmem:[%s291 + $0xc8] sm:$0xff] %v342
              %v344 = vld [vmem:[%s290 + $0xd0] sm:$0xff]
              %345 = vst [vmem:[%s291 + $0xd0] sm:$0xff] %v344
              %v346 = vld [vmem:[%s290 + $0xd8] sm:$0xff]
              %347 = vst [vmem:[%s291 + $0xd8] sm:$0xff] %v346
              %v348 = vld [vmem:[%s290 + $0xe0] sm:$0xff]
              %349 = vst [vmem:[%s291 + $0xe0] sm:$0xff] %v348
              %v350 = vld [vmem:[%s290 + $0xe8] sm:$0xff]
              %351 = vst [vmem:[%s291 + $0xe8] sm:$0xff] %v350
              %v352 = vld [vmem:[%s290 + $0xf0] sm:$0xff]
              %353 = vst [vmem:[%s291 + $0xf0] sm:$0xff] %v352
              %v354 = vld [vmem:[%s290 + $0xf8] sm:$0xff]
              %355 = vst [vmem:[%s291 + $0xf8] sm:$0xff] %v354
              %v356 = vld [vmem:[%s290 + $0x100] sm:$0xff]
              %357 = vst [vmem:[%s291 + $0x100] sm:$0xff] %v356
              %v358 = vld [vmem:[%s290 + $0x108] sm:$0xff]
              %359 = vst [vmem:[%s291 + $0x108] sm:$0xff] %v358
              %v360 = vld [vmem:[%s290 + $0x110] sm:$0xff]
              %361 = vst [vmem:[%s291 + $0x110] sm:$0xff] %v360
            $region56: #{basic_conv2d.1} parent=50 // loop_footer
              %s289 = sadd.s32 1, %s285
            $region57: #{basic_conv2d.1} parent=50 // loop_footer_branch
              %284 = sbr.rel target = $region53
            $region58: #{basic_conv2d.1} parent=50 // loop_exit
              _
          $region51: #{basic_conv2d.1} parent=35 // pred_fallthru
            _
          %p362 = pneg %p280
          // Predicated region
          $region59: #{basic_conv2d.1} parent=35 // pred_check
            _
          $region60: #{basic_conv2d.1} parent=35 // pred_check_branch
            %364 = sbr.rel (%p280) target = $region62
          $region61: #{basic_conv2d.1} parent=35 // pred_region
            %s365 = sand.u32 280, 7
          $region62: #{basic_conv2d.1} parent=35 // pred_fallthru
            _
        $region36: #{basic_conv2d.1} parent=31 // pred_fallthru
          _
        // Predicated region
        $region37: #{basic_conv2d.1} parent=31 // pred_check
          %p265 = pneg %p261
        $region38: #{basic_conv2d.1} parent=31 // pred_check_branch
          %267 = sbr.rel (%p265) target = $region40
        $region39: #{basic_conv2d.1} parent=31 // pred_region
          %s268 = sshllo.u32 0, 280
          loop: start=0, step=1, limit=1
          $region41: #{basic_conv2d.1} parent=39 // loop_pre_header
            _
          $region42: #{basic_conv2d.1} parent=39 // loop_header
            %s270 = sphi 0, %s274
            %p271 = scmp.ge.s32.totalorder %s270, 1
            %s275 = sphi %s259, %s259
            %s276 = sphi [#allocation2], [#allocation2]
          $region43: #{basic_conv2d.1} parent=39 // loop_header_branch
            %273 = sbr.rel (%p271) target = $region47
          $region44: #{basic_conv2d.1} parent=39 // loop_body
            %v277 = vld [vmem:[%s275] sm:%s268]
            %278 = vst [vmem:[%s276] sm:%s268] %v277
          $region45: #{basic_conv2d.1} parent=39 // loop_footer
            %s274 = sadd.s32 1, %s270
          $region46: #{basic_conv2d.1} parent=39 // loop_footer_branch
            %269 = sbr.rel target = $region42
          $region47: #{basic_conv2d.1} parent=39 // loop_exit
            _
        $region40: #{basic_conv2d.1} parent=31 // pred_fallthru
          _
        // Predicated region
        $region63: #{basic_conv2d.1} parent=31 // pred_check
          _
        $region64: #{basic_conv2d.1} parent=31 // pred_check_branch
          %368 = sbr.rel (0) target = $region66
        $region65: #{basic_conv2d.1} parent=31 // pred_region
          %369 = vsyncadd [#allocation3], 4480
        $region66: #{basic_conv2d.1} parent=31 // pred_fallthru
          _
      $region32: #{basic_conv2d.1} parent=27 // pred_fallthru
        _
      %s370 = sadd.s32 %s22, 1
      %p371 = scmp.lt.s32.totalorder %s370, 1
      // Predicated region
      $region67: #{basic_conv2d.1} parent=27 // pred_check
        %p372 = pneg %p371
      $region68: #{basic_conv2d.1} parent=27 // pred_check_branch
        %374 = sbr.rel (%p372) target = $region70
      $region69: #{basic_conv2d.1} parent=27 // pred_region
        %s375 = sadd.s32 %s248, 1
        %s376 = sand.u32 %s370, 1
        %s377 = smul.u32 %s375, 512
        %s378 = sshra.s32 %s377, 3
        %s379 = sand.u32 %s377, 7
        %s380 = smul.addr %s378, 4
        %s381 = scalar_lea.vmem %s0, %s380
        %s382 = smul.u32 %s376, 35
        %s383 = smul.addr %s382, 8
        %s384 = scalar_lea.vmem [#allocation2], %s383
        %s385 = scalar_lea.sflag [#allocation3], %s376
        %p387 = scmp.lt.u32.totalorder 280, 8
        %p388 = pneg %p387
        // Predicated region
        $region71: #{basic_conv2d.1} parent=69 // pred_check
          _
        $region72: #{basic_conv2d.1} parent=69 // pred_check_branch
          %390 = sbr.rel (%p387) target = $region74
        $region73: #{basic_conv2d.1} parent=69 // pred_region
          %s405 = sand.u32 280, 7
          %p406 = scmp.eq.s32.totalorder %s405, 0
          // Predicated region
          $region86: #{basic_conv2d.1} parent=73 // pred_check
            %p407 = pneg %p406
          $region87: #{basic_conv2d.1} parent=73 // pred_check_branch
            %409 = sbr.rel (%p407) target = $region89
          $region88: #{basic_conv2d.1} parent=73 // pred_region
            loop: start=0, step=1, limit=1
            $region90: #{basic_conv2d.1} parent=88 // loop_pre_header
              _
            $region91: #{basic_conv2d.1} parent=88 // loop_header
              %s411 = sphi 0, %s415
              %p412 = scmp.ge.s32.totalorder %s411, 1
              %s416 = sphi %s381, %s381
              %s417 = sphi %s384, %s384
            $region92: #{basic_conv2d.1} parent=88 // loop_header_branch
              %414 = sbr.rel (%p412) target = $region96
            $region93: #{basic_conv2d.1} parent=88 // loop_body
              %v418 = vld [vmem:[%s416] sm:$0xff]
              %419 = vst [vmem:[%s417] sm:$0xff] %v418
              %v420 = vld [vmem:[%s416 + $0x8] sm:$0xff]
              %421 = vst [vmem:[%s417 + $0x8] sm:$0xff] %v420
              %v422 = vld [vmem:[%s416 + $0x10] sm:$0xff]
              %423 = vst [vmem:[%s417 + $0x10] sm:$0xff] %v422
              %v424 = vld [vmem:[%s416 + $0x18] sm:$0xff]
              %425 = vst [vmem:[%s417 + $0x18] sm:$0xff] %v424
              %v426 = vld [vmem:[%s416 + $0x20] sm:$0xff]
              %427 = vst [vmem:[%s417 + $0x20] sm:$0xff] %v426
              %v428 = vld [vmem:[%s416 + $0x28] sm:$0xff]
              %429 = vst [vmem:[%s417 + $0x28] sm:$0xff] %v428
              %v430 = vld [vmem:[%s416 + $0x30] sm:$0xff]
              %431 = vst [vmem:[%s417 + $0x30] sm:$0xff] %v430
              %v432 = vld [vmem:[%s416 + $0x38] sm:$0xff]
              %433 = vst [vmem:[%s417 + $0x38] sm:$0xff] %v432
              %v434 = vld [vmem:[%s416 + $0x40] sm:$0xff]
              %435 = vst [vmem:[%s417 + $0x40] sm:$0xff] %v434
              %v436 = vld [vmem:[%s416 + $0x48] sm:$0xff]
              %437 = vst [vmem:[%s417 + $0x48] sm:$0xff] %v436
              %v438 = vld [vmem:[%s416 + $0x50] sm:$0xff]
              %439 = vst [vmem:[%s417 + $0x50] sm:$0xff] %v438
              %v440 = vld [vmem:[%s416 + $0x58] sm:$0xff]
              %441 = vst [vmem:[%s417 + $0x58] sm:$0xff] %v440
              %v442 = vld [vmem:[%s416 + $0x60] sm:$0xff]
              %443 = vst [vmem:[%s417 + $0x60] sm:$0xff] %v442
              %v444 = vld [vmem:[%s416 + $0x68] sm:$0xff]
              %445 = vst [vmem:[%s417 + $0x68] sm:$0xff] %v444
              %v446 = vld [vmem:[%s416 + $0x70] sm:$0xff]
              %447 = vst [vmem:[%s417 + $0x70] sm:$0xff] %v446
              %v448 = vld [vmem:[%s416 + $0x78] sm:$0xff]
              %449 = vst [vmem:[%s417 + $0x78] sm:$0xff] %v448
              %v450 = vld [vmem:[%s416 + $0x80] sm:$0xff]
              %451 = vst [vmem:[%s417 + $0x80] sm:$0xff] %v450
              %v452 = vld [vmem:[%s416 + $0x88] sm:$0xff]
              %453 = vst [vmem:[%s417 + $0x88] sm:$0xff] %v452
              %v454 = vld [vmem:[%s416 + $0x90] sm:$0xff]
              %455 = vst [vmem:[%s417 + $0x90] sm:$0xff] %v454
              %v456 = vld [vmem:[%s416 + $0x98] sm:$0xff]
              %457 = vst [vmem:[%s417 + $0x98] sm:$0xff] %v456
              %v458 = vld [vmem:[%s416 + $0xa0] sm:$0xff]
              %459 = vst [vmem:[%s417 + $0xa0] sm:$0xff] %v458
              %v460 = vld [vmem:[%s416 + $0xa8] sm:$0xff]
              %461 = vst [vmem:[%s417 + $0xa8] sm:$0xff] %v460
              %v462 = vld [vmem:[%s416 + $0xb0] sm:$0xff]
              %463 = vst [vmem:[%s417 + $0xb0] sm:$0xff] %v462
              %v464 = vld [vmem:[%s416 + $0xb8] sm:$0xff]
              %465 = vst [vmem:[%s417 + $0xb8] sm:$0xff] %v464
              %v466 = vld [vmem:[%s416 + $0xc0] sm:$0xff]
              %467 = vst [vmem:[%s417 + $0xc0] sm:$0xff] %v466
              %v468 = vld [vmem:[%s416 + $0xc8] sm:$0xff]
              %469 = vst [vmem:[%s417 + $0xc8] sm:$0xff] %v468
              %v470 = vld [vmem:[%s416 + $0xd0] sm:$0xff]
              %471 = vst [vmem:[%s417 + $0xd0] sm:$0xff] %v470
              %v472 = vld [vmem:[%s416 + $0xd8] sm:$0xff]
              %473 = vst [vmem:[%s417 + $0xd8] sm:$0xff] %v472
              %v474 = vld [vmem:[%s416 + $0xe0] sm:$0xff]
              %475 = vst [vmem:[%s417 + $0xe0] sm:$0xff] %v474
              %v476 = vld [vmem:[%s416 + $0xe8] sm:$0xff]
              %477 = vst [vmem:[%s417 + $0xe8] sm:$0xff] %v476
              %v478 = vld [vmem:[%s416 + $0xf0] sm:$0xff]
              %479 = vst [vmem:[%s417 + $0xf0] sm:$0xff] %v478
              %v480 = vld [vmem:[%s416 + $0xf8] sm:$0xff]
              %481 = vst [vmem:[%s417 + $0xf8] sm:$0xff] %v480
              %v482 = vld [vmem:[%s416 + $0x100] sm:$0xff]
              %483 = vst [vmem:[%s417 + $0x100] sm:$0xff] %v482
              %v484 = vld [vmem:[%s416 + $0x108] sm:$0xff]
              %485 = vst [vmem:[%s417 + $0x108] sm:$0xff] %v484
              %v486 = vld [vmem:[%s416 + $0x110] sm:$0xff]
              %487 = vst [vmem:[%s417 + $0x110] sm:$0xff] %v486
            $region94: #{basic_conv2d.1} parent=88 // loop_footer
              %s415 = sadd.s32 1, %s411
            $region95: #{basic_conv2d.1} parent=88 // loop_footer_branch
              %410 = sbr.rel target = $region91
            $region96: #{basic_conv2d.1} parent=88 // loop_exit
              _
          $region89: #{basic_conv2d.1} parent=73 // pred_fallthru
            _
          %p488 = pneg %p406
          // Predicated region
          $region97: #{basic_conv2d.1} parent=73 // pred_check
            _
          $region98: #{basic_conv2d.1} parent=73 // pred_check_branch
            %490 = sbr.rel (%p406) target = $region100
          $region99: #{basic_conv2d.1} parent=73 // pred_region
            %s491 = sand.u32 280, 7
          $region100: #{basic_conv2d.1} parent=73 // pred_fallthru
            _
        $region74: #{basic_conv2d.1} parent=69 // pred_fallthru
          _
        // Predicated region
        $region75: #{basic_conv2d.1} parent=69 // pred_check
          %p391 = pneg %p387
        $region76: #{basic_conv2d.1} parent=69 // pred_check_branch
          %393 = sbr.rel (%p391) target = $region78
        $region77: #{basic_conv2d.1} parent=69 // pred_region
          %s394 = sshllo.u32 0, 280
          loop: start=0, step=1, limit=1
          $region79: #{basic_conv2d.1} parent=77 // loop_pre_header
            _
          $region80: #{basic_conv2d.1} parent=77 // loop_header
            %s396 = sphi 0, %s400
            %p397 = scmp.ge.s32.totalorder %s396, 1
            %s401 = sphi %s381, %s381
            %s402 = sphi %s384, %s384
          $region81: #{basic_conv2d.1} parent=77 // loop_header_branch
            %399 = sbr.rel (%p397) target = $region85
          $region82: #{basic_conv2d.1} parent=77 // loop_body
            %v403 = vld [vmem:[%s401] sm:%s394]
            %404 = vst [vmem:[%s402] sm:%s394] %v403
          $region83: #{basic_conv2d.1} parent=77 // loop_footer
            %s400 = sadd.s32 1, %s396
          $region84: #{basic_conv2d.1} parent=77 // loop_footer_branch
            %395 = sbr.rel target = $region80
          $region85: #{basic_conv2d.1} parent=77 // loop_exit
            _
        $region78: #{basic_conv2d.1} parent=69 // pred_fallthru
          _
        // Predicated region
        $region101: #{basic_conv2d.1} parent=69 // pred_check
          _
        $region102: #{basic_conv2d.1} parent=69 // pred_check_branch
          %494 = sbr.rel (0) target = $region104
        $region103: #{basic_conv2d.1} parent=69 // pred_region
          %495 = vsyncadd %s385, 4480
        $region104: #{basic_conv2d.1} parent=69 // pred_fallthru
          _
      $region70: #{basic_conv2d.1} parent=27 // pred_fallthru
        _
      %s496 = sand.u32 %s22, 1
      %s497 = smul.u32 %s248, 512
      %s498 = smul.u32 %s496, 35
      %s499 = smul.addr %s498, 8
      %s500 = scalar_lea.vmem [#allocation2], %s499
      %s501 = scalar_lea.sflag [#allocation3], %s496
      %s502 = smul.u32 4, 70
      %s503 = smul.u32 %s502, 1
      %s504 = sshll.u32 %s503, 4
      %505 = dma.done %s501, %s504
      %v506 = vld [vmem:[%s500] sm:$0xff]
      %v507 = vld [vmem:[%s500 + $0x8] sm:$0xff]
      %v508 = vld [vmem:[%s500 + $0x10] sm:$0xff]
      %v509 = vld [vmem:[%s500 + $0x18] sm:$0xff]
      %v510 = vld [vmem:[%s500 + $0x20] sm:$0xff]
      %v511 = vld [vmem:[%s500 + $0x28] sm:$0xff]
      %v512 = vld [vmem:[%s500 + $0x30] sm:$0xff]
      %v513 = vld [vmem:[%s500 + $0x38] sm:$0xff]
      %v514 = vld [vmem:[%s500 + $0x40] sm:$0xff]
      %v515 = vld [vmem:[%s500 + $0x48] sm:$0xff]
      %v516 = vld [vmem:[%s500 + $0x50] sm:$0xff]
      %v517 = vld [vmem:[%s500 + $0x58] sm:$0xff]
      %v518 = vld [vmem:[%s500 + $0x60] sm:$0xff]
      %v519 = vld [vmem:[%s500 + $0x68] sm:$0xff]
      %v520 = vld [vmem:[%s500 + $0x70] sm:$0xff]
      %v521 = vld [vmem:[%s500 + $0x78] sm:$0xff]
      %v522 = vld [vmem:[%s500 + $0x80] sm:$0xff]
      %v523 = vld [vmem:[%s500 + $0x88] sm:$0xff]
      %v524 = vld [vmem:[%s500 + $0x90] sm:$0xff]
      %v525 = vld [vmem:[%s500 + $0x98] sm:$0xff]
      %v526 = vld [vmem:[%s500 + $0xa0] sm:$0xff]
      %v527 = vld [vmem:[%s500 + $0xa8] sm:$0xff]
      %v528 = vld [vmem:[%s500 + $0xb0] sm:$0xff]
      %v529 = vld [vmem:[%s500 + $0xb8] sm:$0xff]
      %v530 = vld [vmem:[%s500 + $0xc0] sm:$0xff]
      %v531 = vld [vmem:[%s500 + $0xc8] sm:$0xff]
      %v532 = vld [vmem:[%s500 + $0xd0] sm:$0xff]
      %v533 = vld [vmem:[%s500 + $0xd8] sm:$0xff]
      %v534 = vld [vmem:[%s500 + $0xe0] sm:$0xff]
      %v535 = vld [vmem:[%s500 + $0xe8] sm:$0xff]
      %v536 = vld [vmem:[%s500 + $0xf0] sm:$0xff]
      %v537 = vld [vmem:[%s500 + $0xf8] sm:$0xff]
      %v538 = vld [vmem:[%s1] sm:$0xf]
      %v539 = vld [vmem:[%s1 + $0x4] sm:$0xf]
      %v540 = vld [vmem:[%s1 + $0x8] sm:$0xf]
      %v541 = vld [vmem:[%s1 + $0xc] sm:$0xf]
      %v542 = vld [vmem:[%s1 + $0x10] sm:$0xf]
      %v543 = vld [vmem:[%s1 + $0x14] sm:$0xf]
      %v544 = vld [vmem:[%s1 + $0x18] sm:$0xf]
      %v545 = vld [vmem:[%s1 + $0x1c] sm:$0xf]
      %v546 = vld [vmem:[%s1 + $0x20] sm:$0xf]
      %v547 = vld [vmem:[%s1 + $0x24] sm:$0xf]
      %v548 = vld [vmem:[%s1 + $0x28] sm:$0xf]
      %v549 = vld [vmem:[%s1 + $0x2c] sm:$0xf]
      %v550 = vld [vmem:[%s1 + $0x30] sm:$0xf]
      %v551 = vld [vmem:[%s1 + $0x34] sm:$0xf]
      %v552 = vld [vmem:[%s1 + $0x38] sm:$0xf]
      %v553 = vld [vmem:[%s1 + $0x3c] sm:$0xf]
      %v554 = vld [vmem:[%s500 + $0x100] sm:$0x1]
      %s555 = scalar_lea.vmem %s1, 64
      %v556 = vld [vmem:[%s555] sm:$0xf]
      %v557 = vld [vmem:[%s555 + $0x4] sm:$0xf]
      %v558 = vld [vmem:[%s555 + $0x8] sm:$0xf]
      %v559 = vld [vmem:[%s555 + $0xc] sm:$0xf]
      %v560 = vld [vmem:[%s555 + $0x10] sm:$0xf]
      %v561 = vld [vmem:[%s555 + $0x14] sm:$0xf]
      %v562 = vld [vmem:[%s555 + $0x18] sm:$0xf]
      %v563 = vld [vmem:[%s555 + $0x1c] sm:$0xf]
      %v564 = vld [vmem:[%s555 + $0x20] sm:$0xf]
      %v565 = vld [vmem:[%s555 + $0x24] sm:$0xf]
      %v566 = vld [vmem:[%s555 + $0x28] sm:$0xf]
      %v567 = vld [vmem:[%s555 + $0x2c] sm:$0xf]
      %v568 = vld [vmem:[%s555 + $0x30] sm:$0xf]
      %v569 = vld [vmem:[%s555 + $0x34] sm:$0xf]
      %v570 = vld [vmem:[%s555 + $0x38] sm:$0xf]
      %v571 = vld [vmem:[%s555 + $0x3c] sm:$0xf]
      %vm572 = vsmask.f32 7424
      %v574 = vshrl.u32 %v506, 16
      %v576 = vshll.u32 %v506, 16
      %v578 = vrot.slane %v576, 1
      %v579 = vor.u32 %v574, %v578
      %v581 = vshll.u32 %v507, 16
      %v583 = vrot.slane %v581, 1
      %v584 = vsel %vm572, %v579, %v583
      %v585 = vshrl.u32 %v507, 16
      %v587 = vor.u32 %v585, %v583
      %v589 = vshll.u32 %v508, 16
      %v591 = vrot.slane %v589, 1
      %v592 = vsel %vm572, %v587, %v591
      %v593 = vshrl.u32 %v508, 16
      %v595 = vor.u32 %v593, %v591
      %v597 = vshll.u32 %v509, 16
      %v599 = vrot.slane %v597, 1
      %v600 = vsel %vm572, %v595, %v599
      %v601 = vshrl.u32 %v509, 16
      %v603 = vor.u32 %v601, %v599
      %v605 = vshll.u32 %v510, 16
      %v607 = vrot.slane %v605, 1
      %v608 = vsel %vm572, %v603, %v607
      %v609 = vshrl.u32 %v510, 16
      %v611 = vor.u32 %v609, %v607
      %v613 = vshll.u32 %v511, 16
      %v615 = vrot.slane %v613, 1
      %v616 = vsel %vm572, %v611, %v615
      %v617 = vshrl.u32 %v511, 16
      %v619 = vor.u32 %v617, %v615
      %v621 = vshll.u32 %v512, 16
      %v623 = vrot.slane %v621, 1
      %v624 = vsel %vm572, %v619, %v623
      %v625 = vshrl.u32 %v512, 16
      %v627 = vor.u32 %v625, %v623
      %v629 = vshll.u32 %v513, 16
      %v631 = vrot.slane %v629, 1
      %v632 = vsel %vm572, %v627, %v631
      %v633 = vshrl.u32 %v513, 16
      %v635 = vor.u32 %v633, %v631
      %v637 = vshll.u32 %v514, 16
      %v639 = vrot.slane %v637, 1
      %v640 = vsel %vm572, %v635, %v639
      %v641 = vshrl.u32 %v514, 16
      %v643 = vor.u32 %v641, %v639
      %v645 = vshll.u32 %v515, 16
      %v647 = vrot.slane %v645, 1
      %v648 = vsel %vm572, %v643, %v647
      %v649 = vshrl.u32 %v515, 16
      %v651 = vor.u32 %v649, %v647
      %v653 = vshll.u32 %v516, 16
      %v655 = vrot.slane %v653, 1
      %v656 = vsel %vm572, %v651, %v655
      %v657 = vshrl.u32 %v516, 16
      %v659 = vor.u32 %v657, %v655
      %v661 = vshll.u32 %v517, 16
      %v663 = vrot.slane %v661, 1
      %v664 = vsel %vm572, %v659, %v663
      %v665 = vshrl.u32 %v517, 16
      %v667 = vor.u32 %v665, %v663
      %v669 = vshll.u32 %v518, 16
      %v671 = vrot.slane %v669, 1
      %v672 = vsel %vm572, %v667, %v671
      %v673 = vshrl.u32 %v518, 16
      %v675 = vor.u32 %v673, %v671
      %v677 = vshll.u32 %v519, 16
      %v679 = vrot.slane %v677, 1
      %v680 = vsel %vm572, %v675, %v679
      %v681 = vshrl.u32 %v519, 16
      %v683 = vor.u32 %v681, %v679
      %v685 = vshll.u32 %v520, 16
      %v687 = vrot.slane %v685, 1
      %v688 = vsel %vm572, %v683, %v687
      %v689 = vshrl.u32 %v520, 16
      %v691 = vor.u32 %v689, %v687
      %v693 = vshll.u32 %v521, 16
      %v695 = vrot.slane %v693, 1
      %v696 = vsel %vm572, %v691, %v695
      %v697 = vshrl.u32 %v521, 16
      %v699 = vor.u32 %v697, %v695
      %v701 = vshll.u32 %v522, 16
      %v703 = vrot.slane %v701, 1
      %v704 = vsel %vm572, %v699, %v703
      %v705 = vshrl.u32 %v522, 16
      %v707 = vor.u32 %v705, %v703
      %v709 = vshll.u32 %v523, 16
      %v711 = vrot.slane %v709, 1
      %v712 = vsel %vm572, %v707, %v711
      %v713 = vshrl.u32 %v523, 16
      %v715 = vor.u32 %v713, %v711
      %v717 = vshll.u32 %v524, 16
      %v719 = vrot.slane %v717, 1
      %v720 = vsel %vm572, %v715, %v719
      %v721 = vshrl.u32 %v524, 16
      %v723 = vor.u32 %v721, %v719
      %v725 = vshll.u32 %v525, 16
      %v727 = vrot.slane %v725, 1
      %v728 = vsel %vm572, %v723, %v727
      %v729 = vshrl.u32 %v525, 16
      %v731 = vor.u32 %v729, %v727
      %v733 = vshll.u32 %v526, 16
      %v735 = vrot.slane %v733, 1
      %v736 = vsel %vm572, %v731, %v735
      %v737 = vshrl.u32 %v526, 16
      %v739 = vor.u32 %v737, %v735
      %v741 = vshll.u32 %v527, 16
      %v743 = vrot.slane %v741, 1
      %v744 = vsel %vm572, %v739, %v743
      %v745 = vshrl.u32 %v527, 16
      %v747 = vor.u32 %v745, %v743
      %v749 = vshll.u32 %v528, 16
      %v751 = vrot.slane %v749, 1
      %v752 = vsel %vm572, %v747, %v751
      %v753 = vshrl.u32 %v528, 16
      %v755 = vor.u32 %v753, %v751
      %v757 = vshll.u32 %v529, 16
      %v759 = vrot.slane %v757, 1
      %v760 = vsel %vm572, %v755, %v759
      %v761 = vshrl.u32 %v529, 16
      %v763 = vor.u32 %v761, %v759
      %v765 = vshll.u32 %v530, 16
      %v767 = vrot.slane %v765, 1
      %v768 = vsel %vm572, %v763, %v767
      %v769 = vshrl.u32 %v530, 16
      %v771 = vor.u32 %v769, %v767
      %v773 = vshll.u32 %v531, 16
      %v775 = vrot.slane %v773, 1
      %v776 = vsel %vm572, %v771, %v775
      %v777 = vshrl.u32 %v531, 16
      %v779 = vor.u32 %v777, %v775
      %v781 = vshll.u32 %v532, 16
      %v783 = vrot.slane %v781, 1
      %v784 = vsel %vm572, %v779, %v783
      %v785 = vshrl.u32 %v532, 16
      %v787 = vor.u32 %v785, %v783
      %v789 = vshll.u32 %v533, 16
      %v791 = vrot.slane %v789, 1
      %v792 = vsel %vm572, %v787, %v791
      %v793 = vshrl.u32 %v533, 16
      %v795 = vor.u32 %v793, %v791
      %v797 = vshll.u32 %v534, 16
      %v799 = vrot.slane %v797, 1
      %v800 = vsel %vm572, %v795, %v799
      %v801 = vshrl.u32 %v534, 16
      %v803 = vor.u32 %v801, %v799
      %v805 = vshll.u32 %v535, 16
      %v807 = vrot.slane %v805, 1
      %v808 = vsel %vm572, %v803, %v807
      %v809 = vshrl.u32 %v535, 16
      %v811 = vor.u32 %v809, %v807
      %v813 = vshll.u32 %v536, 16
      %v815 = vrot.slane %v813, 1
      %v816 = vsel %vm572, %v811, %v815
      %v817 = vshrl.u32 %v536, 16
      %v819 = vor.u32 %v817, %v815
      %v821 = vshll.u32 %v537, 16
      %v823 = vrot.slane %v821, 1
      %v824 = vsel %vm572, %v819, %v823
      %v825 = vshrl.u32 %v537, 16
      %v827 = vor.u32 %v825, %v823
      %v829 = vshll.u32 %v554, 16
      %v831 = vrot.slane %v829, 1
      %v832 = vsel %vm572, %v827, %v831
      %v881 = vunpack.c.l.b16 %v556
      %v882 = vunpack.c.l.b16 %v557
      %v883 = vunpack.c.l.b16 %v558
      %v884 = vunpack.c.l.b16 %v559
      %v885 = vunpack.c.l.b16 %v560
      %v886 = vunpack.c.l.b16 %v561
      %v887 = vunpack.c.l.b16 %v562
      %v888 = vunpack.c.l.b16 %v563
      %v889 = vunpack.c.l.b16 %v564
      %v890 = vunpack.c.l.b16 %v565
      %v891 = vunpack.c.l.b16 %v566
      %v892 = vunpack.c.l.b16 %v567
      %v893 = vunpack.c.l.b16 %v568
      %v894 = vunpack.c.l.b16 %v569
      %v895 = vunpack.c.l.b16 %v570
      %v896 = vunpack.c.l.b16 %v571
      %v897 = vpack.c.b16 %v882, %v881
      %v898 = vpack.c.b16 %v884, %v883
      %v899 = vpack.c.b16 %v886, %v885
      %v900 = vpack.c.b16 %v888, %v887
      %v901 = vpack.c.b16 %v890, %v889
      %v902 = vpack.c.b16 %v892, %v891
      %v903 = vpack.c.b16 %v894, %v893
      %v904 = vpack.c.b16 %v896, %v895
      %913 = vmatprep.subr.bf16.mxu0 0
      %914 = vmatpush1.bf16.msra.mxu0 %v897
      %915 = vmatprep.subr.bf16.mxu0 0
      %916 = vmatpush1.bf16.msra.mxu0 %v898
      %917 = vmatprep.subr.bf16.mxu0 0
      %918 = vmatpush1.bf16.msra.mxu0 %v899
      %919 = vmatprep.subr.bf16.mxu0 0
      %920 = vmatpush1.bf16.msra.mxu0 %v900
      %921 = vmatprep.subr.bf16.mxu0 0
      %922 = vmatpush1.bf16.msra.mxu0 %v901
      %923 = vmatprep.subr.bf16.mxu0 0
      %924 = vmatpush1.bf16.msra.mxu0 %v902
      %925 = vmatprep.subr.bf16.mxu0 0
      %926 = vmatpush1.bf16.msra.mxu0 %v903
      %927 = vmatprep.subr.bf16.mxu0 0
      %928 = vmatpush1.bf16.msra.mxu0 %v904
      %929 = vmatprep.subr.bf16.mxu0 0
      %930 = vmatpush1.bf16.msra.mxu0 0
      %931 = vmatprep.subr.bf16.mxu0 0
      %932 = vmatpush1.bf16.msra.mxu0 0
      %933 = vmatprep.subr.bf16.mxu0 0
      %934 = vmatpush1.bf16.msra.mxu0 0
      %935 = vmatprep.subr.bf16.mxu0 0
      %936 = vmatpush1.bf16.msra.mxu0 0
      %937 = vmatprep.subr.bf16.mxu0 0
      %938 = vmatpush1.bf16.msra.mxu0 0
      %939 = vmatprep.subr.bf16.mxu0 0
      %940 = vmatpush1.bf16.msra.mxu0 0
      %941 = vmatprep.subr.bf16.mxu0 0
      %942 = vmatpush1.bf16.msra.mxu0 0
      %943 = vmatprep.subr.bf16.mxu0 0
      %944 = vmatpush1.bf16.msra.mxu0 0
      %945 = vmatprep.mubr.bf16.mxu0 0
      %946 = vmatmul.mubr.bf16.gmra.mrb[0].mxu0 %v584
      %v947 = vpop.f32.mrb[0].mxu0
      %v948 = vadd.f32 0.0, %v947
      %v949 = vpop.f32.mrb[0].mxu0
      %v950 = vpop.f32.mrb[0].mxu0
      %v951 = vadd.f32 0.0, %v950
      %v952 = vpop.f32.mrb[0].mxu0
      %953 = vmatprep.mubr.bf16.mxu0 0
      %954 = vmatmul.mubr.bf16.gmra.mrb[0].mxu0 %v592
      %v955 = vpop.f32.mrb[0].mxu0
      %v956 = vadd.f32 0.0, %v955
      %v957 = vpop.f32.mrb[0].mxu0
      %v958 = vpop.f32.mrb[0].mxu0
      %v959 = vadd.f32 0.0, %v958
      %v960 = vpop.f32.mrb[0].mxu0
      %961 = vmatprep.mubr.bf16.mxu0 0
      %962 = vmatmul.mubr.bf16.gmra.mrb[0].mxu0 %v600
      %v963 = vpop.f32.mrb[0].mxu0
      %v964 = vadd.f32 0.0, %v963
      %v965 = vpop.f32.mrb[0].mxu0
      %v966 = vpop.f32.mrb[0].mxu0
      %v967 = vadd.f32 0.0, %v966
      %v968 = vpop.f32.mrb[0].mxu0
      %969 = vmatprep.mubr.bf16.mxu0 0
      %970 = vmatmul.mubr.bf16.gmra.mrb[0].mxu0 %v608
      %v971 = vpop.f32.mrb[0].mxu0
      %v972 = vadd.f32 0.0, %v971
      %v973 = vpop.f32.mrb[0].mxu0
      %v974 = vpop.f32.mrb[0].mxu0
      %v975 = vadd.f32 0.0, %v974
      %v976 = vpop.f32.mrb[0].mxu0
      %977 = vmatprep.mubr.bf16.mxu0 0
      %978 = vmatmul.mubr.bf16.gmra.mrb[0].mxu0 %v616
      %v979 = vpop.f32.mrb[0].mxu0
      %v980 = vadd.f32 0.0, %v979
      %v981 = vpop.f32.mrb[0].mxu0
      %v982 = vpop.f32.mrb[0].mxu0
      %v983 = vadd.f32 0.0, %v982
      %v984 = vpop.f32.mrb[0].mxu0
      %985 = vmatprep.mubr.bf16.mxu0 0
      %986 = vmatmul.mubr.bf16.gmra.mrb[0].mxu0 %v624
      %v987 = vpop.f32.mrb[0].mxu0
      %v988 = vadd.f32 0.0, %v987
      %v989 = vpop.f32.mrb[0].mxu0
      %v990 = vpop.f32.mrb[0].mxu0
      %v991 = vadd.f32 0.0, %v990
      %v992 = vpop.f32.mrb[0].mxu0
      %993 = vmatprep.mubr.bf16.mxu0 0
      %994 = vmatmul.mubr.bf16.gmra.mrb[0].mxu0 %v632
      %v995 = vpop.f32.mrb[0].mxu0
      %v996 = vadd.f32 0.0, %v995
      %v997 = vpop.f32.mrb[0].mxu0
      %v998 = vpop.f32.mrb[0].mxu0
      %v999 = vadd.f32 0.0, %v998
      %v1000 = vpop.f32.mrb[0].mxu0
      %1001 = vmatprep.mubr.bf16.mxu0 0
      %1002 = vmatmul.mubr.bf16.gmra.mrb[0].mxu0 %v640
      %v1003 = vpop.f32.mrb[0].mxu0
      %v1004 = vadd.f32 0.0, %v1003
      %v1005 = vpop.f32.mrb[0].mxu0
      %v1006 = vpop.f32.mrb[0].mxu0
      %v1007 = vadd.f32 0.0, %v1006
      %v1008 = vpop.f32.mrb[0].mxu0
      %1009 = vmatprep.mubr.bf16.mxu0 0
      %1010 = vmatmul.mubr.bf16.gmra.mrb[0].mxu0 %v648
      %v1011 = vpop.f32.mrb[0].mxu0
      %v1012 = vadd.f32 0.0, %v1011
      %v1013 = vpop.f32.mrb[0].mxu0
      %v1014 = vpop.f32.mrb[0].mxu0
      %v1015 = vadd.f32 0.0, %v1014
      %v1016 = vpop.f32.mrb[0].mxu0
      %1017 = vmatprep.mubr.bf16.mxu0 0
      %1018 = vmatmul.mubr.bf16.gmra.mrb[0].mxu0 %v656
      %v1019 = vpop.f32.mrb[0].mxu0
      %v1020 = vadd.f32 0.0, %v1019
      %v1021 = vpop.f32.mrb[0].mxu0
      %v1022 = vpop.f32.mrb[0].mxu0
      %v1023 = vadd.f32 0.0, %v1022
      %v1024 = vpop.f32.mrb[0].mxu0
      %1025 = vmatprep.mubr.bf16.mxu0 0
      %1026 = vmatmul.mubr.bf16.gmra.mrb[0].mxu0 %v664
      %v1027 = vpop.f32.mrb[0].mxu0
      %v1028 = vadd.f32 0.0, %v1027
      %v1029 = vpop.f32.mrb[0].mxu0
      %v1030 = vpop.f32.mrb[0].mxu0
      %v1031 = vadd.f32 0.0, %v1030
      %v1032 = vpop.f32.mrb[0].mxu0
      %1033 = vmatprep.mubr.bf16.mxu0 0
      %1034 = vmatmul.mubr.bf16.gmra.mrb[0].mxu0 %v672
      %v1035 = vpop.f32.mrb[0].mxu0
      %v1036 = vadd.f32 0.0, %v1035
      %v1037 = vpop.f32.mrb[0].mxu0
      %v1038 = vpop.f32.mrb[0].mxu0
      %v1039 = vadd.f32 0.0, %v1038
      %v1040 = vpop.f32.mrb[0].mxu0
      %1041 = vmatprep.mubr.bf16.mxu0 0
      %1042 = vmatmul.mubr.bf16.gmra.mrb[0].mxu0 %v680
      %v1043 = vpop.f32.mrb[0].mxu0
      %v1044 = vadd.f32 0.0, %v1043
      %v1045 = vpop.f32.mrb[0].mxu0
      %v1046 = vpop.f32.mrb[0].mxu0
      %v1047 = vadd.f32 0.0, %v1046
      %v1048 = vpop.f32.mrb[0].mxu0
      %1049 = vmatprep.mubr.bf16.mxu0 0
      %1050 = vmatmul.mubr.bf16.gmra.mrb[0].mxu0 %v688
      %v1051 = vpop.f32.mrb[0].mxu0
      %v1052 = vadd.f32 0.0, %v1051
      %v1053 = vpop.f32.mrb[0].mxu0
      %v1054 = vpop.f32.mrb[0].mxu0
      %v1055 = vadd.f32 0.0, %v1054
      %v1056 = vpop.f32.mrb[0].mxu0
      %1057 = vmatprep.mubr.bf16.mxu0 0
      %1058 = vmatmul.mubr.bf16.gmra.mrb[0].mxu0 %v696
      %v1059 = vpop.f32.mrb[0].mxu0
      %v1060 = vadd.f32 0.0, %v1059
      %v1061 = vpop.f32.mrb[0].mxu0
      %v1062 = vpop.f32.mrb[0].mxu0
      %v1063 = vadd.f32 0.0, %v1062
      %v1064 = vpop.f32.mrb[0].mxu0
      %1065 = vmatprep.mubr.bf16.mxu0 0
      %1066 = vmatmul.mubr.bf16.gmra.mrb[0].mxu0 %v704
      %v1067 = vpop.f32.mrb[0].mxu0
      %v1068 = vadd.f32 0.0, %v1067
      %v1069 = vpop.f32.mrb[0].mxu0
      %v1070 = vpop.f32.mrb[0].mxu0
      %v1071 = vadd.f32 0.0, %v1070
      %v1072 = vpop.f32.mrb[0].mxu0
      %1073 = vmatprep.mubr.bf16.mxu0 0
      %1074 = vmatmul.mubr.bf16.gmra.mrb[0].mxu0 %v712
      %v1075 = vpop.f32.mrb[0].mxu0
      %v1076 = vadd.f32 0.0, %v1075
      %v1077 = vpop.f32.mrb[0].mxu0
      %v1078 = vpop.f32.mrb[0].mxu0
      %v1079 = vadd.f32 0.0, %v1078
      %v1080 = vpop.f32.mrb[0].mxu0
      %1081 = vmatprep.mubr.bf16.mxu0 0
      %1082 = vmatmul.mubr.bf16.gmra.mrb[0].mxu0 %v720
      %v1083 = vpop.f32.mrb[0].mxu0
      %v1084 = vadd.f32 0.0, %v1083
      %v1085 = vpop.f32.mrb[0].mxu0
      %v1086 = vpop.f32.mrb[0].mxu0
      %v1087 = vadd.f32 0.0, %v1086
      %v1088 = vpop.f32.mrb[0].mxu0
      %1089 = vmatprep.mubr.bf16.mxu0 0
      %1090 = vmatmul.mubr.bf16.gmra.mrb[0].mxu0 %v728
      %v1091 = vpop.f32.mrb[0].mxu0
      %v1092 = vadd.f32 0.0, %v1091
      %v1093 = vpop.f32.mrb[0].mxu0
      %v1094 = vpop.f32.mrb[0].mxu0
      %v1095 = vadd.f32 0.0, %v1094
      %v1096 = vpop.f32.mrb[0].mxu0
      %1097 = vmatprep.mubr.bf16.mxu0 0
      %1098 = vmatmul.mubr.bf16.gmra.mrb[0].mxu0 %v736
      %v1099 = vpop.f32.mrb[0].mxu0
      %v1100 = vadd.f32 0.0, %v1099
      %v1101 = vpop.f32.mrb[0].mxu0
      %v1102 = vpop.f32.mrb[0].mxu0
      %v1103 = vadd.f32 0.0, %v1102
      %v1104 = vpop.f32.mrb[0].mxu0
      %1105 = vmatprep.mubr.bf16.mxu0 0
      %1106 = vmatmul.mubr.bf16.gmra.mrb[0].mxu0 %v744
      %v1107 = vpop.f32.mrb[0].mxu0
      %v1108 = vadd.f32 0.0, %v1107
      %v1109 = vpop.f32.mrb[0].mxu0
      %v1110 = vpop.f32.mrb[0].mxu0
      %v1111 = vadd.f32 0.0, %v1110
      %v1112 = vpop.f32.mrb[0].mxu0
      %1113 = vmatprep.mubr.bf16.mxu0 0
      %1114 = vmatmul.mubr.bf16.gmra.mrb[0].mxu0 %v752
      %v1115 = vpop.f32.mrb[0].mxu0
      %v1116 = vadd.f32 0.0, %v1115
      %v1117 = vpop.f32.mrb[0].mxu0
      %v1118 = vpop.f32.mrb[0].mxu0
      %v1119 = vadd.f32 0.0, %v1118
      %v1120 = vpop.f32.mrb[0].mxu0
      %1121 = vmatprep.mubr.bf16.mxu0 0
      %1122 = vmatmul.mubr.bf16.gmra.mrb[0].mxu0 %v760
      %v1123 = vpop.f32.mrb[0].mxu0
      %v1124 = vadd.f32 0.0, %v1123
      %v1125 = vpop.f32.mrb[0].mxu0
      %v1126 = vpop.f32.mrb[0].mxu0
      %v1127 = vadd.f32 0.0, %v1126
      %v1128 = vpop.f32.mrb[0].mxu0
      %1129 = vmatprep.mubr.bf16.mxu0 0
      %1130 = vmatmul.mubr.bf16.gmra.mrb[0].mxu0 %v768
      %v1131 = vpop.f32.mrb[0].mxu0
      %v1132 = vadd.f32 0.0, %v1131
      %v1133 = vpop.f32.mrb[0].mxu0
      %v1134 = vpop.f32.mrb[0].mxu0
      %v1135 = vadd.f32 0.0, %v1134
      %v1136 = vpop.f32.mrb[0].mxu0
      %1137 = vmatprep.mubr.bf16.mxu0 0
      %1138 = vmatmul.mubr.bf16.gmra.mrb[0].mxu0 %v776
      %v1139 = vpop.f32.mrb[0].mxu0
      %v1140 = vadd.f32 0.0, %v1139
      %v1141 = vpop.f32.mrb[0].mxu0
      %v1142 = vpop.f32.mrb[0].mxu0
      %v1143 = vadd.f32 0.0, %v1142
      %v1144 = vpop.f32.mrb[0].mxu0
      %1145 = vmatprep.mubr.bf16.mxu0 0
      %1146 = vmatmul.mubr.bf16.gmra.mrb[0].mxu0 %v784
      %v1147 = vpop.f32.mrb[0].mxu0
      %v1148 = vadd.f32 0.0, %v1147
      %v1149 = vpop.f32.mrb[0].mxu0
      %v1150 = vpop.f32.mrb[0].mxu0
      %v1151 = vadd.f32 0.0, %v1150
      %v1152 = vpop.f32.mrb[0].mxu0
      %1153 = vmatprep.mubr.bf16.mxu0 0
      %1154 = vmatmul.mubr.bf16.gmra.mrb[0].mxu0 %v792
      %v1155 = vpop.f32.mrb[0].mxu0
      %v1156 = vadd.f32 0.0, %v1155
      %v1157 = vpop.f32.mrb[0].mxu0
      %v1158 = vpop.f32.mrb[0].mxu0
      %v1159 = vadd.f32 0.0, %v1158
      %v1160 = vpop.f32.mrb[0].mxu0
      %1161 = vmatprep.mubr.bf16.mxu0 0
      %1162 = vmatmul.mubr.bf16.gmra.mrb[0].mxu0 %v800
      %v1163 = vpop.f32.mrb[0].mxu0
      %v1164 = vadd.f32 0.0, %v1163
      %v1165 = vpop.f32.mrb[0].mxu0
      %v1166 = vpop.f32.mrb[0].mxu0
      %v1167 = vadd.f32 0.0, %v1166
      %v1168 = vpop.f32.mrb[0].mxu0
      %1169 = vmatprep.mubr.bf16.mxu0 0
      %1170 = vmatmul.mubr.bf16.gmra.mrb[0].mxu0 %v808
      %v1171 = vpop.f32.mrb[0].mxu0
      %v1172 = vadd.f32 0.0, %v1171
      %v1173 = vpop.f32.mrb[0].mxu0
      %v1174 = vpop.f32.mrb[0].mxu0
      %v1175 = vadd.f32 0.0, %v1174
      %v1176 = vpop.f32.mrb[0].mxu0
      %1177 = vmatprep.mubr.bf16.mxu0 0
      %1178 = vmatmul.mubr.bf16.gmra.mrb[0].mxu0 %v816
      %v1179 = vpop.f32.mrb[0].mxu0
      %v1180 = vadd.f32 0.0, %v1179
      %v1181 = vpop.f32.mrb[0].mxu0
      %v1182 = vpop.f32.mrb[0].mxu0
      %v1183 = vadd.f32 0.0, %v1182
      %v1184 = vpop.f32.mrb[0].mxu0
      %1185 = vmatprep.mubr.bf16.mxu0 0
      %1186 = vmatmul.mubr.bf16.gmra.mrb[0].mxu0 %v824
      %v1187 = vpop.f32.mrb[0].mxu0
      %v1188 = vadd.f32 0.0, %v1187
      %v1189 = vpop.f32.mrb[0].mxu0
      %v1190 = vpop.f32.mrb[0].mxu0
      %v1191 = vadd.f32 0.0, %v1190
      %v1192 = vpop.f32.mrb[0].mxu0
      %1193 = vmatprep.mubr.bf16.mxu0 0
      %1194 = vmatmul.mubr.bf16.gmra.mrb[0].mxu0 %v832
      %v1195 = vpop.f32.mrb[0].mxu0
      %v1196 = vadd.f32 0.0, %v1195
      %v1197 = vpop.f32.mrb[0].mxu0
      %v1198 = vpop.f32.mrb[0].mxu0
      %v1199 = vadd.f32 0.0, %v1198
      %v1200 = vpop.f32.mrb[0].mxu0
      %1201 = vdwg.mxu0
      %v1218 = vunpack.c.l.b16 %v538
      %v1219 = vunpack.c.l.b16 %v539
      %v1220 = vunpack.c.l.b16 %v540
      %v1221 = vunpack.c.l.b16 %v541
      %v1222 = vunpack.c.l.b16 %v542
      %v1223 = vunpack.c.l.b16 %v543
      %v1224 = vunpack.c.l.b16 %v544
      %v1225 = vunpack.c.l.b16 %v545
      %v1226 = vunpack.c.l.b16 %v546
      %v1227 = vunpack.c.l.b16 %v547
      %v1228 = vunpack.c.l.b16 %v548
      %v1229 = vunpack.c.l.b16 %v549
      %v1230 = vunpack.c.l.b16 %v550
      %v1231 = vunpack.c.l.b16 %v551
      %v1232 = vunpack.c.l.b16 %v552
      %v1233 = vunpack.c.l.b16 %v553
      %v1234 = vpack.c.b16 %v1219, %v1218
      %v1235 = vpack.c.b16 %v1221, %v1220
      %v1236 = vpack.c.b16 %v1223, %v1222
      %v1237 = vpack.c.b16 %v1225, %v1224
      %v1238 = vpack.c.b16 %v1227, %v1226
      %v1239 = vpack.c.b16 %v1229, %v1228
      %v1240 = vpack.c.b16 %v1231, %v1230
      %v1241 = vpack.c.b16 %v1233, %v1232
      %1250 = vmatprep.subr.bf16.mxu0 0
      %1251 = vmatpush1.bf16.msra.mxu0 %v1234
      %1252 = vmatprep.subr.bf16.mxu0 0
      %1253 = vmatpush1.bf16.msra.mxu0 %v1235
      %1254 = vmatprep.subr.bf16.mxu0 0
      %1255 = vmatpush1.bf16.msra.mxu0 %v1236
      %1256 = vmatprep.subr.bf16.mxu0 0
      %1257 = vmatpush1.bf16.msra.mxu0 %v1237
      %1258 = vmatprep.subr.bf16.mxu0 0
      %1259 = vmatpush1.bf16.msra.mxu0 %v1238
      %1260 = vmatprep.subr.bf16.mxu0 0
      %1261 = vmatpush1.bf16.msra.mxu0 %v1239
      %1262 = vmatprep.subr.bf16.mxu0 0
      %1263 = vmatpush1.bf16.msra.mxu0 %v1240
      %1264 = vmatprep.subr.bf16.mxu0 0
      %1265 = vmatpush1.bf16.msra.mxu0 %v1241
      %1266 = vmatprep.subr.bf16.mxu0 0
      %1267 = vmatpush1.bf16.msra.mxu0 0
      %1268 = vmatprep.subr.bf16.mxu0 0
      %1269 = vmatpush1.bf16.msra.mxu0 0
      %1270 = vmatprep.subr.bf16.mxu0 0
      %1271 = vmatpush1.bf16.msra.mxu0 0
      %1272 = vmatprep.subr.bf16.mxu0 0
      %1273 = vmatpush1.bf16.msra.mxu0 0
      %1274 = vmatprep.subr.bf16.mxu0 0
      %1275 = vmatpush1.bf16.msra.mxu0 0
      %1276 = vmatprep.subr.bf16.mxu0 0
      %1277 = vmatpush1.bf16.msra.mxu0 0
      %1278 = vmatprep.subr.bf16.mxu0 0
      %1279 = vmatpush1.bf16.msra.mxu0 0
      %1280 = vmatprep.subr.bf16.mxu0 0
      %1281 = vmatpush1.bf16.msra.mxu0 0
      %1282 = vmatprep.mubr.bf16.mxu0 0
      %1283 = vmatmul.mubr.bf16.gmra.mrb[0].mxu0 %v506
      %v1284 = vpop.f32.mrb[0].mxu0
      %v1285 = vadd.f32 %v948, %v1284
      %v1286 = vpop.f32.mrb[0].mxu0
      %v1287 = vpop.f32.mrb[0].mxu0
      %v1288 = vadd.f32 %v951, %v1287
      %v1289 = vpop.f32.mrb[0].mxu0
      %1290 = vmatprep.mubr.bf16.mxu0 0
      %1291 = vmatmul.mubr.bf16.gmra.mrb[0].mxu0 %v507
      %v1292 = vpop.f32.mrb[0].mxu0
      %v1293 = vadd.f32 %v956, %v1292
      %v1294 = vpop.f32.mrb[0].mxu0
      %v1295 = vpop.f32.mrb[0].mxu0
      %v1296 = vadd.f32 %v959, %v1295
      %v1297 = vpop.f32.mrb[0].mxu0
      %1298 = vmatprep.mubr.bf16.mxu0 0
      %1299 = vmatmul.mubr.bf16.gmra.mrb[0].mxu0 %v508
      %v1300 = vpop.f32.mrb[0].mxu0
      %v1301 = vadd.f32 %v964, %v1300
      %v1302 = vpop.f32.mrb[0].mxu0
      %v1303 = vpop.f32.mrb[0].mxu0
      %v1304 = vadd.f32 %v967, %v1303
      %v1305 = vpop.f32.mrb[0].mxu0
      %1306 = vmatprep.mubr.bf16.mxu0 0
      %1307 = vmatmul.mubr.bf16.gmra.mrb[0].mxu0 %v509
      %v1308 = vpop.f32.mrb[0].mxu0
      %v1309 = vadd.f32 %v972, %v1308
      %v1310 = vpop.f32.mrb[0].mxu0
      %v1311 = vpop.f32.mrb[0].mxu0
      %v1312 = vadd.f32 %v975, %v1311
      %v1313 = vpop.f32.mrb[0].mxu0
      %1314 = vmatprep.mubr.bf16.mxu0 0
      %1315 = vmatmul.mubr.bf16.gmra.mrb[0].mxu0 %v510
      %v1316 = vpop.f32.mrb[0].mxu0
      %v1317 = vadd.f32 %v980, %v1316
      %v1318 = vpop.f32.mrb[0].mxu0
      %v1319 = vpop.f32.mrb[0].mxu0
      %v1320 = vadd.f32 %v983, %v1319
      %v1321 = vpop.f32.mrb[0].mxu0
      %1322 = vmatprep.mubr.bf16.mxu0 0
      %1323 = vmatmul.mubr.bf16.gmra.mrb[0].mxu0 %v511
      %v1324 = vpop.f32.mrb[0].mxu0
      %v1325 = vadd.f32 %v988, %v1324
      %v1326 = vpop.f32.mrb[0].mxu0
      %v1327 = vpop.f32.mrb[0].mxu0
      %v1328 = vadd.f32 %v991, %v1327
      %v1329 = vpop.f32.mrb[0].mxu0
      %1330 = vmatprep.mubr.bf16.mxu0 0
      %1331 = vmatmul.mubr.bf16.gmra.mrb[0].mxu0 %v512
      %v1332 = vpop.f32.mrb[0].mxu0
      %v1333 = vadd.f32 %v996, %v1332
      %v1334 = vpop.f32.mrb[0].mxu0
      %v1335 = vpop.f32.mrb[0].mxu0
      %v1336 = vadd.f32 %v999, %v1335
      %v1337 = vpop.f32.mrb[0].mxu0
      %1338 = vmatprep.mubr.bf16.mxu0 0
      %1339 = vmatmul.mubr.bf16.gmra.mrb[0].mxu0 %v513
      %v1340 = vpop.f32.mrb[0].mxu0
      %v1341 = vadd.f32 %v1004, %v1340
      %v1342 = vpop.f32.mrb[0].mxu0
      %v1343 = vpop.f32.mrb[0].mxu0
      %v1344 = vadd.f32 %v1007, %v1343
      %v1345 = vpop.f32.mrb[0].mxu0
      %1346 = vmatprep.mubr.bf16.mxu0 0
      %1347 = vmatmul.mubr.bf16.gmra.mrb[0].mxu0 %v514
      %v1348 = vpop.f32.mrb[0].mxu0
      %v1349 = vadd.f32 %v1012, %v1348
      %v1350 = vpop.f32.mrb[0].mxu0
      %v1351 = vpop.f32.mrb[0].mxu0
      %v1352 = vadd.f32 %v1015, %v1351
      %v1353 = vpop.f32.mrb[0].mxu0
      %1354 = vmatprep.mubr.bf16.mxu0 0
      %1355 = vmatmul.mubr.bf16.gmra.mrb[0].mxu0 %v515
      %v1356 = vpop.f32.mrb[0].mxu0
      %v1357 = vadd.f32 %v1020, %v1356
      %v1358 = vpop.f32.mrb[0].mxu0
      %v1359 = vpop.f32.mrb[0].mxu0
      %v1360 = vadd.f32 %v1023, %v1359
      %v1361 = vpop.f32.mrb[0].mxu0
      %1362 = vmatprep.mubr.bf16.mxu0 0
      %1363 = vmatmul.mubr.bf16.gmra.mrb[0].mxu0 %v516
      %v1364 = vpop.f32.mrb[0].mxu0
      %v1365 = vadd.f32 %v1028, %v1364
      %v1366 = vpop.f32.mrb[0].mxu0
      %v1367 = vpop.f32.mrb[0].mxu0
      %v1368 = vadd.f32 %v1031, %v1367
      %v1369 = vpop.f32.mrb[0].mxu0
      %1370 = vmatprep.mubr.bf16.mxu0 0
      %1371 = vmatmul.mubr.bf16.gmra.mrb[0].mxu0 %v517
      %v1372 = vpop.f32.mrb[0].mxu0
      %v1373 = vadd.f32 %v1036, %v1372
      %v1374 = vpop.f32.mrb[0].mxu0
      %v1375 = vpop.f32.mrb[0].mxu0
      %v1376 = vadd.f32 %v1039, %v1375
      %v1377 = vpop.f32.mrb[0].mxu0
      %1378 = vmatprep.mubr.bf16.mxu0 0
      %1379 = vmatmul.mubr.bf16.gmra.mrb[0].mxu0 %v518
      %v1380 = vpop.f32.mrb[0].mxu0
      %v1381 = vadd.f32 %v1044, %v1380
      %v1382 = vpop.f32.mrb[0].mxu0
      %v1383 = vpop.f32.mrb[0].mxu0
      %v1384 = vadd.f32 %v1047, %v1383
      %v1385 = vpop.f32.mrb[0].mxu0
      %1386 = vmatprep.mubr.bf16.mxu0 0
      %1387 = vmatmul.mubr.bf16.gmra.mrb[0].mxu0 %v519
      %v1388 = vpop.f32.mrb[0].mxu0
      %v1389 = vadd.f32 %v1052, %v1388
      %v1390 = vpop.f32.mrb[0].mxu0
      %v1391 = vpop.f32.mrb[0].mxu0
      %v1392 = vadd.f32 %v1055, %v1391
      %v1393 = vpop.f32.mrb[0].mxu0
      %1394 = vmatprep.mubr.bf16.mxu0 0
      %1395 = vmatmul.mubr.bf16.gmra.mrb[0].mxu0 %v520
      %v1396 = vpop.f32.mrb[0].mxu0
      %v1397 = vadd.f32 %v1060, %v1396
      %v1398 = vpop.f32.mrb[0].mxu0
      %v1399 = vpop.f32.mrb[0].mxu0
      %v1400 = vadd.f32 %v1063, %v1399
      %v1401 = vpop.f32.mrb[0].mxu0
      %1402 = vmatprep.mubr.bf16.mxu0 0
      %1403 = vmatmul.mubr.bf16.gmra.mrb[0].mxu0 %v521
      %v1404 = vpop.f32.mrb[0].mxu0
      %v1405 = vadd.f32 %v1068, %v1404
      %v1406 = vpop.f32.mrb[0].mxu0
      %v1407 = vpop.f32.mrb[0].mxu0
      %v1408 = vadd.f32 %v1071, %v1407
      %v1409 = vpop.f32.mrb[0].mxu0
      %1410 = vmatprep.mubr.bf16.mxu0 0
      %1411 = vmatmul.mubr.bf16.gmra.mrb[0].mxu0 %v522
      %v1412 = vpop.f32.mrb[0].mxu0
      %v1413 = vadd.f32 %v1076, %v1412
      %v1414 = vpop.f32.mrb[0].mxu0
      %v1415 = vpop.f32.mrb[0].mxu0
      %v1416 = vadd.f32 %v1079, %v1415
      %v1417 = vpop.f32.mrb[0].mxu0
      %1418 = vmatprep.mubr.bf16.mxu0 0
      %1419 = vmatmul.mubr.bf16.gmra.mrb[0].mxu0 %v523
      %v1420 = vpop.f32.mrb[0].mxu0
      %v1421 = vadd.f32 %v1084, %v1420
      %v1422 = vpop.f32.mrb[0].mxu0
      %v1423 = vpop.f32.mrb[0].mxu0
      %v1424 = vadd.f32 %v1087, %v1423
      %v1425 = vpop.f32.mrb[0].mxu0
      %1426 = vmatprep.mubr.bf16.mxu0 0
      %1427 = vmatmul.mubr.bf16.gmra.mrb[0].mxu0 %v524
      %v1428 = vpop.f32.mrb[0].mxu0
      %v1429 = vadd.f32 %v1092, %v1428
      %v1430 = vpop.f32.mrb[0].mxu0
      %v1431 = vpop.f32.mrb[0].mxu0
      %v1432 = vadd.f32 %v1095, %v1431
      %v1433 = vpop.f32.mrb[0].mxu0
      %1434 = vmatprep.mubr.bf16.mxu0 0
      %1435 = vmatmul.mubr.bf16.gmra.mrb[0].mxu0 %v525
      %v1436 = vpop.f32.mrb[0].mxu0
      %v1437 = vadd.f32 %v1100, %v1436
      %v1438 = vpop.f32.mrb[0].mxu0
      %v1439 = vpop.f32.mrb[0].mxu0
      %v1440 = vadd.f32 %v1103, %v1439
      %v1441 = vpop.f32.mrb[0].mxu0
      %1442 = vmatprep.mubr.bf16.mxu0 0
      %1443 = vmatmul.mubr.bf16.gmra.mrb[0].mxu0 %v526
      %v1444 = vpop.f32.mrb[0].mxu0
      %v1445 = vadd.f32 %v1108, %v1444
      %v1446 = vpop.f32.mrb[0].mxu0
      %v1447 = vpop.f32.mrb[0].mxu0
      %v1448 = vadd.f32 %v1111, %v1447
      %v1449 = vpop.f32.mrb[0].mxu0
      %1450 = vmatprep.mubr.bf16.mxu0 0
      %1451 = vmatmul.mubr.bf16.gmra.mrb[0].mxu0 %v527
      %v1452 = vpop.f32.mrb[0].mxu0
      %v1453 = vadd.f32 %v1116, %v1452
      %v1454 = vpop.f32.mrb[0].mxu0
      %v1455 = vpop.f32.mrb[0].mxu0
      %v1456 = vadd.f32 %v1119, %v1455
      %v1457 = vpop.f32.mrb[0].mxu0
      %1458 = vmatprep.mubr.bf16.mxu0 0
      %1459 = vmatmul.mubr.bf16.gmra.mrb[0].mxu0 %v528
      %v1460 = vpop.f32.mrb[0].mxu0
      %v1461 = vadd.f32 %v1124, %v1460
      %v1462 = vpop.f32.mrb[0].mxu0
      %v1463 = vpop.f32.mrb[0].mxu0
      %v1464 = vadd.f32 %v1127, %v1463
      %v1465 = vpop.f32.mrb[0].mxu0
      %1466 = vmatprep.mubr.bf16.mxu0 0
      %1467 = vmatmul.mubr.bf16.gmra.mrb[0].mxu0 %v529
      %v1468 = vpop.f32.mrb[0].mxu0
      %v1469 = vadd.f32 %v1132, %v1468
      %v1470 = vpop.f32.mrb[0].mxu0
      %v1471 = vpop.f32.mrb[0].mxu0
      %v1472 = vadd.f32 %v1135, %v1471
      %v1473 = vpop.f32.mrb[0].mxu0
      %1474 = vmatprep.mubr.bf16.mxu0 0
      %1475 = vmatmul.mubr.bf16.gmra.mrb[0].mxu0 %v530
      %v1476 = vpop.f32.mrb[0].mxu0
      %v1477 = vadd.f32 %v1140, %v1476
      %v1478 = vpop.f32.mrb[0].mxu0
      %v1479 = vpop.f32.mrb[0].mxu0
      %v1480 = vadd.f32 %v1143, %v1479
      %v1481 = vpop.f32.mrb[0].mxu0
      %1482 = vmatprep.mubr.bf16.mxu0 0
      %1483 = vmatmul.mubr.bf16.gmra.mrb[0].mxu0 %v531
      %v1484 = vpop.f32.mrb[0].mxu0
      %v1485 = vadd.f32 %v1148, %v1484
      %v1486 = vpop.f32.mrb[0].mxu0
      %v1487 = vpop.f32.mrb[0].mxu0
      %v1488 = vadd.f32 %v1151, %v1487
      %v1489 = vpop.f32.mrb[0].mxu0
      %1490 = vmatprep.mubr.bf16.mxu0 0
      %1491 = vmatmul.mubr.bf16.gmra.mrb[0].mxu0 %v532
      %v1492 = vpop.f32.mrb[0].mxu0
      %v1493 = vadd.f32 %v1156, %v1492
      %v1494 = vpop.f32.mrb[0].mxu0
      %v1495 = vpop.f32.mrb[0].mxu0
      %v1496 = vadd.f32 %v1159, %v1495
      %v1497 = vpop.f32.mrb[0].mxu0
      %1498 = vmatprep.mubr.bf16.mxu0 0
      %1499 = vmatmul.mubr.bf16.gmra.mrb[0].mxu0 %v533
      %v1500 = vpop.f32.mrb[0].mxu0
      %v1501 = vadd.f32 %v1164, %v1500
      %v1502 = vpop.f32.mrb[0].mxu0
      %v1503 = vpop.f32.mrb[0].mxu0
      %v1504 = vadd.f32 %v1167, %v1503
      %v1505 = vpop.f32.mrb[0].mxu0
      %1506 = vmatprep.mubr.bf16.mxu0 0
      %1507 = vmatmul.mubr.bf16.gmra.mrb[0].mxu0 %v534
      %v1508 = vpop.f32.mrb[0].mxu0
      %v1509 = vadd.f32 %v1172, %v1508
      %v1510 = vpop.f32.mrb[0].mxu0
      %v1511 = vpop.f32.mrb[0].mxu0
      %v1512 = vadd.f32 %v1175, %v1511
      %v1513 = vpop.f32.mrb[0].mxu0
      %1514 = vmatprep.mubr.bf16.mxu0 0
      %1515 = vmatmul.mubr.bf16.gmra.mrb[0].mxu0 %v535
      %v1516 = vpop.f32.mrb[0].mxu0
      %v1517 = vadd.f32 %v1180, %v1516
      %v1518 = vpop.f32.mrb[0].mxu0
      %v1519 = vpop.f32.mrb[0].mxu0
      %v1520 = vadd.f32 %v1183, %v1519
      %v1521 = vpop.f32.mrb[0].mxu0
      %1522 = vmatprep.mubr.bf16.mxu0 0
      %1523 = vmatmul.mubr.bf16.gmra.mrb[0].mxu0 %v536
      %v1524 = vpop.f32.mrb[0].mxu0
      %v1525 = vadd.f32 %v1188, %v1524
      %v1526 = vpop.f32.mrb[0].mxu0
      %v1527 = vpop.f32.mrb[0].mxu0
      %v1528 = vadd.f32 %v1191, %v1527
      %v1529 = vpop.f32.mrb[0].mxu0
      %1530 = vmatprep.mubr.bf16.mxu0 0
      %1531 = vmatmul.mubr.bf16.gmra.mrb[0].mxu0 %v537
      %v1532 = vpop.f32.mrb[0].mxu0
      %v1533 = vadd.f32 %v1196, %v1532
      %v1534 = vpop.f32.mrb[0].mxu0
      %v1535 = vpop.f32.mrb[0].mxu0
      %v1536 = vadd.f32 %v1199, %v1535
      %v1537 = vpop.f32.mrb[0].mxu0
      %1538 = vdwg.mxu0
      %v1539 = vld [vmem:[%s500] sm:$0xfe]
      %s1540 = scalar_lea.vmem %s1, 128
      %v1541 = vld [vmem:[%s1540] sm:$0xf]
      %v1542 = vld [vmem:[%s1540 + $0x4] sm:$0xf]
      %v1543 = vld [vmem:[%s1540 + $0x8] sm:$0xf]
      %v1544 = vld [vmem:[%s1540 + $0xc] sm:$0xf]
      %v1545 = vld [vmem:[%s1540 + $0x10] sm:$0xf]
      %v1546 = vld [vmem:[%s1540 + $0x14] sm:$0xf]
      %v1547 = vld [vmem:[%s1540 + $0x18] sm:$0xf]
      %v1548 = vld [vmem:[%s1540 + $0x1c] sm:$0xf]
      %v1549 = vld [vmem:[%s1540 + $0x20] sm:$0xf]
      %v1550 = vld [vmem:[%s1540 + $0x24] sm:$0xf]
      %v1551 = vld [vmem:[%s1540 + $0x28] sm:$0xf]
      %v1552 = vld [vmem:[%s1540 + $0x2c] sm:$0xf]
      %v1553 = vld [vmem:[%s1540 + $0x30] sm:$0xf]
      %v1554 = vld [vmem:[%s1540 + $0x34] sm:$0xf]
      %v1555 = vld [vmem:[%s1540 + $0x38] sm:$0xf]
      %v1556 = vld [vmem:[%s1540 + $0x3c] sm:$0xf]
      %vm1590 = vcmask 1046528
      %v1591 = vrot.slane %v1539, 1
      %v1592 = vrot.slane %v507, 1
      %v1593 = vsel %vm1590, %v1591, %v1592
      %v1594 = vrot.slane %v508, 1
      %v1595 = vsel %vm1590, %v1592, %v1594
      %v1596 = vrot.slane %v509, 1
      %v1597 = vsel %vm1590, %v1594, %v1596
      %v1598 = vrot.slane %v510, 1
      %v1599 = vsel %vm1590, %v1596, %v1598
      %v1600 = vrot.slane %v511, 1
      %v1601 = vsel %vm1590, %v1598, %v1600
      %v1602 = vrot.slane %v512, 1
      %v1603 = vsel %vm1590, %v1600, %v1602
      %v1604 = vrot.slane %v513, 1
      %v1605 = vsel %vm1590, %v1602, %v1604
      %v1606 = vrot.slane %v514, 1
      %v1607 = vsel %vm1590, %v1604, %v1606
      %v1608 = vrot.slane %v515, 1
      %v1609 = vsel %vm1590, %v1606, %v1608
      %v1610 = vrot.slane %v516, 1
      %v1611 = vsel %vm1590, %v1608, %v1610
      %v1612 = vrot.slane %v517, 1
      %v1613 = vsel %vm1590, %v1610, %v1612
      %v1614 = vrot.slane %v518, 1
      %v1615 = vsel %vm1590, %v1612, %v1614
      %v1616 = vrot.slane %v519, 1
      %v1617 = vsel %vm1590, %v1614, %v1616
      %v1618 = vrot.slane %v520, 1
      %v1619 = vsel %vm1590, %v1616, %v1618
      %v1620 = vrot.slane %v521, 1
      %v1621 = vsel %vm1590, %v1618, %v1620
      %v1622 = vrot.slane %v522, 1
      %v1623 = vsel %vm1590, %v1620, %v1622
      %v1624 = vrot.slane %v523, 1
      %v1625 = vsel %vm1590, %v1622, %v1624
      %v1626 = vrot.slane %v524, 1
      %v1627 = vsel %vm1590, %v1624, %v1626
      %v1628 = vrot.slane %v525, 1
      %v1629 = vsel %vm1590, %v1626, %v1628
      %v1630 = vrot.slane %v526, 1
      %v1631 = vsel %vm1590, %v1628, %v1630
      %v1632 = vrot.slane %v527, 1
      %v1633 = vsel %vm1590, %v1630, %v1632
      %v1634 = vrot.slane %v528, 1
      %v1635 = vsel %vm1590, %v1632, %v1634
      %v1636 = vrot.slane %v529, 1
      %v1637 = vsel %vm1590, %v1634, %v1636
      %v1638 = vrot.slane %v530, 1
      %v1639 = vsel %vm1590, %v1636, %v1638
      %v1640 = vrot.slane %v531, 1
      %v1641 = vsel %vm1590, %v1638, %v1640
      %v1642 = vrot.slane %v532, 1
      %v1643 = vsel %vm1590, %v1640, %v1642
      %v1644 = vrot.slane %v533, 1
      %v1645 = vsel %vm1590, %v1642, %v1644
      %v1646 = vrot.slane %v534, 1
      %v1647 = vsel %vm1590, %v1644, %v1646
      %v1648 = vrot.slane %v535, 1
      %v1649 = vsel %vm1590, %v1646, %v1648
      %v1650 = vrot.slane %v536, 1
      %v1651 = vsel %vm1590, %v1648, %v1650
      %v1652 = vrot.slane %v537, 1
      %v1653 = vsel %vm1590, %v1650, %v1652
      %v1654 = vrot.slane %v554, 1
      %v1655 = vsel %vm1590, %v1652, %v1654
      %v1704 = vunpack.c.l.b16 %v1541
      %v1705 = vunpack.c.l.b16 %v1542
      %v1706 = vunpack.c.l.b16 %v1543
      %v1707 = vunpack.c.l.b16 %v1544
      %v1708 = vunpack.c.l.b16 %v1545
      %v1709 = vunpack.c.l.b16 %v1546
      %v1710 = vunpack.c.l.b16 %v1547
      %v1711 = vunpack.c.l.b16 %v1548
      %v1712 = vunpack.c.l.b16 %v1549
      %v1713 = vunpack.c.l.b16 %v1550
      %v1714 = vunpack.c.l.b16 %v1551
      %v1715 = vunpack.c.l.b16 %v1552
      %v1716 = vunpack.c.l.b16 %v1553
      %v1717 = vunpack.c.l.b16 %v1554
      %v1718 = vunpack.c.l.b16 %v1555
      %v1719 = vunpack.c.l.b16 %v1556
      %v1720 = vpack.c.b16 %v1705, %v1704
      %v1721 = vpack.c.b16 %v1707, %v1706
      %v1722 = vpack.c.b16 %v1709, %v1708
      %v1723 = vpack.c.b16 %v1711, %v1710
      %v1724 = vpack.c.b16 %v1713, %v1712
      %v1725 = vpack.c.b16 %v1715, %v1714
      %v1726 = vpack.c.b16 %v1717, %v1716
      %v1727 = vpack.c.b16 %v1719, %v1718
      %1736 = vmatprep.subr.bf16.mxu0 0
      %1737 = vmatpush1.bf16.msra.mxu0 %v1720
      %1738 = vmatprep.subr.bf16.mxu0 0
      %1739 = vmatpush1.bf16.msra.mxu0 %v1721
      %1740 = vmatprep.subr.bf16.mxu0 0
      %1741 = vmatpush1.bf16.msra.mxu0 %v1722
      %1742 = vmatprep.subr.bf16.mxu0 0
      %1743 = vmatpush1.bf16.msra.mxu0 %v1723
      %1744 = vmatprep.subr.bf16.mxu0 0
      %1745 = vmatpush1.bf16.msra.mxu0 %v1724
      %1746 = vmatprep.subr.bf16.mxu0 0
      %1747 = vmatpush1.bf16.msra.mxu0 %v1725
      %1748 = vmatprep.subr.bf16.mxu0 0
      %1749 = vmatpush1.bf16.msra.mxu0 %v1726
      %1750 = vmatprep.subr.bf16.mxu0 0
      %1751 = vmatpush1.bf16.msra.mxu0 %v1727
      %1752 = vmatprep.subr.bf16.mxu0 0
      %1753 = vmatpush1.bf16.msra.mxu0 0
      %1754 = vmatprep.subr.bf16.mxu0 0
      %1755 = vmatpush1.bf16.msra.mxu0 0
      %1756 = vmatprep.subr.bf16.mxu0 0
      %1757 = vmatpush1.bf16.msra.mxu0 0
      %1758 = vmatprep.subr.bf16.mxu0 0
      %1759 = vmatpush1.bf16.msra.mxu0 0
      %1760 = vmatprep.subr.bf16.mxu0 0
      %1761 = vmatpush1.bf16.msra.mxu0 0
      %1762 = vmatprep.subr.bf16.mxu0 0
      %1763 = vmatpush1.bf16.msra.mxu0 0
      %1764 = vmatprep.subr.bf16.mxu0 0
      %1765 = vmatpush1.bf16.msra.mxu0 0
      %1766 = vmatprep.subr.bf16.mxu0 0
      %1767 = vmatpush1.bf16.msra.mxu0 0
      %1768 = vmatprep.mubr.bf16.mxu0 0
      %1769 = vmatmul.mubr.bf16.gmra.mrb[0].mxu0 %v1593
      %v1770 = vpop.f32.mrb[0].mxu0
      %v1771 = vadd.f32 0.0, %v1770
      %v1772 = vpop.f32.mrb[0].mxu0
      %v1773 = vpop.f32.mrb[0].mxu0
      %v1774 = vadd.f32 0.0, %v1773
      %v1775 = vpop.f32.mrb[0].mxu0
      %1776 = vmatprep.mubr.bf16.mxu0 0
      %1777 = vmatmul.mubr.bf16.gmra.mrb[0].mxu0 %v1595
      %v1778 = vpop.f32.mrb[0].mxu0
      %v1779 = vadd.f32 0.0, %v1778
      %v1780 = vpop.f32.mrb[0].mxu0
      %v1781 = vpop.f32.mrb[0].mxu0
      %v1782 = vadd.f32 0.0, %v1781
      %v1783 = vpop.f32.mrb[0].mxu0
      %1784 = vmatprep.mubr.bf16.mxu0 0
      %1785 = vmatmul.mubr.bf16.gmra.mrb[0].mxu0 %v1597
      %v1786 = vpop.f32.mrb[0].mxu0
      %v1787 = vadd.f32 0.0, %v1786
      %v1788 = vpop.f32.mrb[0].mxu0
      %v1789 = vpop.f32.mrb[0].mxu0
      %v1790 = vadd.f32 0.0, %v1789
      %v1791 = vpop.f32.mrb[0].mxu0
      %1792 = vmatprep.mubr.bf16.mxu0 0
      %1793 = vmatmul.mubr.bf16.gmra.mrb[0].mxu0 %v1599
      %v1794 = vpop.f32.mrb[0].mxu0
      %v1795 = vadd.f32 0.0, %v1794
      %v1796 = vpop.f32.mrb[0].mxu0
      %v1797 = vpop.f32.mrb[0].mxu0
      %v1798 = vadd.f32 0.0, %v1797
      %v1799 = vpop.f32.mrb[0].mxu0
      %1800 = vmatprep.mubr.bf16.mxu0 0
      %1801 = vmatmul.mubr.bf16.gmra.mrb[0].mxu0 %v1601
      %v1802 = vpop.f32.mrb[0].mxu0
      %v1803 = vadd.f32 0.0, %v1802
      %v1804 = vpop.f32.mrb[0].mxu0
      %v1805 = vpop.f32.mrb[0].mxu0
      %v1806 = vadd.f32 0.0, %v1805
      %v1807 = vpop.f32.mrb[0].mxu0
      %1808 = vmatprep.mubr.bf16.mxu0 0
      %1809 = vmatmul.mubr.bf16.gmra.mrb[0].mxu0 %v1603
      %v1810 = vpop.f32.mrb[0].mxu0
      %v1811 = vadd.f32 0.0, %v1810
      %v1812 = vpop.f32.mrb[0].mxu0
      %v1813 = vpop.f32.mrb[0].mxu0
      %v1814 = vadd.f32 0.0, %v1813
      %v1815 = vpop.f32.mrb[0].mxu0
      %1816 = vmatprep.mubr.bf16.mxu0 0
      %1817 = vmatmul.mubr.bf16.gmra.mrb[0].mxu0 %v1605
      %v1818 = vpop.f32.mrb[0].mxu0
      %v1819 = vadd.f32 0.0, %v1818
      %v1820 = vpop.f32.mrb[0].mxu0
      %v1821 = vpop.f32.mrb[0].mxu0
      %v1822 = vadd.f32 0.0, %v1821
      %v1823 = vpop.f32.mrb[0].mxu0
      %1824 = vmatprep.mubr.bf16.mxu0 0
      %1825 = vmatmul.mubr.bf16.gmra.mrb[0].mxu0 %v1607
      %v1826 = vpop.f32.mrb[0].mxu0
      %v1827 = vadd.f32 0.0, %v1826
      %v1828 = vpop.f32.mrb[0].mxu0
      %v1829 = vpop.f32.mrb[0].mxu0
      %v1830 = vadd.f32 0.0, %v1829
      %v1831 = vpop.f32.mrb[0].mxu0
      %1832 = vmatprep.mubr.bf16.mxu0 0
      %1833 = vmatmul.mubr.bf16.gmra.mrb[0].mxu0 %v1609
      %v1834 = vpop.f32.mrb[0].mxu0
      %v1835 = vadd.f32 0.0, %v1834
      %v1836 = vpop.f32.mrb[0].mxu0
      %v1837 = vpop.f32.mrb[0].mxu0
      %v1838 = vadd.f32 0.0, %v1837
      %v1839 = vpop.f32.mrb[0].mxu0
      %1840 = vmatprep.mubr.bf16.mxu0 0
      %1841 = vmatmul.mubr.bf16.gmra.mrb[0].mxu0 %v1611
      %v1842 = vpop.f32.mrb[0].mxu0
      %v1843 = vadd.f32 0.0, %v1842
      %v1844 = vpop.f32.mrb[0].mxu0
      %v1845 = vpop.f32.mrb[0].mxu0
      %v1846 = vadd.f32 0.0, %v1845
      %v1847 = vpop.f32.mrb[0].mxu0
      %1848 = vmatprep.mubr.bf16.mxu0 0
      %1849 = vmatmul.mubr.bf16.gmra.mrb[0].mxu0 %v1613
      %v1850 = vpop.f32.mrb[0].mxu0
      %v1851 = vadd.f32 0.0, %v1850
      %v1852 = vpop.f32.mrb[0].mxu0
      %v1853 = vpop.f32.mrb[0].mxu0
      %v1854 = vadd.f32 0.0, %v1853
      %v1855 = vpop.f32.mrb[0].mxu0
      %1856 = vmatprep.mubr.bf16.mxu0 0
      %1857 = vmatmul.mubr.bf16.gmra.mrb[0].mxu0 %v1615
      %v1858 = vpop.f32.mrb[0].mxu0
      %v1859 = vadd.f32 0.0, %v1858
      %v1860 = vpop.f32.mrb[0].mxu0
      %v1861 = vpop.f32.mrb[0].mxu0
      %v1862 = vadd.f32 0.0, %v1861
      %v1863 = vpop.f32.mrb[0].mxu0
      %1864 = vmatprep.mubr.bf16.mxu0 0
      %1865 = vmatmul.mubr.bf16.gmra.mrb[0].mxu0 %v1617
      %v1866 = vpop.f32.mrb[0].mxu0
      %v1867 = vadd.f32 0.0, %v1866
      %v1868 = vpop.f32.mrb[0].mxu0
      %v1869 = vpop.f32.mrb[0].mxu0
      %v1870 = vadd.f32 0.0, %v1869
      %v1871 = vpop.f32.mrb[0].mxu0
      %1872 = vmatprep.mubr.bf16.mxu0 0
      %1873 = vmatmul.mubr.bf16.gmra.mrb[0].mxu0 %v1619
      %v1874 = vpop.f32.mrb[0].mxu0
      %v1875 = vadd.f32 0.0, %v1874
      %v1876 = vpop.f32.mrb[0].mxu0
      %v1877 = vpop.f32.mrb[0].mxu0
      %v1878 = vadd.f32 0.0, %v1877
      %v1879 = vpop.f32.mrb[0].mxu0
      %1880 = vmatprep.mubr.bf16.mxu0 0
      %1881 = vmatmul.mubr.bf16.gmra.mrb[0].mxu0 %v1621
      %v1882 = vpop.f32.mrb[0].mxu0
      %v1883 = vadd.f32 0.0, %v1882
      %v1884 = vpop.f32.mrb[0].mxu0
      %v1885 = vpop.f32.mrb[0].mxu0
      %v1886 = vadd.f32 0.0, %v1885
      %v1887 = vpop.f32.mrb[0].mxu0
      %1888 = vmatprep.mubr.bf16.mxu0 0
      %1889 = vmatmul.mubr.bf16.gmra.mrb[0].mxu0 %v1623
      %v1890 = vpop.f32.mrb[0].mxu0
      %v1891 = vadd.f32 0.0, %v1890
      %v1892 = vpop.f32.mrb[0].mxu0
      %v1893 = vpop.f32.mrb[0].mxu0
      %v1894 = vadd.f32 0.0, %v1893
      %v1895 = vpop.f32.mrb[0].mxu0
      %1896 = vmatprep.mubr.bf16.mxu0 0
      %1897 = vmatmul.mubr.bf16.gmra.mrb[0].mxu0 %v1625
      %v1898 = vpop.f32.mrb[0].mxu0
      %v1899 = vadd.f32 0.0, %v1898
      %v1900 = vpop.f32.mrb[0].mxu0
      %v1901 = vpop.f32.mrb[0].mxu0
      %v1902 = vadd.f32 0.0, %v1901
      %v1903 = vpop.f32.mrb[0].mxu0
      %1904 = vmatprep.mubr.bf16.mxu0 0
      %1905 = vmatmul.mubr.bf16.gmra.mrb[0].mxu0 %v1627
      %v1906 = vpop.f32.mrb[0].mxu0
      %v1907 = vadd.f32 0.0, %v1906
      %v1908 = vpop.f32.mrb[0].mxu0
      %v1909 = vpop.f32.mrb[0].mxu0
      %v1910 = vadd.f32 0.0, %v1909
      %v1911 = vpop.f32.mrb[0].mxu0
      %1912 = vmatprep.mubr.bf16.mxu0 0
      %1913 = vmatmul.mubr.bf16.gmra.mrb[0].mxu0 %v1629
      %v1914 = vpop.f32.mrb[0].mxu0
      %v1915 = vadd.f32 0.0, %v1914
      %v1916 = vpop.f32.mrb[0].mxu0
      %v1917 = vpop.f32.mrb[0].mxu0
      %v1918 = vadd.f32 0.0, %v1917
      %v1919 = vpop.f32.mrb[0].mxu0
      %1920 = vmatprep.mubr.bf16.mxu0 0
      %1921 = vmatmul.mubr.bf16.gmra.mrb[0].mxu0 %v1631
      %v1922 = vpop.f32.mrb[0].mxu0
      %v1923 = vadd.f32 0.0, %v1922
      %v1924 = vpop.f32.mrb[0].mxu0
      %v1925 = vpop.f32.mrb[0].mxu0
      %v1926 = vadd.f32 0.0, %v1925
      %v1927 = vpop.f32.mrb[0].mxu0
      %1928 = vmatprep.mubr.bf16.mxu0 0
      %1929 = vmatmul.mubr.bf16.gmra.mrb[0].mxu0 %v1633
      %v1930 = vpop.f32.mrb[0].mxu0
      %v1931 = vadd.f32 0.0, %v1930
      %v1932 = vpop.f32.mrb[0].mxu0
      %v1933 = vpop.f32.mrb[0].mxu0
      %v1934 = vadd.f32 0.0, %v1933
      %v1935 = vpop.f32.mrb[0].mxu0
      %1936 = vmatprep.mubr.bf16.mxu0 0
      %1937 = vmatmul.mubr.bf16.gmra.mrb[0].mxu0 %v1635
      %v1938 = vpop.f32.mrb[0].mxu0
      %v1939 = vadd.f32 0.0, %v1938
      %v1940 = vpop.f32.mrb[0].mxu0
      %v1941 = vpop.f32.mrb[0].mxu0
      %v1942 = vadd.f32 0.0, %v1941
      %v1943 = vpop.f32.mrb[0].mxu0
      %1944 = vmatprep.mubr.bf16.mxu0 0
      %1945 = vmatmul.mubr.bf16.gmra.mrb[0].mxu0 %v1637
      %v1946 = vpop.f32.mrb[0].mxu0
      %v1947 = vadd.f32 0.0, %v1946
      %v1948 = vpop.f32.mrb[0].mxu0
      %v1949 = vpop.f32.mrb[0].mxu0
      %v1950 = vadd.f32 0.0, %v1949
      %v1951 = vpop.f32.mrb[0].mxu0
      %1952 = vmatprep.mubr.bf16.mxu0 0
      %1953 = vmatmul.mubr.bf16.gmra.mrb[0].mxu0 %v1639
      %v1954 = vpop.f32.mrb[0].mxu0
      %v1955 = vadd.f32 0.0, %v1954
      %v1956 = vpop.f32.mrb[0].mxu0
      %v1957 = vpop.f32.mrb[0].mxu0
      %v1958 = vadd.f32 0.0, %v1957
      %v1959 = vpop.f32.mrb[0].mxu0
      %1960 = vmatprep.mubr.bf16.mxu0 0
      %1961 = vmatmul.mubr.bf16.gmra.mrb[0].mxu0 %v1641
      %v1962 = vpop.f32.mrb[0].mxu0
      %v1963 = vadd.f32 0.0, %v1962
      %v1964 = vpop.f32.mrb[0].mxu0
      %v1965 = vpop.f32.mrb[0].mxu0
      %v1966 = vadd.f32 0.0, %v1965
      %v1967 = vpop.f32.mrb[0].mxu0
      %1968 = vmatprep.mubr.bf16.mxu0 0
      %1969 = vmatmul.mubr.bf16.gmra.mrb[0].mxu0 %v1643
      %v1970 = vpop.f32.mrb[0].mxu0
      %v1971 = vadd.f32 0.0, %v1970
      %v1972 = vpop.f32.mrb[0].mxu0
      %v1973 = vpop.f32.mrb[0].mxu0
      %v1974 = vadd.f32 0.0, %v1973
      %v1975 = vpop.f32.mrb[0].mxu0
      %1976 = vmatprep.mubr.bf16.mxu0 0
      %1977 = vmatmul.mubr.bf16.gmra.mrb[0].mxu0 %v1645
      %v1978 = vpop.f32.mrb[0].mxu0
      %v1979 = vadd.f32 0.0, %v1978
      %v1980 = vpop.f32.mrb[0].mxu0
      %v1981 = vpop.f32.mrb[0].mxu0
      %v1982 = vadd.f32 0.0, %v1981
      %v1983 = vpop.f32.mrb[0].mxu0
      %1984 = vmatprep.mubr.bf16.mxu0 0
      %1985 = vmatmul.mubr.bf16.gmra.mrb[0].mxu0 %v1647
      %v1986 = vpop.f32.mrb[0].mxu0
      %v1987 = vadd.f32 0.0, %v1986
      %v1988 = vpop.f32.mrb[0].mxu0
      %v1989 = vpop.f32.mrb[0].mxu0
      %v1990 = vadd.f32 0.0, %v1989
      %v1991 = vpop.f32.mrb[0].mxu0
      %1992 = vmatprep.mubr.bf16.mxu0 0
      %1993 = vmatmul.mubr.bf16.gmra.mrb[0].mxu0 %v1649
      %v1994 = vpop.f32.mrb[0].mxu0
      %v1995 = vadd.f32 0.0, %v1994
      %v1996 = vpop.f32.mrb[0].mxu0
      %v1997 = vpop.f32.mrb[0].mxu0
      %v1998 = vadd.f32 0.0, %v1997
      %v1999 = vpop.f32.mrb[0].mxu0
      %2000 = vmatprep.mubr.bf16.mxu0 0
      %2001 = vmatmul.mubr.bf16.gmra.mrb[0].mxu0 %v1651
      %v2002 = vpop.f32.mrb[0].mxu0
      %v2003 = vadd.f32 0.0, %v2002
      %v2004 = vpop.f32.mrb[0].mxu0
      %v2005 = vpop.f32.mrb[0].mxu0
      %v2006 = vadd.f32 0.0, %v2005
      %v2007 = vpop.f32.mrb[0].mxu0
      %2008 = vmatprep.mubr.bf16.mxu0 0
      %2009 = vmatmul.mubr.bf16.gmra.mrb[0].mxu0 %v1653
      %v2010 = vpop.f32.mrb[0].mxu0
      %v2011 = vadd.f32 0.0, %v2010
      %v2012 = vpop.f32.mrb[0].mxu0
      %v2013 = vpop.f32.mrb[0].mxu0
      %v2014 = vadd.f32 0.0, %v2013
      %v2015 = vpop.f32.mrb[0].mxu0
      %2016 = vmatprep.mubr.bf16.mxu0 0
      %2017 = vmatmul.mubr.bf16.gmra.mrb[0].mxu0 %v1655
      %v2018 = vpop.f32.mrb[0].mxu0
      %v2019 = vadd.f32 0.0, %v2018
      %v2020 = vpop.f32.mrb[0].mxu0
      %v2021 = vpop.f32.mrb[0].mxu0
      %v2022 = vadd.f32 0.0, %v2021
      %v2023 = vpop.f32.mrb[0].mxu0
      %2024 = vdwg.mxu0
      %v2025 = vadd.f32 %v1285, %v1771
      %v2026 = vadd.f32 %v1288, %v1774
      %v2027 = vadd.f32 %v1293, %v1779
      %v2028 = vadd.f32 %v1296, %v1782
      %v2029 = vadd.f32 %v1301, %v1787
      %v2030 = vadd.f32 %v1304, %v1790
      %v2031 = vadd.f32 %v1309, %v1795
      %v2032 = vadd.f32 %v1312, %v1798
      %v2033 = vadd.f32 %v1317, %v1803
      %v2034 = vadd.f32 %v1320, %v1806
      %v2035 = vadd.f32 %v1325, %v1811
      %v2036 = vadd.f32 %v1328, %v1814
      %v2037 = vadd.f32 %v1333, %v1819
      %v2038 = vadd.f32 %v1336, %v1822
      %v2039 = vadd.f32 %v1341, %v1827
      %v2040 = vadd.f32 %v1344, %v1830
      %v2041 = vadd.f32 %v1349, %v1835
      %v2042 = vadd.f32 %v1352, %v1838
      %v2043 = vadd.f32 %v1357, %v1843
      %v2044 = vadd.f32 %v1360, %v1846
      %v2045 = vadd.f32 %v1365, %v1851
      %v2046 = vadd.f32 %v1368, %v1854
      %v2047 = vadd.f32 %v1373, %v1859
      %v2048 = vadd.f32 %v1376, %v1862
      %v2049 = vadd.f32 %v1381, %v1867
      %v2050 = vadd.f32 %v1384, %v1870
      %v2051 = vadd.f32 %v1389, %v1875
      %v2052 = vadd.f32 %v1392, %v1878
      %v2053 = vadd.f32 %v1397, %v1883
      %v2054 = vadd.f32 %v1400, %v1886
      %v2055 = vadd.f32 %v1405, %v1891
      %v2056 = vadd.f32 %v1408, %v1894
      %v2057 = vadd.f32 %v1413, %v1899
      %v2058 = vadd.f32 %v1416, %v1902
      %v2059 = vadd.f32 %v1421, %v1907
      %v2060 = vadd.f32 %v1424, %v1910
      %v2061 = vadd.f32 %v1429, %v1915
      %v2062 = vadd.f32 %v1432, %v1918
      %v2063 = vadd.f32 %v1437, %v1923
      %v2064 = vadd.f32 %v1440, %v1926
      %v2065 = vadd.f32 %v1445, %v1931
      %v2066 = vadd.f32 %v1448, %v1934
      %v2067 = vadd.f32 %v1453, %v1939
      %v2068 = vadd.f32 %v1456, %v1942
      %v2069 = vadd.f32 %v1461, %v1947
      %v2070 = vadd.f32 %v1464, %v1950
      %v2071 = vadd.f32 %v1469, %v1955
      %v2072 = vadd.f32 %v1472, %v1958
      %v2073 = vadd.f32 %v1477, %v1963
      %v2074 = vadd.f32 %v1480, %v1966
      %v2075 = vadd.f32 %v1485, %v1971
      %v2076 = vadd.f32 %v1488, %v1974
      %v2077 = vadd.f32 %v1493, %v1979
      %v2078 = vadd.f32 %v1496, %v1982
      %v2079 = vadd.f32 %v1501, %v1987
      %v2080 = vadd.f32 %v1504, %v1990
      %v2081 = vadd.f32 %v1509, %v1995
      %v2082 = vadd.f32 %v1512, %v1998
      %v2083 = vadd.f32 %v1517, %v2003
      %v2084 = vadd.f32 %v1520, %v2006
      %v2085 = vadd.f32 %v1525, %v2011
      %v2086 = vadd.f32 %v1528, %v2014
      %v2087 = vadd.f32 %v1533, %v2019
      %v2088 = vadd.f32 %v1536, %v2022
      %v2089 = vld [vmem:[%s500 + $0x8] sm:$0xfe]
      %v2090 = vld [vmem:[%s500 + $0x10] sm:$0xff]
      %v2091 = vld [vmem:[%s500 + $0x18] sm:$0xff]
      %v2092 = vld [vmem:[%s500 + $0x20] sm:$0xff]
      %v2093 = vld [vmem:[%s500 + $0x28] sm:$0xff]
      %v2094 = vld [vmem:[%s500 + $0x30] sm:$0xff]
      %v2095 = vld [vmem:[%s500 + $0x38] sm:$0xff]
      %v2096 = vld [vmem:[%s500 + $0x40] sm:$0xff]
      %v2097 = vld [vmem:[%s500 + $0x48] sm:$0xff]
      %v2098 = vld [vmem:[%s500 + $0x50] sm:$0xff]
      %v2099 = vld [vmem:[%s500 + $0x58] sm:$0xff]
      %v2100 = vld [vmem:[%s500 + $0x60] sm:$0xff]
      %v2101 = vld [vmem:[%s500 + $0x68] sm:$0xff]
      %v2102 = vld [vmem:[%s500 + $0x70] sm:$0xff]
      %v2103 = vld [vmem:[%s500 + $0x78] sm:$0xff]
      %v2104 = vld [vmem:[%s500 + $0x80] sm:$0xff]
      %v2105 = vld [vmem:[%s500 + $0x88] sm:$0xff]
      %v2106 = vld [vmem:[%s500 + $0x90] sm:$0xff]
      %v2107 = vld [vmem:[%s500 + $0x98] sm:$0xff]
      %v2108 = vld [vmem:[%s500 + $0xa0] sm:$0xff]
      %v2109 = vld [vmem:[%s500 + $0xa8] sm:$0xff]
      %v2110 = vld [vmem:[%s500 + $0xb0] sm:$0xff]
      %v2111 = vld [vmem:[%s500 + $0xb8] sm:$0xff]
      %v2112 = vld [vmem:[%s500 + $0xc0] sm:$0xff]
      %v2113 = vld [vmem:[%s500 + $0xc8] sm:$0xff]
      %v2114 = vld [vmem:[%s500 + $0xd0] sm:$0xff]
      %v2115 = vld [vmem:[%s500 + $0xd8] sm:$0xff]
      %v2116 = vld [vmem:[%s500 + $0xe0] sm:$0xff]
      %v2117 = vld [vmem:[%s500 + $0xe8] sm:$0xff]
      %v2118 = vld [vmem:[%s500 + $0xf0] sm:$0xff]
      %v2119 = vld [vmem:[%s500 + $0xf8] sm:$0xff]
      %v2120 = vld [vmem:[%s500 + $0x100] sm:$0xff]
      %v2121 = vld [vmem:[%s500 + $0x108] sm:$0x1]
      %s2122 = scalar_lea.vmem %s1, 192
      %v2123 = vld [vmem:[%s2122] sm:$0xf]
      %v2124 = vld [vmem:[%s2122 + $0x4] sm:$0xf]
      %v2125 = vld [vmem:[%s2122 + $0x8] sm:$0xf]
      %v2126 = vld [vmem:[%s2122 + $0xc] sm:$0xf]
      %v2127 = vld [vmem:[%s2122 + $0x10] sm:$0xf]
      %v2128 = vld [vmem:[%s2122 + $0x14] sm:$0xf]
      %v2129 = vld [vmem:[%s2122 + $0x18] sm:$0xf]
      %v2130 = vld [vmem:[%s2122 + $0x1c] sm:$0xf]
      %v2131 = vld [vmem:[%s2122 + $0x20] sm:$0xf]
      %v2132 = vld [vmem:[%s2122 + $0x24] sm:$0xf]
      %v2133 = vld [vmem:[%s2122 + $0x28] sm:$0xf]
      %v2134 = vld [vmem:[%s2122 + $0x2c] sm:$0xf]
      %v2135 = vld [vmem:[%s2122 + $0x30] sm:$0xf]
      %v2136 = vld [vmem:[%s2122 + $0x34] sm:$0xf]
      %v2137 = vld [vmem:[%s2122 + $0x38] sm:$0xf]
      %v2138 = vld [vmem:[%s2122 + $0x3c] sm:$0xf]
      %v2172 = vrot.slane %v2089, 1
      %v2173 = vrot.slane %v2090, 1
      %v2174 = vsel %vm1590, %v2172, %v2173
      %v2175 = vrot.slane %v2091, 1
      %v2176 = vsel %vm1590, %v2173, %v2175
      %v2177 = vrot.slane %v2092, 1
      %v2178 = vsel %vm1590, %v2175, %v2177
      %v2179 = vrot.slane %v2093, 1
      %v2180 = vsel %vm1590, %v2177, %v2179
      %v2181 = vrot.slane %v2094, 1
      %v2182 = vsel %vm1590, %v2179, %v2181
      %v2183 = vrot.slane %v2095, 1
      %v2184 = vsel %vm1590, %v2181, %v2183
      %v2185 = vrot.slane %v2096, 1
      %v2186 = vsel %vm1590, %v2183, %v2185
      %v2187 = vrot.slane %v2097, 1
      %v2188 = vsel %vm1590, %v2185, %v2187
      %v2189 = vrot.slane %v2098, 1
      %v2190 = vsel %vm1590, %v2187, %v2189
      %v2191 = vrot.slane %v2099, 1
      %v2192 = vsel %vm1590, %v2189, %v2191
      %v2193 = vrot.slane %v2100, 1
      %v2194 = vsel %vm1590, %v2191, %v2193
      %v2195 = vrot.slane %v2101, 1
      %v2196 = vsel %vm1590, %v2193, %v2195
      %v2197 = vrot.slane %v2102, 1
      %v2198 = vsel %vm1590, %v2195, %v2197
      %v2199 = vrot.slane %v2103, 1
      %v2200 = vsel %vm1590, %v2197, %v2199
      %v2201 = vrot.slane %v2104, 1
      %v2202 = vsel %vm1590, %v2199, %v2201
      %v2203 = vrot.slane %v2105, 1
      %v2204 = vsel %vm1590, %v2201, %v2203
      %v2205 = vrot.slane %v2106, 1
      %v2206 = vsel %vm1590, %v2203, %v2205
      %v2207 = vrot.slane %v2107, 1
      %v2208 = vsel %vm1590, %v2205, %v2207
      %v2209 = vrot.slane %v2108, 1
      %v2210 = vsel %vm1590, %v2207, %v2209
      %v2211 = vrot.slane %v2109, 1
      %v2212 = vsel %vm1590, %v2209, %v2211
      %v2213 = vrot.slane %v2110, 1
      %v2214 = vsel %vm1590, %v2211, %v2213
      %v2215 = vrot.slane %v2111, 1
      %v2216 = vsel %vm1590, %v2213, %v2215
      %v2217 = vrot.slane %v2112, 1
      %v2218 = vsel %vm1590, %v2215, %v2217
      %v2219 = vrot.slane %v2113, 1
      %v2220 = vsel %vm1590, %v2217, %v2219
      %v2221 = vrot.slane %v2114, 1
      %v2222 = vsel %vm1590, %v2219, %v2221
      %v2223 = vrot.slane %v2115, 1
      %v2224 = vsel %vm1590, %v2221, %v2223
      %v2225 = vrot.slane %v2116, 1
      %v2226 = vsel %vm1590, %v2223, %v2225
      %v2227 = vrot.slane %v2117, 1
      %v2228 = vsel %vm1590, %v2225, %v2227
      %v2229 = vrot.slane %v2118, 1
      %v2230 = vsel %vm1590, %v2227, %v2229
      %v2231 = vrot.slane %v2119, 1
      %v2232 = vsel %vm1590, %v2229, %v2231
      %v2233 = vrot.slane %v2120, 1
      %v2234 = vsel %vm1590, %v2231, %v2233
      %v2235 = vrot.slane %v2121, 1
      %v2236 = vsel %vm1590, %v2233, %v2235
      %v2285 = vunpack.c.l.b16 %v2123
      %v2286 = vunpack.c.l.b16 %v2124
      %v2287 = vunpack.c.l.b16 %v2125
      %v2288 = vunpack.c.l.b16 %v2126
      %v2289 = vunpack.c.l.b16 %v2127
      %v2290 = vunpack.c.l.b16 %v2128
      %v2291 = vunpack.c.l.b16 %v2129
      %v2292 = vunpack.c.l.b16 %v2130
      %v2293 = vunpack.c.l.b16 %v2131
      %v2294 = vunpack.c.l.b16 %v2132
      %v2295 = vunpack.c.l.b16 %v2133
      %v2296 = vunpack.c.l.b16 %v2134
      %v2297 = vunpack.c.l.b16 %v2135
      %v2298 = vunpack.c.l.b16 %v2136
      %v2299 = vunpack.c.l.b16 %v2137
      %v2300 = vunpack.c.l.b16 %v2138
      %v2301 = vpack.c.b16 %v2286, %v2285
      %v2302 = vpack.c.b16 %v2288, %v2287
      %v2303 = vpack.c.b16 %v2290, %v2289
      %v2304 = vpack.c.b16 %v2292, %v2291
      %v2305 = vpack.c.b16 %v2294, %v2293
      %v2306 = vpack.c.b16 %v2296, %v2295
      %v2307 = vpack.c.b16 %v2298, %v2297
      %v2308 = vpack.c.b16 %v2300, %v2299
      %2317 = vmatprep.subr.bf16.mxu0 0
      %2318 = vmatpush1.bf16.msra.mxu0 %v2301
      %2319 = vmatprep.subr.bf16.mxu0 0
      %2320 = vmatpush1.bf16.msra.mxu0 %v2302
      %2321 = vmatprep.subr.bf16.mxu0 0
      %2322 = vmatpush1.bf16.msra.mxu0 %v2303
      %2323 = vmatprep.subr.bf16.mxu0 0
      %2324 = vmatpush1.bf16.msra.mxu0 %v2304
      %2325 = vmatprep.subr.bf16.mxu0 0
      %2326 = vmatpush1.bf16.msra.mxu0 %v2305
      %2327 = vmatprep.subr.bf16.mxu0 0
      %2328 = vmatpush1.bf16.msra.mxu0 %v2306
      %2329 = vmatprep.subr.bf16.mxu0 0
      %2330 = vmatpush1.bf16.msra.mxu0 %v2307
      %2331 = vmatprep.subr.bf16.mxu0 0
      %2332 = vmatpush1.bf16.msra.mxu0 %v2308
      %2333 = vmatprep.subr.bf16.mxu0 0
      %2334 = vmatpush1.bf16.msra.mxu0 0
      %2335 = vmatprep.subr.bf16.mxu0 0
      %2336 = vmatpush1.bf16.msra.mxu0 0
      %2337 = vmatprep.subr.bf16.mxu0 0
      %2338 = vmatpush1.bf16.msra.mxu0 0
      %2339 = vmatprep.subr.bf16.mxu0 0
      %2340 = vmatpush1.bf16.msra.mxu0 0
      %2341 = vmatprep.subr.bf16.mxu0 0
      %2342 = vmatpush1.bf16.msra.mxu0 0
      %2343 = vmatprep.subr.bf16.mxu0 0
      %2344 = vmatpush1.bf16.msra.mxu0 0
      %2345 = vmatprep.subr.bf16.mxu0 0
      %2346 = vmatpush1.bf16.msra.mxu0 0
      %2347 = vmatprep.subr.bf16.mxu0 0
      %2348 = vmatpush1.bf16.msra.mxu0 0
      %2349 = vmatprep.mubr.bf16.mxu0 0
      %2350 = vmatmul.mubr.bf16.gmra.mrb[0].mxu0 %v2174
      %v2351 = vpop.f32.mrb[0].mxu0
      %v2352 = vadd.f32 0.0, %v2351
      %v2353 = vpop.f32.mrb[0].mxu0
      %v2354 = vpop.f32.mrb[0].mxu0
      %v2355 = vadd.f32 0.0, %v2354
      %v2356 = vpop.f32.mrb[0].mxu0
      %2357 = vmatprep.mubr.bf16.mxu0 0
      %2358 = vmatmul.mubr.bf16.gmra.mrb[0].mxu0 %v2176
      %v2359 = vpop.f32.mrb[0].mxu0
      %v2360 = vadd.f32 0.0, %v2359
      %v2361 = vpop.f32.mrb[0].mxu0
      %v2362 = vpop.f32.mrb[0].mxu0
      %v2363 = vadd.f32 0.0, %v2362
      %v2364 = vpop.f32.mrb[0].mxu0
      %2365 = vmatprep.mubr.bf16.mxu0 0
      %2366 = vmatmul.mubr.bf16.gmra.mrb[0].mxu0 %v2178
      %v2367 = vpop.f32.mrb[0].mxu0
      %v2368 = vadd.f32 0.0, %v2367
      %v2369 = vpop.f32.mrb[0].mxu0
      %v2370 = vpop.f32.mrb[0].mxu0
      %v2371 = vadd.f32 0.0, %v2370
      %v2372 = vpop.f32.mrb[0].mxu0
      %2373 = vmatprep.mubr.bf16.mxu0 0
      %2374 = vmatmul.mubr.bf16.gmra.mrb[0].mxu0 %v2180
      %v2375 = vpop.f32.mrb[0].mxu0
      %v2376 = vadd.f32 0.0, %v2375
      %v2377 = vpop.f32.mrb[0].mxu0
      %v2378 = vpop.f32.mrb[0].mxu0
      %v2379 = vadd.f32 0.0, %v2378
      %v2380 = vpop.f32.mrb[0].mxu0
      %2381 = vmatprep.mubr.bf16.mxu0 0
      %2382 = vmatmul.mubr.bf16.gmra.mrb[0].mxu0 %v2182
      %v2383 = vpop.f32.mrb[0].mxu0
      %v2384 = vadd.f32 0.0, %v2383
      %v2385 = vpop.f32.mrb[0].mxu0
      %v2386 = vpop.f32.mrb[0].mxu0
      %v2387 = vadd.f32 0.0, %v2386
      %v2388 = vpop.f32.mrb[0].mxu0
      %2389 = vmatprep.mubr.bf16.mxu0 0
      %2390 = vmatmul.mubr.bf16.gmra.mrb[0].mxu0 %v2184
      %v2391 = vpop.f32.mrb[0].mxu0
      %v2392 = vadd.f32 0.0, %v2391
      %v2393 = vpop.f32.mrb[0].mxu0
      %v2394 = vpop.f32.mrb[0].mxu0
      %v2395 = vadd.f32 0.0, %v2394
      %v2396 = vpop.f32.mrb[0].mxu0
      %2397 = vmatprep.mubr.bf16.mxu0 0
      %2398 = vmatmul.mubr.bf16.gmra.mrb[0].mxu0 %v2186
      %v2399 = vpop.f32.mrb[0].mxu0
      %v2400 = vadd.f32 0.0, %v2399
      %v2401 = vpop.f32.mrb[0].mxu0
      %v2402 = vpop.f32.mrb[0].mxu0
      %v2403 = vadd.f32 0.0, %v2402
      %v2404 = vpop.f32.mrb[0].mxu0
      %2405 = vmatprep.mubr.bf16.mxu0 0
      %2406 = vmatmul.mubr.bf16.gmra.mrb[0].mxu0 %v2188
      %v2407 = vpop.f32.mrb[0].mxu0
      %v2408 = vadd.f32 0.0, %v2407
      %v2409 = vpop.f32.mrb[0].mxu0
      %v2410 = vpop.f32.mrb[0].mxu0
      %v2411 = vadd.f32 0.0, %v2410
      %v2412 = vpop.f32.mrb[0].mxu0
      %2413 = vmatprep.mubr.bf16.mxu0 0
      %2414 = vmatmul.mubr.bf16.gmra.mrb[0].mxu0 %v2190
      %v2415 = vpop.f32.mrb[0].mxu0
      %v2416 = vadd.f32 0.0, %v2415
      %v2417 = vpop.f32.mrb[0].mxu0
      %v2418 = vpop.f32.mrb[0].mxu0
      %v2419 = vadd.f32 0.0, %v2418
      %v2420 = vpop.f32.mrb[0].mxu0
      %2421 = vmatprep.mubr.bf16.mxu0 0
      %2422 = vmatmul.mubr.bf16.gmra.mrb[0].mxu0 %v2192
      %v2423 = vpop.f32.mrb[0].mxu0
      %v2424 = vadd.f32 0.0, %v2423
      %v2425 = vpop.f32.mrb[0].mxu0
      %v2426 = vpop.f32.mrb[0].mxu0
      %v2427 = vadd.f32 0.0, %v2426
      %v2428 = vpop.f32.mrb[0].mxu0
      %2429 = vmatprep.mubr.bf16.mxu0 0
      %2430 = vmatmul.mubr.bf16.gmra.mrb[0].mxu0 %v2194
      %v2431 = vpop.f32.mrb[0].mxu0
      %v2432 = vadd.f32 0.0, %v2431
      %v2433 = vpop.f32.mrb[0].mxu0
      %v2434 = vpop.f32.mrb[0].mxu0
      %v2435 = vadd.f32 0.0, %v2434
      %v2436 = vpop.f32.mrb[0].mxu0
      %2437 = vmatprep.mubr.bf16.mxu0 0
      %2438 = vmatmul.mubr.bf16.gmra.mrb[0].mxu0 %v2196
      %v2439 = vpop.f32.mrb[0].mxu0
      %v2440 = vadd.f32 0.0, %v2439
      %v2441 = vpop.f32.mrb[0].mxu0
      %v2442 = vpop.f32.mrb[0].mxu0
      %v2443 = vadd.f32 0.0, %v2442
      %v2444 = vpop.f32.mrb[0].mxu0
      %2445 = vmatprep.mubr.bf16.mxu0 0
      %2446 = vmatmul.mubr.bf16.gmra.mrb[0].mxu0 %v2198
      %v2447 = vpop.f32.mrb[0].mxu0
      %v2448 = vadd.f32 0.0, %v2447
      %v2449 = vpop.f32.mrb[0].mxu0
      %v2450 = vpop.f32.mrb[0].mxu0
      %v2451 = vadd.f32 0.0, %v2450
      %v2452 = vpop.f32.mrb[0].mxu0
      %2453 = vmatprep.mubr.bf16.mxu0 0
      %2454 = vmatmul.mubr.bf16.gmra.mrb[0].mxu0 %v2200
      %v2455 = vpop.f32.mrb[0].mxu0
      %v2456 = vadd.f32 0.0, %v2455
      %v2457 = vpop.f32.mrb[0].mxu0
      %v2458 = vpop.f32.mrb[0].mxu0
      %v2459 = vadd.f32 0.0, %v2458
      %v2460 = vpop.f32.mrb[0].mxu0
      %2461 = vmatprep.mubr.bf16.mxu0 0
      %2462 = vmatmul.mubr.bf16.gmra.mrb[0].mxu0 %v2202
      %v2463 = vpop.f32.mrb[0].mxu0
      %v2464 = vadd.f32 0.0, %v2463
      %v2465 = vpop.f32.mrb[0].mxu0
      %v2466 = vpop.f32.mrb[0].mxu0
      %v2467 = vadd.f32 0.0, %v2466
      %v2468 = vpop.f32.mrb[0].mxu0
      %2469 = vmatprep.mubr.bf16.mxu0 0
      %2470 = vmatmul.mubr.bf16.gmra.mrb[0].mxu0 %v2204
      %v2471 = vpop.f32.mrb[0].mxu0
      %v2472 = vadd.f32 0.0, %v2471
      %v2473 = vpop.f32.mrb[0].mxu0
      %v2474 = vpop.f32.mrb[0].mxu0
      %v2475 = vadd.f32 0.0, %v2474
      %v2476 = vpop.f32.mrb[0].mxu0
      %2477 = vmatprep.mubr.bf16.mxu0 0
      %2478 = vmatmul.mubr.bf16.gmra.mrb[0].mxu0 %v2206
      %v2479 = vpop.f32.mrb[0].mxu0
      %v2480 = vadd.f32 0.0, %v2479
      %v2481 = vpop.f32.mrb[0].mxu0
      %v2482 = vpop.f32.mrb[0].mxu0
      %v2483 = vadd.f32 0.0, %v2482
      %v2484 = vpop.f32.mrb[0].mxu0
      %2485 = vmatprep.mubr.bf16.mxu0 0
      %2486 = vmatmul.mubr.bf16.gmra.mrb[0].mxu0 %v2208
      %v2487 = vpop.f32.mrb[0].mxu0
      %v2488 = vadd.f32 0.0, %v2487
      %v2489 = vpop.f32.mrb[0].mxu0
      %v2490 = vpop.f32.mrb[0].mxu0
      %v2491 = vadd.f32 0.0, %v2490
      %v2492 = vpop.f32.mrb[0].mxu0
      %2493 = vmatprep.mubr.bf16.mxu0 0
      %2494 = vmatmul.mubr.bf16.gmra.mrb[0].mxu0 %v2210
      %v2495 = vpop.f32.mrb[0].mxu0
      %v2496 = vadd.f32 0.0, %v2495
      %v2497 = vpop.f32.mrb[0].mxu0
      %v2498 = vpop.f32.mrb[0].mxu0
      %v2499 = vadd.f32 0.0, %v2498
      %v2500 = vpop.f32.mrb[0].mxu0
      %2501 = vmatprep.mubr.bf16.mxu0 0
      %2502 = vmatmul.mubr.bf16.gmra.mrb[0].mxu0 %v2212
      %v2503 = vpop.f32.mrb[0].mxu0
      %v2504 = vadd.f32 0.0, %v2503
      %v2505 = vpop.f32.mrb[0].mxu0
      %v2506 = vpop.f32.mrb[0].mxu0
      %v2507 = vadd.f32 0.0, %v2506
      %v2508 = vpop.f32.mrb[0].mxu0
      %2509 = vmatprep.mubr.bf16.mxu0 0
      %2510 = vmatmul.mubr.bf16.gmra.mrb[0].mxu0 %v2214
      %v2511 = vpop.f32.mrb[0].mxu0
      %v2512 = vadd.f32 0.0, %v2511
      %v2513 = vpop.f32.mrb[0].mxu0
      %v2514 = vpop.f32.mrb[0].mxu0
      %v2515 = vadd.f32 0.0, %v2514
      %v2516 = vpop.f32.mrb[0].mxu0
      %2517 = vmatprep.mubr.bf16.mxu0 0
      %2518 = vmatmul.mubr.bf16.gmra.mrb[0].mxu0 %v2216
      %v2519 = vpop.f32.mrb[0].mxu0
      %v2520 = vadd.f32 0.0, %v2519
      %v2521 = vpop.f32.mrb[0].mxu0
      %v2522 = vpop.f32.mrb[0].mxu0
      %v2523 = vadd.f32 0.0, %v2522
      %v2524 = vpop.f32.mrb[0].mxu0
      %2525 = vmatprep.mubr.bf16.mxu0 0
      %2526 = vmatmul.mubr.bf16.gmra.mrb[0].mxu0 %v2218
      %v2527 = vpop.f32.mrb[0].mxu0
      %v2528 = vadd.f32 0.0, %v2527
      %v2529 = vpop.f32.mrb[0].mxu0
      %v2530 = vpop.f32.mrb[0].mxu0
      %v2531 = vadd.f32 0.0, %v2530
      %v2532 = vpop.f32.mrb[0].mxu0
      %2533 = vmatprep.mubr.bf16.mxu0 0
      %2534 = vmatmul.mubr.bf16.gmra.mrb[0].mxu0 %v2220
      %v2535 = vpop.f32.mrb[0].mxu0
      %v2536 = vadd.f32 0.0, %v2535
      %v2537 = vpop.f32.mrb[0].mxu0
      %v2538 = vpop.f32.mrb[0].mxu0
      %v2539 = vadd.f32 0.0, %v2538
      %v2540 = vpop.f32.mrb[0].mxu0
      %2541 = vmatprep.mubr.bf16.mxu0 0
      %2542 = vmatmul.mubr.bf16.gmra.mrb[0].mxu0 %v2222
      %v2543 = vpop.f32.mrb[0].mxu0
      %v2544 = vadd.f32 0.0, %v2543
      %v2545 = vpop.f32.mrb[0].mxu0
      %v2546 = vpop.f32.mrb[0].mxu0
      %v2547 = vadd.f32 0.0, %v2546
      %v2548 = vpop.f32.mrb[0].mxu0
      %2549 = vmatprep.mubr.bf16.mxu0 0
      %2550 = vmatmul.mubr.bf16.gmra.mrb[0].mxu0 %v2224
      %v2551 = vpop.f32.mrb[0].mxu0
      %v2552 = vadd.f32 0.0, %v2551
      %v2553 = vpop.f32.mrb[0].mxu0
      %v2554 = vpop.f32.mrb[0].mxu0
      %v2555 = vadd.f32 0.0, %v2554
      %v2556 = vpop.f32.mrb[0].mxu0
      %2557 = vmatprep.mubr.bf16.mxu0 0
      %2558 = vmatmul.mubr.bf16.gmra.mrb[0].mxu0 %v2226
      %v2559 = vpop.f32.mrb[0].mxu0
      %v2560 = vadd.f32 0.0, %v2559
      %v2561 = vpop.f32.mrb[0].mxu0
      %v2562 = vpop.f32.mrb[0].mxu0
      %v2563 = vadd.f32 0.0, %v2562
      %v2564 = vpop.f32.mrb[0].mxu0
      %2565 = vmatprep.mubr.bf16.mxu0 0
      %2566 = vmatmul.mubr.bf16.gmra.mrb[0].mxu0 %v2228
      %v2567 = vpop.f32.mrb[0].mxu0
      %v2568 = vadd.f32 0.0, %v2567
      %v2569 = vpop.f32.mrb[0].mxu0
      %v2570 = vpop.f32.mrb[0].mxu0
      %v2571 = vadd.f32 0.0, %v2570
      %v2572 = vpop.f32.mrb[0].mxu0
      %2573 = vmatprep.mubr.bf16.mxu0 0
      %2574 = vmatmul.mubr.bf16.gmra.mrb[0].mxu0 %v2230
      %v2575 = vpop.f32.mrb[0].mxu0
      %v2576 = vadd.f32 0.0, %v2575
      %v2577 = vpop.f32.mrb[0].mxu0
      %v2578 = vpop.f32.mrb[0].mxu0
      %v2579 = vadd.f32 0.0, %v2578
      %v2580 = vpop.f32.mrb[0].mxu0
      %2581 = vmatprep.mubr.bf16.mxu0 0
      %2582 = vmatmul.mubr.bf16.gmra.mrb[0].mxu0 %v2232
      %v2583 = vpop.f32.mrb[0].mxu0
      %v2584 = vadd.f32 0.0, %v2583
      %v2585 = vpop.f32.mrb[0].mxu0
      %v2586 = vpop.f32.mrb[0].mxu0
      %v2587 = vadd.f32 0.0, %v2586
      %v2588 = vpop.f32.mrb[0].mxu0
      %2589 = vmatprep.mubr.bf16.mxu0 0
      %2590 = vmatmul.mubr.bf16.gmra.mrb[0].mxu0 %v2234
      %v2591 = vpop.f32.mrb[0].mxu0
      %v2592 = vadd.f32 0.0, %v2591
      %v2593 = vpop.f32.mrb[0].mxu0
      %v2594 = vpop.f32.mrb[0].mxu0
      %v2595 = vadd.f32 0.0, %v2594
      %v2596 = vpop.f32.mrb[0].mxu0
      %2597 = vmatprep.mubr.bf16.mxu0 0
      %2598 = vmatmul.mubr.bf16.gmra.mrb[0].mxu0 %v2236
      %v2599 = vpop.f32.mrb[0].mxu0
      %v2600 = vadd.f32 0.0, %v2599
      %v2601 = vpop.f32.mrb[0].mxu0
      %v2602 = vpop.f32.mrb[0].mxu0
      %v2603 = vadd.f32 0.0, %v2602
      %v2604 = vpop.f32.mrb[0].mxu0
      %2605 = vdwg.mxu0
      %v2606 = vadd.f32 %v2025, %v2352
      %v2607 = vadd.f32 %v2026, %v2355
      %v2608 = vadd.f32 %v2027, %v2360
      %v2609 = vadd.f32 %v2028, %v2363
      %v2610 = vadd.f32 %v2029, %v2368
      %v2611 = vadd.f32 %v2030, %v2371
      %v2612 = vadd.f32 %v2031, %v2376
      %v2613 = vadd.f32 %v2032, %v2379
      %v2614 = vadd.f32 %v2033, %v2384
      %v2615 = vadd.f32 %v2034, %v2387
      %v2616 = vadd.f32 %v2035, %v2392
      %v2617 = vadd.f32 %v2036, %v2395
      %v2618 = vadd.f32 %v2037, %v2400
      %v2619 = vadd.f32 %v2038, %v2403
      %v2620 = vadd.f32 %v2039, %v2408
      %v2621 = vadd.f32 %v2040, %v2411
      %v2622 = vadd.f32 %v2041, %v2416
      %v2623 = vadd.f32 %v2042, %v2419
      %v2624 = vadd.f32 %v2043, %v2424
      %v2625 = vadd.f32 %v2044, %v2427
      %v2626 = vadd.f32 %v2045, %v2432
      %v2627 = vadd.f32 %v2046, %v2435
      %v2628 = vadd.f32 %v2047, %v2440
      %v2629 = vadd.f32 %v2048, %v2443
      %v2630 = vadd.f32 %v2049, %v2448
      %v2631 = vadd.f32 %v2050, %v2451
      %v2632 = vadd.f32 %v2051, %v2456
      %v2633 = vadd.f32 %v2052, %v2459
      %v2634 = vadd.f32 %v2053, %v2464
      %v2635 = vadd.f32 %v2054, %v2467
      %v2636 = vadd.f32 %v2055, %v2472
      %v2637 = vadd.f32 %v2056, %v2475
      %v2638 = vadd.f32 %v2057, %v2480
      %v2639 = vadd.f32 %v2058, %v2483
      %v2640 = vadd.f32 %v2059, %v2488
      %v2641 = vadd.f32 %v2060, %v2491
      %v2642 = vadd.f32 %v2061, %v2496
      %v2643 = vadd.f32 %v2062, %v2499
      %v2644 = vadd.f32 %v2063, %v2504
      %v2645 = vadd.f32 %v2064, %v2507
      %v2646 = vadd.f32 %v2065, %v2512
      %v2647 = vadd.f32 %v2066, %v2515
      %v2648 = vadd.f32 %v2067, %v2520
      %v2649 = vadd.f32 %v2068, %v2523
      %v2650 = vadd.f32 %v2069, %v2528
      %v2651 = vadd.f32 %v2070, %v2531
      %v2652 = vadd.f32 %v2071, %v2536
      %v2653 = vadd.f32 %v2072, %v2539
      %v2654 = vadd.f32 %v2073, %v2544
      %v2655 = vadd.f32 %v2074, %v2547
      %v2656 = vadd.f32 %v2075, %v2552
      %v2657 = vadd.f32 %v2076, %v2555
      %v2658 = vadd.f32 %v2077, %v2560
      %v2659 = vadd.f32 %v2078, %v2563
      %v2660 = vadd.f32 %v2079, %v2568
      %v2661 = vadd.f32 %v2080, %v2571
      %v2662 = vadd.f32 %v2081, %v2576
      %v2663 = vadd.f32 %v2082, %v2579
      %v2664 = vadd.f32 %v2083, %v2584
      %v2665 = vadd.f32 %v2084, %v2587
      %v2666 = vadd.f32 %v2085, %v2592
      %v2667 = vadd.f32 %v2086, %v2595
      %v2668 = vadd.f32 %v2087, %v2600
      %v2669 = vadd.f32 %v2088, %v2603
      %v2670 = vld [vmem:[%s500 + $0x108] sm:$0x3]
      %s2671 = scalar_lea.vmem %s1, 256
      %v2672 = vld [vmem:[%s2671] sm:$0xf]
      %v2673 = vld [vmem:[%s2671 + $0x4] sm:$0xf]
      %v2674 = vld [vmem:[%s2671 + $0x8] sm:$0xf]
      %v2675 = vld [vmem:[%s2671 + $0xc] sm:$0xf]
      %v2676 = vld [vmem:[%s2671 + $0x10] sm:$0xf]
      %v2677 = vld [vmem:[%s2671 + $0x14] sm:$0xf]
      %v2678 = vld [vmem:[%s2671 + $0x18] sm:$0xf]
      %v2679 = vld [vmem:[%s2671 + $0x1c] sm:$0xf]
      %v2680 = vld [vmem:[%s2671 + $0x20] sm:$0xf]
      %v2681 = vld [vmem:[%s2671 + $0x24] sm:$0xf]
      %v2682 = vld [vmem:[%s2671 + $0x28] sm:$0xf]
      %v2683 = vld [vmem:[%s2671 + $0x2c] sm:$0xf]
      %v2684 = vld [vmem:[%s2671 + $0x30] sm:$0xf]
      %v2685 = vld [vmem:[%s2671 + $0x34] sm:$0xf]
      %v2686 = vld [vmem:[%s2671 + $0x38] sm:$0xf]
      %v2687 = vld [vmem:[%s2671 + $0x3c] sm:$0xf]
      %vm2688 = vsmask.f32 6400
      %v2690 = vshrl.u32 %v2089, 16
      %v2692 = vrot.slane %v2690, 1
      %v2693 = vshll.u32 %v2089, 16
      %v2695 = vrot.slane %v2693, 2
      %v2696 = vor.u32 %v2692, %v2695
      %v2698 = vshrl.u32 %v2090, 16
      %v2700 = vrot.slane %v2698, 1
      %v2701 = vshll.u32 %v2090, 16
      %v2703 = vrot.slane %v2701, 2
      %v2704 = vor.u32 %v2700, %v2703
      %v2705 = vsel %vm2688, %v2696, %v2704
      %v2707 = vshrl.u32 %v2091, 16
      %v2709 = vrot.slane %v2707, 1
      %v2710 = vshll.u32 %v2091, 16
      %v2712 = vrot.slane %v2710, 2
      %v2713 = vor.u32 %v2709, %v2712
      %v2714 = vsel %vm2688, %v2704, %v2713
      %v2716 = vshrl.u32 %v2092, 16
      %v2718 = vrot.slane %v2716, 1
      %v2719 = vshll.u32 %v2092, 16
      %v2721 = vrot.slane %v2719, 2
      %v2722 = vor.u32 %v2718, %v2721
      %v2723 = vsel %vm2688, %v2713, %v2722
      %v2725 = vshrl.u32 %v2093, 16
      %v2727 = vrot.slane %v2725, 1
      %v2728 = vshll.u32 %v2093, 16
      %v2730 = vrot.slane %v2728, 2
      %v2731 = vor.u32 %v2727, %v2730
      %v2732 = vsel %vm2688, %v2722, %v2731
      %v2734 = vshrl.u32 %v2094, 16
      %v2736 = vrot.slane %v2734, 1
      %v2737 = vshll.u32 %v2094, 16
      %v2739 = vrot.slane %v2737, 2
      %v2740 = vor.u32 %v2736, %v2739
      %v2741 = vsel %vm2688, %v2731, %v2740
      %v2743 = vshrl.u32 %v2095, 16
      %v2745 = vrot.slane %v2743, 1
      %v2746 = vshll.u32 %v2095, 16
      %v2748 = vrot.slane %v2746, 2
      %v2749 = vor.u32 %v2745, %v2748
      %v2750 = vsel %vm2688, %v2740, %v2749
      %v2752 = vshrl.u32 %v2096, 16
      %v2754 = vrot.slane %v2752, 1
      %v2755 = vshll.u32 %v2096, 16
      %v2757 = vrot.slane %v2755, 2
      %v2758 = vor.u32 %v2754, %v2757
      %v2759 = vsel %vm2688, %v2749, %v2758
      %v2761 = vshrl.u32 %v2097, 16
      %v2763 = vrot.slane %v2761, 1
      %v2764 = vshll.u32 %v2097, 16
      %v2766 = vrot.slane %v2764, 2
      %v2767 = vor.u32 %v2763, %v2766
      %v2768 = vsel %vm2688, %v2758, %v2767
      %v2770 = vshrl.u32 %v2098, 16
      %v2772 = vrot.slane %v2770, 1
      %v2773 = vshll.u32 %v2098, 16
      %v2775 = vrot.slane %v2773, 2
      %v2776 = vor.u32 %v2772, %v2775
      %v2777 = vsel %vm2688, %v2767, %v2776
      %v2779 = vshrl.u32 %v2099, 16
      %v2781 = vrot.slane %v2779, 1
      %v2782 = vshll.u32 %v2099, 16
      %v2784 = vrot.slane %v2782, 2
      %v2785 = vor.u32 %v2781, %v2784
      %v2786 = vsel %vm2688, %v2776, %v2785
      %v2788 = vshrl.u32 %v2100, 16
      %v2790 = vrot.slane %v2788, 1
      %v2791 = vshll.u32 %v2100, 16
      %v2793 = vrot.slane %v2791, 2
      %v2794 = vor.u32 %v2790, %v2793
      %v2795 = vsel %vm2688, %v2785, %v2794
      %v2797 = vshrl.u32 %v2101, 16
      %v2799 = vrot.slane %v2797, 1
      %v2800 = vshll.u32 %v2101, 16
      %v2802 = vrot.slane %v2800, 2
      %v2803 = vor.u32 %v2799, %v2802
      %v2804 = vsel %vm2688, %v2794, %v2803
      %v2806 = vshrl.u32 %v2102, 16
      %v2808 = vrot.slane %v2806, 1
      %v2809 = vshll.u32 %v2102, 16
      %v2811 = vrot.slane %v2809, 2
      %v2812 = vor.u32 %v2808, %v2811
      %v2813 = vsel %vm2688, %v2803, %v2812
      %v2815 = vshrl.u32 %v2103, 16
      %v2817 = vrot.slane %v2815, 1
      %v2818 = vshll.u32 %v2103, 16
      %v2820 = vrot.slane %v2818, 2
      %v2821 = vor.u32 %v2817, %v2820
      %v2822 = vsel %vm2688, %v2812, %v2821
      %v2824 = vshrl.u32 %v2104, 16
      %v2826 = vrot.slane %v2824, 1
      %v2827 = vshll.u32 %v2104, 16
      %v2829 = vrot.slane %v2827, 2
      %v2830 = vor.u32 %v2826, %v2829
      %v2831 = vsel %vm2688, %v2821, %v2830
      %v2833 = vshrl.u32 %v2105, 16
      %v2835 = vrot.slane %v2833, 1
      %v2836 = vshll.u32 %v2105, 16
      %v2838 = vrot.slane %v2836, 2
      %v2839 = vor.u32 %v2835, %v2838
      %v2840 = vsel %vm2688, %v2830, %v2839
      %v2842 = vshrl.u32 %v2106, 16
      %v2844 = vrot.slane %v2842, 1
      %v2845 = vshll.u32 %v2106, 16
      %v2847 = vrot.slane %v2845, 2
      %v2848 = vor.u32 %v2844, %v2847
      %v2849 = vsel %vm2688, %v2839, %v2848
      %v2851 = vshrl.u32 %v2107, 16
      %v2853 = vrot.slane %v2851, 1
      %v2854 = vshll.u32 %v2107, 16
      %v2856 = vrot.slane %v2854, 2
      %v2857 = vor.u32 %v2853, %v2856
      %v2858 = vsel %vm2688, %v2848, %v2857
      %v2860 = vshrl.u32 %v2108, 16
      %v2862 = vrot.slane %v2860, 1
      %v2863 = vshll.u32 %v2108, 16
      %v2865 = vrot.slane %v2863, 2
      %v2866 = vor.u32 %v2862, %v2865
      %v2867 = vsel %vm2688, %v2857, %v2866
      %v2869 = vshrl.u32 %v2109, 16
      %v2871 = vrot.slane %v2869, 1
      %v2872 = vshll.u32 %v2109, 16
      %v2874 = vrot.slane %v2872, 2
      %v2875 = vor.u32 %v2871, %v2874
      %v2876 = vsel %vm2688, %v2866, %v2875
      %v2878 = vshrl.u32 %v2110, 16
      %v2880 = vrot.slane %v2878, 1
      %v2881 = vshll.u32 %v2110, 16
      %v2883 = vrot.slane %v2881, 2
      %v2884 = vor.u32 %v2880, %v2883
      %v2885 = vsel %vm2688, %v2875, %v2884
      %v2887 = vshrl.u32 %v2111, 16
      %v2889 = vrot.slane %v2887, 1
      %v2890 = vshll.u32 %v2111, 16
      %v2892 = vrot.slane %v2890, 2
      %v2893 = vor.u32 %v2889, %v2892
      %v2894 = vsel %vm2688, %v2884, %v2893
      %v2896 = vshrl.u32 %v2112, 16
      %v2898 = vrot.slane %v2896, 1
      %v2899 = vshll.u32 %v2112, 16
      %v2901 = vrot.slane %v2899, 2
      %v2902 = vor.u32 %v2898, %v2901
      %v2903 = vsel %vm2688, %v2893, %v2902
      %v2905 = vshrl.u32 %v2113, 16
      %v2907 = vrot.slane %v2905, 1
      %v2908 = vshll.u32 %v2113, 16
      %v2910 = vrot.slane %v2908, 2
      %v2911 = vor.u32 %v2907, %v2910
      %v2912 = vsel %vm2688, %v2902, %v2911
      %v2914 = vshrl.u32 %v2114, 16
      %v2916 = vrot.slane %v2914, 1
      %v2917 = vshll.u32 %v2114, 16
      %v2919 = vrot.slane %v2917, 2
      %v2920 = vor.u32 %v2916, %v2919
      %v2921 = vsel %vm2688, %v2911, %v2920
      %v2923 = vshrl.u32 %v2115, 16
      %v2925 = vrot.slane %v2923, 1
      %v2926 = vshll.u32 %v2115, 16
      %v2928 = vrot.slane %v2926, 2
      %v2929 = vor.u32 %v2925, %v2928
      %v2930 = vsel %vm2688, %v2920, %v2929
      %v2932 = vshrl.u32 %v2116, 16
      %v2934 = vrot.slane %v2932, 1
      %v2935 = vshll.u32 %v2116, 16
      %v2937 = vrot.slane %v2935, 2
      %v2938 = vor.u32 %v2934, %v2937
      %v2939 = vsel %vm2688, %v2929, %v2938
      %v2941 = vshrl.u32 %v2117, 16
      %v2943 = vrot.slane %v2941, 1
      %v2944 = vshll.u32 %v2117, 16
      %v2946 = vrot.slane %v2944, 2
      %v2947 = vor.u32 %v2943, %v2946
      %v2948 = vsel %vm2688, %v2938, %v2947
      %v2950 = vshrl.u32 %v2118, 16
      %v2952 = vrot.slane %v2950, 1
      %v2953 = vshll.u32 %v2118, 16
      %v2955 = vrot.slane %v2953, 2
      %v2956 = vor.u32 %v2952, %v2955
      %v2957 = vsel %vm2688, %v2947, %v2956
      %v2959 = vshrl.u32 %v2119, 16
      %v2961 = vrot.slane %v2959, 1
      %v2962 = vshll.u32 %v2119, 16
      %v2964 = vrot.slane %v2962, 2
      %v2965 = vor.u32 %v2961, %v2964
      %v2966 = vsel %vm2688, %v2956, %v2965
      %v2968 = vshrl.u32 %v2120, 16
      %v2970 = vrot.slane %v2968, 1
      %v2971 = vshll.u32 %v2120, 16
      %v2973 = vrot.slane %v2971, 2
      %v2974 = vor.u32 %v2970, %v2973
      %v2975 = vsel %vm2688, %v2965, %v2974
      %v2977 = vshrl.u32 %v2670, 16
      %v2979 = vrot.slane %v2977, 1
      %v2980 = vshll.u32 %v2670, 16
      %v2982 = vrot.slane %v2980, 2
      %v2983 = vor.u32 %v2979, %v2982
      %v2984 = vsel %vm2688, %v2974, %v2983
      %v3033 = vunpack.c.l.b16 %v2672
      %v3034 = vunpack.c.l.b16 %v2673
      %v3035 = vunpack.c.l.b16 %v2674
      %v3036 = vunpack.c.l.b16 %v2675
      %v3037 = vunpack.c.l.b16 %v2676
      %v3038 = vunpack.c.l.b16 %v2677
      %v3039 = vunpack.c.l.b16 %v2678
      %v3040 = vunpack.c.l.b16 %v2679
      %v3041 = vunpack.c.l.b16 %v2680
      %v3042 = vunpack.c.l.b16 %v2681
      %v3043 = vunpack.c.l.b16 %v2682
      %v3044 = vunpack.c.l.b16 %v2683
      %v3045 = vunpack.c.l.b16 %v2684
      %v3046 = vunpack.c.l.b16 %v2685
      %v3047 = vunpack.c.l.b16 %v2686
      %v3048 = vunpack.c.l.b16 %v2687
      %v3049 = vpack.c.b16 %v3034, %v3033
      %v3050 = vpack.c.b16 %v3036, %v3035
      %v3051 = vpack.c.b16 %v3038, %v3037
      %v3052 = vpack.c.b16 %v3040, %v3039
      %v3053 = vpack.c.b16 %v3042, %v3041
      %v3054 = vpack.c.b16 %v3044, %v3043
      %v3055 = vpack.c.b16 %v3046, %v3045
      %v3056 = vpack.c.b16 %v3048, %v3047
      %3065 = vmatprep.subr.bf16.mxu0 0
      %3066 = vmatpush1.bf16.msra.mxu0 %v3049
      %3067 = vmatprep.subr.bf16.mxu0 0
      %3068 = vmatpush1.bf16.msra.mxu0 %v3050
      %3069 = vmatprep.subr.bf16.mxu0 0
      %3070 = vmatpush1.bf16.msra.mxu0 %v3051
      %3071 = vmatprep.subr.bf16.mxu0 0
      %3072 = vmatpush1.bf16.msra.mxu0 %v3052
      %3073 = vmatprep.subr.bf16.mxu0 0
      %3074 = vmatpush1.bf16.msra.mxu0 %v3053
      %3075 = vmatprep.subr.bf16.mxu0 0
      %3076 = vmatpush1.bf16.msra.mxu0 %v3054
      %3077 = vmatprep.subr.bf16.mxu0 0
      %3078 = vmatpush1.bf16.msra.mxu0 %v3055
      %3079 = vmatprep.subr.bf16.mxu0 0
      %3080 = vmatpush1.bf16.msra.mxu0 %v3056
      %3081 = vmatprep.subr.bf16.mxu0 0
      %3082 = vmatpush1.bf16.msra.mxu0 0
      %3083 = vmatprep.subr.bf16.mxu0 0
      %3084 = vmatpush1.bf16.msra.mxu0 0
      %3085 = vmatprep.subr.bf16.mxu0 0
      %3086 = vmatpush1.bf16.msra.mxu0 0
      %3087 = vmatprep.subr.bf16.mxu0 0
      %3088 = vmatpush1.bf16.msra.mxu0 0
      %3089 = vmatprep.subr.bf16.mxu0 0
      %3090 = vmatpush1.bf16.msra.mxu0 0
      %3091 = vmatprep.subr.bf16.mxu0 0
      %3092 = vmatpush1.bf16.msra.mxu0 0
      %3093 = vmatprep.subr.bf16.mxu0 0
      %3094 = vmatpush1.bf16.msra.mxu0 0
      %3095 = vmatprep.subr.bf16.mxu0 0
      %3096 = vmatpush1.bf16.msra.mxu0 0
      %3097 = vmatprep.mubr.bf16.mxu0 0
      %3098 = vmatmul.mubr.bf16.gmra.mrb[0].mxu0 %v2705
      %v3099 = vpop.f32.mrb[0].mxu0
      %v3100 = vadd.f32 0.0, %v3099
      %v3101 = vpop.f32.mrb[0].mxu0
      %v3102 = vpop.f32.mrb[0].mxu0
      %v3103 = vadd.f32 0.0, %v3102
      %v3104 = vpop.f32.mrb[0].mxu0
      %3105 = vmatprep.mubr.bf16.mxu0 0
      %3106 = vmatmul.mubr.bf16.gmra.mrb[0].mxu0 %v2714
      %v3107 = vpop.f32.mrb[0].mxu0
      %v3108 = vadd.f32 0.0, %v3107
      %v3109 = vpop.f32.mrb[0].mxu0
      %v3110 = vpop.f32.mrb[0].mxu0
      %v3111 = vadd.f32 0.0, %v3110
      %v3112 = vpop.f32.mrb[0].mxu0
      %3113 = vmatprep.mubr.bf16.mxu0 0
      %3114 = vmatmul.mubr.bf16.gmra.mrb[0].mxu0 %v2723
      %v3115 = vpop.f32.mrb[0].mxu0
      %v3116 = vadd.f32 0.0, %v3115
      %v3117 = vpop.f32.mrb[0].mxu0
      %v3118 = vpop.f32.mrb[0].mxu0
      %v3119 = vadd.f32 0.0, %v3118
      %v3120 = vpop.f32.mrb[0].mxu0
      %3121 = vmatprep.mubr.bf16.mxu0 0
      %3122 = vmatmul.mubr.bf16.gmra.mrb[0].mxu0 %v2732
      %v3123 = vpop.f32.mrb[0].mxu0
      %v3124 = vadd.f32 0.0, %v3123
      %v3125 = vpop.f32.mrb[0].mxu0
      %v3126 = vpop.f32.mrb[0].mxu0
      %v3127 = vadd.f32 0.0, %v3126
      %v3128 = vpop.f32.mrb[0].mxu0
      %3129 = vmatprep.mubr.bf16.mxu0 0
      %3130 = vmatmul.mubr.bf16.gmra.mrb[0].mxu0 %v2741
      %v3131 = vpop.f32.mrb[0].mxu0
      %v3132 = vadd.f32 0.0, %v3131
      %v3133 = vpop.f32.mrb[0].mxu0
      %v3134 = vpop.f32.mrb[0].mxu0
      %v3135 = vadd.f32 0.0, %v3134
      %v3136 = vpop.f32.mrb[0].mxu0
      %3137 = vmatprep.mubr.bf16.mxu0 0
      %3138 = vmatmul.mubr.bf16.gmra.mrb[0].mxu0 %v2750
      %v3139 = vpop.f32.mrb[0].mxu0
      %v3140 = vadd.f32 0.0, %v3139
      %v3141 = vpop.f32.mrb[0].mxu0
      %v3142 = vpop.f32.mrb[0].mxu0
      %v3143 = vadd.f32 0.0, %v3142
      %v3144 = vpop.f32.mrb[0].mxu0
      %3145 = vmatprep.mubr.bf16.mxu0 0
      %3146 = vmatmul.mubr.bf16.gmra.mrb[0].mxu0 %v2759
      %v3147 = vpop.f32.mrb[0].mxu0
      %v3148 = vadd.f32 0.0, %v3147
      %v3149 = vpop.f32.mrb[0].mxu0
      %v3150 = vpop.f32.mrb[0].mxu0
      %v3151 = vadd.f32 0.0, %v3150
      %v3152 = vpop.f32.mrb[0].mxu0
      %3153 = vmatprep.mubr.bf16.mxu0 0
      %3154 = vmatmul.mubr.bf16.gmra.mrb[0].mxu0 %v2768
      %v3155 = vpop.f32.mrb[0].mxu0
      %v3156 = vadd.f32 0.0, %v3155
      %v3157 = vpop.f32.mrb[0].mxu0
      %v3158 = vpop.f32.mrb[0].mxu0
      %v3159 = vadd.f32 0.0, %v3158
      %v3160 = vpop.f32.mrb[0].mxu0
      %3161 = vmatprep.mubr.bf16.mxu0 0
      %3162 = vmatmul.mubr.bf16.gmra.mrb[0].mxu0 %v2777
      %v3163 = vpop.f32.mrb[0].mxu0
      %v3164 = vadd.f32 0.0, %v3163
      %v3165 = vpop.f32.mrb[0].mxu0
      %v3166 = vpop.f32.mrb[0].mxu0
      %v3167 = vadd.f32 0.0, %v3166
      %v3168 = vpop.f32.mrb[0].mxu0
      %3169 = vmatprep.mubr.bf16.mxu0 0
      %3170 = vmatmul.mubr.bf16.gmra.mrb[0].mxu0 %v2786
      %v3171 = vpop.f32.mrb[0].mxu0
      %v3172 = vadd.f32 0.0, %v3171
      %v3173 = vpop.f32.mrb[0].mxu0
      %v3174 = vpop.f32.mrb[0].mxu0
      %v3175 = vadd.f32 0.0, %v3174
      %v3176 = vpop.f32.mrb[0].mxu0
      %3177 = vmatprep.mubr.bf16.mxu0 0
      %3178 = vmatmul.mubr.bf16.gmra.mrb[0].mxu0 %v2795
      %v3179 = vpop.f32.mrb[0].mxu0
      %v3180 = vadd.f32 0.0, %v3179
      %v3181 = vpop.f32.mrb[0].mxu0
      %v3182 = vpop.f32.mrb[0].mxu0
      %v3183 = vadd.f32 0.0, %v3182
      %v3184 = vpop.f32.mrb[0].mxu0
      %3185 = vmatprep.mubr.bf16.mxu0 0
      %3186 = vmatmul.mubr.bf16.gmra.mrb[0].mxu0 %v2804
      %v3187 = vpop.f32.mrb[0].mxu0
      %v3188 = vadd.f32 0.0, %v3187
      %v3189 = vpop.f32.mrb[0].mxu0
      %v3190 = vpop.f32.mrb[0].mxu0
      %v3191 = vadd.f32 0.0, %v3190
      %v3192 = vpop.f32.mrb[0].mxu0
      %3193 = vmatprep.mubr.bf16.mxu0 0
      %3194 = vmatmul.mubr.bf16.gmra.mrb[0].mxu0 %v2813
      %v3195 = vpop.f32.mrb[0].mxu0
      %v3196 = vadd.f32 0.0, %v3195
      %v3197 = vpop.f32.mrb[0].mxu0
      %v3198 = vpop.f32.mrb[0].mxu0
      %v3199 = vadd.f32 0.0, %v3198
      %v3200 = vpop.f32.mrb[0].mxu0
      %3201 = vmatprep.mubr.bf16.mxu0 0
      %3202 = vmatmul.mubr.bf16.gmra.mrb[0].mxu0 %v2822
      %v3203 = vpop.f32.mrb[0].mxu0
      %v3204 = vadd.f32 0.0, %v3203
      %v3205 = vpop.f32.mrb[0].mxu0
      %v3206 = vpop.f32.mrb[0].mxu0
      %v3207 = vadd.f32 0.0, %v3206
      %v3208 = vpop.f32.mrb[0].mxu0
      %3209 = vmatprep.mubr.bf16.mxu0 0
      %3210 = vmatmul.mubr.bf16.gmra.mrb[0].mxu0 %v2831
      %v3211 = vpop.f32.mrb[0].mxu0
      %v3212 = vadd.f32 0.0, %v3211
      %v3213 = vpop.f32.mrb[0].mxu0
      %v3214 = vpop.f32.mrb[0].mxu0
      %v3215 = vadd.f32 0.0, %v3214
      %v3216 = vpop.f32.mrb[0].mxu0
      %3217 = vmatprep.mubr.bf16.mxu0 0
      %3218 = vmatmul.mubr.bf16.gmra.mrb[0].mxu0 %v2840
      %v3219 = vpop.f32.mrb[0].mxu0
      %v3220 = vadd.f32 0.0, %v3219
      %v3221 = vpop.f32.mrb[0].mxu0
      %v3222 = vpop.f32.mrb[0].mxu0
      %v3223 = vadd.f32 0.0, %v3222
      %v3224 = vpop.f32.mrb[0].mxu0
      %3225 = vmatprep.mubr.bf16.mxu0 0
      %3226 = vmatmul.mubr.bf16.gmra.mrb[0].mxu0 %v2849
      %v3227 = vpop.f32.mrb[0].mxu0
      %v3228 = vadd.f32 0.0, %v3227
      %v3229 = vpop.f32.mrb[0].mxu0
      %v3230 = vpop.f32.mrb[0].mxu0
      %v3231 = vadd.f32 0.0, %v3230
      %v3232 = vpop.f32.mrb[0].mxu0
      %3233 = vmatprep.mubr.bf16.mxu0 0
      %3234 = vmatmul.mubr.bf16.gmra.mrb[0].mxu0 %v2858
      %v3235 = vpop.f32.mrb[0].mxu0
      %v3236 = vadd.f32 0.0, %v3235
      %v3237 = vpop.f32.mrb[0].mxu0
      %v3238 = vpop.f32.mrb[0].mxu0
      %v3239 = vadd.f32 0.0, %v3238
      %v3240 = vpop.f32.mrb[0].mxu0
      %3241 = vmatprep.mubr.bf16.mxu0 0
      %3242 = vmatmul.mubr.bf16.gmra.mrb[0].mxu0 %v2867
      %v3243 = vpop.f32.mrb[0].mxu0
      %v3244 = vadd.f32 0.0, %v3243
      %v3245 = vpop.f32.mrb[0].mxu0
      %v3246 = vpop.f32.mrb[0].mxu0
      %v3247 = vadd.f32 0.0, %v3246
      %v3248 = vpop.f32.mrb[0].mxu0
      %3249 = vmatprep.mubr.bf16.mxu0 0
      %3250 = vmatmul.mubr.bf16.gmra.mrb[0].mxu0 %v2876
      %v3251 = vpop.f32.mrb[0].mxu0
      %v3252 = vadd.f32 0.0, %v3251
      %v3253 = vpop.f32.mrb[0].mxu0
      %v3254 = vpop.f32.mrb[0].mxu0
      %v3255 = vadd.f32 0.0, %v3254
      %v3256 = vpop.f32.mrb[0].mxu0
      %3257 = vmatprep.mubr.bf16.mxu0 0
      %3258 = vmatmul.mubr.bf16.gmra.mrb[0].mxu0 %v2885
      %v3259 = vpop.f32.mrb[0].mxu0
      %v3260 = vadd.f32 0.0, %v3259
      %v3261 = vpop.f32.mrb[0].mxu0
      %v3262 = vpop.f32.mrb[0].mxu0
      %v3263 = vadd.f32 0.0, %v3262
      %v3264 = vpop.f32.mrb[0].mxu0
      %3265 = vmatprep.mubr.bf16.mxu0 0
      %3266 = vmatmul.mubr.bf16.gmra.mrb[0].mxu0 %v2894
      %v3267 = vpop.f32.mrb[0].mxu0
      %v3268 = vadd.f32 0.0, %v3267
      %v3269 = vpop.f32.mrb[0].mxu0
      %v3270 = vpop.f32.mrb[0].mxu0
      %v3271 = vadd.f32 0.0, %v3270
      %v3272 = vpop.f32.mrb[0].mxu0
      %3273 = vmatprep.mubr.bf16.mxu0 0
      %3274 = vmatmul.mubr.bf16.gmra.mrb[0].mxu0 %v2903
      %v3275 = vpop.f32.mrb[0].mxu0
      %v3276 = vadd.f32 0.0, %v3275
      %v3277 = vpop.f32.mrb[0].mxu0
      %v3278 = vpop.f32.mrb[0].mxu0
      %v3279 = vadd.f32 0.0, %v3278
      %v3280 = vpop.f32.mrb[0].mxu0
      %3281 = vmatprep.mubr.bf16.mxu0 0
      %3282 = vmatmul.mubr.bf16.gmra.mrb[0].mxu0 %v2912
      %v3283 = vpop.f32.mrb[0].mxu0
      %v3284 = vadd.f32 0.0, %v3283
      %v3285 = vpop.f32.mrb[0].mxu0
      %v3286 = vpop.f32.mrb[0].mxu0
      %v3287 = vadd.f32 0.0, %v3286
      %v3288 = vpop.f32.mrb[0].mxu0
      %3289 = vmatprep.mubr.bf16.mxu0 0
      %3290 = vmatmul.mubr.bf16.gmra.mrb[0].mxu0 %v2921
      %v3291 = vpop.f32.mrb[0].mxu0
      %v3292 = vadd.f32 0.0, %v3291
      %v3293 = vpop.f32.mrb[0].mxu0
      %v3294 = vpop.f32.mrb[0].mxu0
      %v3295 = vadd.f32 0.0, %v3294
      %v3296 = vpop.f32.mrb[0].mxu0
      %3297 = vmatprep.mubr.bf16.mxu0 0
      %3298 = vmatmul.mubr.bf16.gmra.mrb[0].mxu0 %v2930
      %v3299 = vpop.f32.mrb[0].mxu0
      %v3300 = vadd.f32 0.0, %v3299
      %v3301 = vpop.f32.mrb[0].mxu0
      %v3302 = vpop.f32.mrb[0].mxu0
      %v3303 = vadd.f32 0.0, %v3302
      %v3304 = vpop.f32.mrb[0].mxu0
      %3305 = vmatprep.mubr.bf16.mxu0 0
      %3306 = vmatmul.mubr.bf16.gmra.mrb[0].mxu0 %v2939
      %v3307 = vpop.f32.mrb[0].mxu0
      %v3308 = vadd.f32 0.0, %v3307
      %v3309 = vpop.f32.mrb[0].mxu0
      %v3310 = vpop.f32.mrb[0].mxu0
      %v3311 = vadd.f32 0.0, %v3310
      %v3312 = vpop.f32.mrb[0].mxu0
      %3313 = vmatprep.mubr.bf16.mxu0 0
      %3314 = vmatmul.mubr.bf16.gmra.mrb[0].mxu0 %v2948
      %v3315 = vpop.f32.mrb[0].mxu0
      %v3316 = vadd.f32 0.0, %v3315
      %v3317 = vpop.f32.mrb[0].mxu0
      %v3318 = vpop.f32.mrb[0].mxu0
      %v3319 = vadd.f32 0.0, %v3318
      %v3320 = vpop.f32.mrb[0].mxu0
      %3321 = vmatprep.mubr.bf16.mxu0 0
      %3322 = vmatmul.mubr.bf16.gmra.mrb[0].mxu0 %v2957
      %v3323 = vpop.f32.mrb[0].mxu0
      %v3324 = vadd.f32 0.0, %v3323
      %v3325 = vpop.f32.mrb[0].mxu0
      %v3326 = vpop.f32.mrb[0].mxu0
      %v3327 = vadd.f32 0.0, %v3326
      %v3328 = vpop.f32.mrb[0].mxu0
      %3329 = vmatprep.mubr.bf16.mxu0 0
      %3330 = vmatmul.mubr.bf16.gmra.mrb[0].mxu0 %v2966
      %v3331 = vpop.f32.mrb[0].mxu0
      %v3332 = vadd.f32 0.0, %v3331
      %v3333 = vpop.f32.mrb[0].mxu0
      %v3334 = vpop.f32.mrb[0].mxu0
      %v3335 = vadd.f32 0.0, %v3334
      %v3336 = vpop.f32.mrb[0].mxu0
      %3337 = vmatprep.mubr.bf16.mxu0 0
      %3338 = vmatmul.mubr.bf16.gmra.mrb[0].mxu0 %v2975
      %v3339 = vpop.f32.mrb[0].mxu0
      %v3340 = vadd.f32 0.0, %v3339
      %v3341 = vpop.f32.mrb[0].mxu0
      %v3342 = vpop.f32.mrb[0].mxu0
      %v3343 = vadd.f32 0.0, %v3342
      %v3344 = vpop.f32.mrb[0].mxu0
      %3345 = vmatprep.mubr.bf16.mxu0 0
      %3346 = vmatmul.mubr.bf16.gmra.mrb[0].mxu0 %v2984
      %v3347 = vpop.f32.mrb[0].mxu0
      %v3348 = vadd.f32 0.0, %v3347
      %v3349 = vpop.f32.mrb[0].mxu0
      %v3350 = vpop.f32.mrb[0].mxu0
      %v3351 = vadd.f32 0.0, %v3350
      %v3352 = vpop.f32.mrb[0].mxu0
      %3353 = vdwg.mxu0
      %v3354 = vadd.f32 %v2606, %v3100
      %v3355 = vadd.f32 %v2607, %v3103
      %v3356 = vadd.f32 %v2608, %v3108
      %v3357 = vadd.f32 %v2609, %v3111
      %v3358 = vadd.f32 %v2610, %v3116
      %v3359 = vadd.f32 %v2611, %v3119
      %v3360 = vadd.f32 %v2612, %v3124
      %v3361 = vadd.f32 %v2613, %v3127
      %v3362 = vadd.f32 %v2614, %v3132
      %v3363 = vadd.f32 %v2615, %v3135
      %v3364 = vadd.f32 %v2616, %v3140
      %v3365 = vadd.f32 %v2617, %v3143
      %v3366 = vadd.f32 %v2618, %v3148
      %v3367 = vadd.f32 %v2619, %v3151
      %v3368 = vadd.f32 %v2620, %v3156
      %v3369 = vadd.f32 %v2621, %v3159
      %v3370 = vadd.f32 %v2622, %v3164
      %v3371 = vadd.f32 %v2623, %v3167
      %v3372 = vadd.f32 %v2624, %v3172
      %v3373 = vadd.f32 %v2625, %v3175
      %v3374 = vadd.f32 %v2626, %v3180
      %v3375 = vadd.f32 %v2627, %v3183
      %v3376 = vadd.f32 %v2628, %v3188
      %v3377 = vadd.f32 %v2629, %v3191
      %v3378 = vadd.f32 %v2630, %v3196
      %v3379 = vadd.f32 %v2631, %v3199
      %v3380 = vadd.f32 %v2632, %v3204
      %v3381 = vadd.f32 %v2633, %v3207
      %v3382 = vadd.f32 %v2634, %v3212
      %v3383 = vadd.f32 %v2635, %v3215
      %v3384 = vadd.f32 %v2636, %v3220
      %v3385 = vadd.f32 %v2637, %v3223
      %v3386 = vadd.f32 %v2638, %v3228
      %v3387 = vadd.f32 %v2639, %v3231
      %v3388 = vadd.f32 %v2640, %v3236
      %v3389 = vadd.f32 %v2641, %v3239
      %v3390 = vadd.f32 %v2642, %v3244
      %v3391 = vadd.f32 %v2643, %v3247
      %v3392 = vadd.f32 %v2644, %v3252
      %v3393 = vadd.f32 %v2645, %v3255
      %v3394 = vadd.f32 %v2646, %v3260
      %v3395 = vadd.f32 %v2647, %v3263
      %v3396 = vadd.f32 %v2648, %v3268
      %v3397 = vadd.f32 %v2649, %v3271
      %v3398 = vadd.f32 %v2650, %v3276
      %v3399 = vadd.f32 %v2651, %v3279
      %v3400 = vadd.f32 %v2652, %v3284
      %v3401 = vadd.f32 %v2653, %v3287
      %v3402 = vadd.f32 %v2654, %v3292
      %v3403 = vadd.f32 %v2655, %v3295
      %v3404 = vadd.f32 %v2656, %v3300
      %v3405 = vadd.f32 %v2657, %v3303
      %v3406 = vadd.f32 %v2658, %v3308
      %v3407 = vadd.f32 %v2659, %v3311
      %v3408 = vadd.f32 %v2660, %v3316
      %v3409 = vadd.f32 %v2661, %v3319
      %v3410 = vadd.f32 %v2662, %v3324
      %v3411 = vadd.f32 %v2663, %v3327
      %v3412 = vadd.f32 %v2664, %v3332
      %v3413 = vadd.f32 %v2665, %v3335
      %v3414 = vadd.f32 %v2666, %v3340
      %v3415 = vadd.f32 %v2667, %v3343
      %v3416 = vadd.f32 %v2668, %v3348
      %v3417 = vadd.f32 %v2669, %v3351
      %v3418 = vld [vmem:[%s500 + $0x8] sm:$0xfc]
      %s3419 = scalar_lea.vmem %s1, 320
      %v3420 = vld [vmem:[%s3419] sm:$0xf]
      %v3421 = vld [vmem:[%s3419 + $0x4] sm:$0xf]
      %v3422 = vld [vmem:[%s3419 + $0x8] sm:$0xf]
      %v3423 = vld [vmem:[%s3419 + $0xc] sm:$0xf]
      %v3424 = vld [vmem:[%s3419 + $0x10] sm:$0xf]
      %v3425 = vld [vmem:[%s3419 + $0x14] sm:$0xf]
      %v3426 = vld [vmem:[%s3419 + $0x18] sm:$0xf]
      %v3427 = vld [vmem:[%s3419 + $0x1c] sm:$0xf]
      %v3428 = vld [vmem:[%s3419 + $0x20] sm:$0xf]
      %v3429 = vld [vmem:[%s3419 + $0x24] sm:$0xf]
      %v3430 = vld [vmem:[%s3419 + $0x28] sm:$0xf]
      %v3431 = vld [vmem:[%s3419 + $0x2c] sm:$0xf]
      %v3432 = vld [vmem:[%s3419 + $0x30] sm:$0xf]
      %v3433 = vld [vmem:[%s3419 + $0x34] sm:$0xf]
      %v3434 = vld [vmem:[%s3419 + $0x38] sm:$0xf]
      %v3435 = vld [vmem:[%s3419 + $0x3c] sm:$0xf]
      %vm3438 = vcmask 1045504
      %v3439 = vrot.slane %v3418, 2
      %v3440 = vrot.slane %v2090, 2
      %v3441 = vsel %vm3438, %v3439, %v3440
      %v3442 = vrot.slane %v2091, 2
      %v3443 = vsel %vm3438, %v3440, %v3442
      %v3444 = vrot.slane %v2092, 2
      %v3445 = vsel %vm3438, %v3442, %v3444
      %v3446 = vrot.slane %v2093, 2
      %v3447 = vsel %vm3438, %v3444, %v3446
      %v3448 = vrot.slane %v2094, 2
      %v3449 = vsel %vm3438, %v3446, %v3448
      %v3450 = vrot.slane %v2095, 2
      %v3451 = vsel %vm3438, %v3448, %v3450
      %v3452 = vrot.slane %v2096, 2
      %v3453 = vsel %vm3438, %v3450, %v3452
      %v3454 = vrot.slane %v2097, 2
      %v3455 = vsel %vm3438, %v3452, %v3454
      %v3456 = vrot.slane %v2098, 2
      %v3457 = vsel %vm3438, %v3454, %v3456
      %v3458 = vrot.slane %v2099, 2
      %v3459 = vsel %vm3438, %v3456, %v3458
      %v3460 = vrot.slane %v2100, 2
      %v3461 = vsel %vm3438, %v3458, %v3460
      %v3462 = vrot.slane %v2101, 2
      %v3463 = vsel %vm3438, %v3460, %v3462
      %v3464 = vrot.slane %v2102, 2
      %v3465 = vsel %vm3438, %v3462, %v3464
      %v3466 = vrot.slane %v2103, 2
      %v3467 = vsel %vm3438, %v3464, %v3466
      %v3468 = vrot.slane %v2104, 2
      %v3469 = vsel %vm3438, %v3466, %v3468
      %v3470 = vrot.slane %v2105, 2
      %v3471 = vsel %vm3438, %v3468, %v3470
      %v3472 = vrot.slane %v2106, 2
      %v3473 = vsel %vm3438, %v3470, %v3472
      %v3474 = vrot.slane %v2107, 2
      %v3475 = vsel %vm3438, %v3472, %v3474
      %v3476 = vrot.slane %v2108, 2
      %v3477 = vsel %vm3438, %v3474, %v3476
      %v3478 = vrot.slane %v2109, 2
      %v3479 = vsel %vm3438, %v3476, %v3478
      %v3480 = vrot.slane %v2110, 2
      %v3481 = vsel %vm3438, %v3478, %v3480
      %v3482 = vrot.slane %v2111, 2
      %v3483 = vsel %vm3438, %v3480, %v3482
      %v3484 = vrot.slane %v2112, 2
      %v3485 = vsel %vm3438, %v3482, %v3484
      %v3486 = vrot.slane %v2113, 2
      %v3487 = vsel %vm3438, %v3484, %v3486
      %v3488 = vrot.slane %v2114, 2
      %v3489 = vsel %vm3438, %v3486, %v3488
      %v3490 = vrot.slane %v2115, 2
      %v3491 = vsel %vm3438, %v3488, %v3490
      %v3492 = vrot.slane %v2116, 2
      %v3493 = vsel %vm3438, %v3490, %v3492
      %v3494 = vrot.slane %v2117, 2
      %v3495 = vsel %vm3438, %v3492, %v3494
      %v3496 = vrot.slane %v2118, 2
      %v3497 = vsel %vm3438, %v3494, %v3496
      %v3498 = vrot.slane %v2119, 2
      %v3499 = vsel %vm3438, %v3496, %v3498
      %v3500 = vrot.slane %v2120, 2
      %v3501 = vsel %vm3438, %v3498, %v3500
      %v3502 = vrot.slane %v2670, 2
      %v3503 = vsel %vm3438, %v3500, %v3502
      %v3552 = vunpack.c.l.b16 %v3420
      %v3553 = vunpack.c.l.b16 %v3421
      %v3554 = vunpack.c.l.b16 %v3422
      %v3555 = vunpack.c.l.b16 %v3423
      %v3556 = vunpack.c.l.b16 %v3424
      %v3557 = vunpack.c.l.b16 %v3425
      %v3558 = vunpack.c.l.b16 %v3426
      %v3559 = vunpack.c.l.b16 %v3427
      %v3560 = vunpack.c.l.b16 %v3428
      %v3561 = vunpack.c.l.b16 %v3429
      %v3562 = vunpack.c.l.b16 %v3430
      %v3563 = vunpack.c.l.b16 %v3431
      %v3564 = vunpack.c.l.b16 %v3432
      %v3565 = vunpack.c.l.b16 %v3433
      %v3566 = vunpack.c.l.b16 %v3434
      %v3567 = vunpack.c.l.b16 %v3435
      %v3568 = vpack.c.b16 %v3553, %v3552
      %v3569 = vpack.c.b16 %v3555, %v3554
      %v3570 = vpack.c.b16 %v3557, %v3556
      %v3571 = vpack.c.b16 %v3559, %v3558
      %v3572 = vpack.c.b16 %v3561, %v3560
      %v3573 = vpack.c.b16 %v3563, %v3562
      %v3574 = vpack.c.b16 %v3565, %v3564
      %v3575 = vpack.c.b16 %v3567, %v3566
      %3584 = vmatprep.subr.bf16.mxu0 0
      %3585 = vmatpush1.bf16.msra.mxu0 %v3568
      %3586 = vmatprep.subr.bf16.mxu0 0
      %3587 = vmatpush1.bf16.msra.mxu0 %v3569
      %3588 = vmatprep.subr.bf16.mxu0 0
      %3589 = vmatpush1.bf16.msra.mxu0 %v3570
      %3590 = vmatprep.subr.bf16.mxu0 0
      %3591 = vmatpush1.bf16.msra.mxu0 %v3571
      %3592 = vmatprep.subr.bf16.mxu0 0
      %3593 = vmatpush1.bf16.msra.mxu0 %v3572
      %3594 = vmatprep.subr.bf16.mxu0 0
      %3595 = vmatpush1.bf16.msra.mxu0 %v3573
      %3596 = vmatprep.subr.bf16.mxu0 0
      %3597 = vmatpush1.bf16.msra.mxu0 %v3574
      %3598 = vmatprep.subr.bf16.mxu0 0
      %3599 = vmatpush1.bf16.msra.mxu0 %v3575
      %3600 = vmatprep.subr.bf16.mxu0 0
      %3601 = vmatpush1.bf16.msra.mxu0 0
      %3602 = vmatprep.subr.bf16.mxu0 0
      %3603 = vmatpush1.bf16.msra.mxu0 0
      %3604 = vmatprep.subr.bf16.mxu0 0
      %3605 = vmatpush1.bf16.msra.mxu0 0
      %3606 = vmatprep.subr.bf16.mxu0 0
      %3607 = vmatpush1.bf16.msra.mxu0 0
      %3608 = vmatprep.subr.bf16.mxu0 0
      %3609 = vmatpush1.bf16.msra.mxu0 0
      %3610 = vmatprep.subr.bf16.mxu0 0
      %3611 = vmatpush1.bf16.msra.mxu0 0
      %3612 = vmatprep.subr.bf16.mxu0 0
      %3613 = vmatpush1.bf16.msra.mxu0 0
      %3614 = vmatprep.subr.bf16.mxu0 0
      %3615 = vmatpush1.bf16.msra.mxu0 0
      %3616 = vmatprep.mubr.bf16.mxu0 0
      %3617 = vmatmul.mubr.bf16.gmra.mrb[0].mxu0 %v3441
      %v3618 = vpop.f32.mrb[0].mxu0
      %v3619 = vadd.f32 0.0, %v3618
      %v3620 = vpop.f32.mrb[0].mxu0
      %v3621 = vpop.f32.mrb[0].mxu0
      %v3622 = vadd.f32 0.0, %v3621
      %v3623 = vpop.f32.mrb[0].mxu0
      %3624 = vmatprep.mubr.bf16.mxu0 0
      %3625 = vmatmul.mubr.bf16.gmra.mrb[0].mxu0 %v3443
      %v3626 = vpop.f32.mrb[0].mxu0
      %v3627 = vadd.f32 0.0, %v3626
      %v3628 = vpop.f32.mrb[0].mxu0
      %v3629 = vpop.f32.mrb[0].mxu0
      %v3630 = vadd.f32 0.0, %v3629
      %v3631 = vpop.f32.mrb[0].mxu0
      %3632 = vmatprep.mubr.bf16.mxu0 0
      %3633 = vmatmul.mubr.bf16.gmra.mrb[0].mxu0 %v3445
      %v3634 = vpop.f32.mrb[0].mxu0
      %v3635 = vadd.f32 0.0, %v3634
      %v3636 = vpop.f32.mrb[0].mxu0
      %v3637 = vpop.f32.mrb[0].mxu0
      %v3638 = vadd.f32 0.0, %v3637
      %v3639 = vpop.f32.mrb[0].mxu0
      %3640 = vmatprep.mubr.bf16.mxu0 0
      %3641 = vmatmul.mubr.bf16.gmra.mrb[0].mxu0 %v3447
      %v3642 = vpop.f32.mrb[0].mxu0
      %v3643 = vadd.f32 0.0, %v3642
      %v3644 = vpop.f32.mrb[0].mxu0
      %v3645 = vpop.f32.mrb[0].mxu0
      %v3646 = vadd.f32 0.0, %v3645
      %v3647 = vpop.f32.mrb[0].mxu0
      %3648 = vmatprep.mubr.bf16.mxu0 0
      %3649 = vmatmul.mubr.bf16.gmra.mrb[0].mxu0 %v3449
      %v3650 = vpop.f32.mrb[0].mxu0
      %v3651 = vadd.f32 0.0, %v3650
      %v3652 = vpop.f32.mrb[0].mxu0
      %v3653 = vpop.f32.mrb[0].mxu0
      %v3654 = vadd.f32 0.0, %v3653
      %v3655 = vpop.f32.mrb[0].mxu0
      %3656 = vmatprep.mubr.bf16.mxu0 0
      %3657 = vmatmul.mubr.bf16.gmra.mrb[0].mxu0 %v3451
      %v3658 = vpop.f32.mrb[0].mxu0
      %v3659 = vadd.f32 0.0, %v3658
      %v3660 = vpop.f32.mrb[0].mxu0
      %v3661 = vpop.f32.mrb[0].mxu0
      %v3662 = vadd.f32 0.0, %v3661
      %v3663 = vpop.f32.mrb[0].mxu0
      %3664 = vmatprep.mubr.bf16.mxu0 0
      %3665 = vmatmul.mubr.bf16.gmra.mrb[0].mxu0 %v3453
      %v3666 = vpop.f32.mrb[0].mxu0
      %v3667 = vadd.f32 0.0, %v3666
      %v3668 = vpop.f32.mrb[0].mxu0
      %v3669 = vpop.f32.mrb[0].mxu0
      %v3670 = vadd.f32 0.0, %v3669
      %v3671 = vpop.f32.mrb[0].mxu0
      %3672 = vmatprep.mubr.bf16.mxu0 0
      %3673 = vmatmul.mubr.bf16.gmra.mrb[0].mxu0 %v3455
      %v3674 = vpop.f32.mrb[0].mxu0
      %v3675 = vadd.f32 0.0, %v3674
      %v3676 = vpop.f32.mrb[0].mxu0
      %v3677 = vpop.f32.mrb[0].mxu0
      %v3678 = vadd.f32 0.0, %v3677
      %v3679 = vpop.f32.mrb[0].mxu0
      %3680 = vmatprep.mubr.bf16.mxu0 0
      %3681 = vmatmul.mubr.bf16.gmra.mrb[0].mxu0 %v3457
      %v3682 = vpop.f32.mrb[0].mxu0
      %v3683 = vadd.f32 0.0, %v3682
      %v3684 = vpop.f32.mrb[0].mxu0
      %v3685 = vpop.f32.mrb[0].mxu0
      %v3686 = vadd.f32 0.0, %v3685
      %v3687 = vpop.f32.mrb[0].mxu0
      %3688 = vmatprep.mubr.bf16.mxu0 0
      %3689 = vmatmul.mubr.bf16.gmra.mrb[0].mxu0 %v3459
      %v3690 = vpop.f32.mrb[0].mxu0
      %v3691 = vadd.f32 0.0, %v3690
      %v3692 = vpop.f32.mrb[0].mxu0
      %v3693 = vpop.f32.mrb[0].mxu0
      %v3694 = vadd.f32 0.0, %v3693
      %v3695 = vpop.f32.mrb[0].mxu0
      %3696 = vmatprep.mubr.bf16.mxu0 0
      %3697 = vmatmul.mubr.bf16.gmra.mrb[0].mxu0 %v3461
      %v3698 = vpop.f32.mrb[0].mxu0
      %v3699 = vadd.f32 0.0, %v3698
      %v3700 = vpop.f32.mrb[0].mxu0
      %v3701 = vpop.f32.mrb[0].mxu0
      %v3702 = vadd.f32 0.0, %v3701
      %v3703 = vpop.f32.mrb[0].mxu0
      %3704 = vmatprep.mubr.bf16.mxu0 0
      %3705 = vmatmul.mubr.bf16.gmra.mrb[0].mxu0 %v3463
      %v3706 = vpop.f32.mrb[0].mxu0
      %v3707 = vadd.f32 0.0, %v3706
      %v3708 = vpop.f32.mrb[0].mxu0
      %v3709 = vpop.f32.mrb[0].mxu0
      %v3710 = vadd.f32 0.0, %v3709
      %v3711 = vpop.f32.mrb[0].mxu0
      %3712 = vmatprep.mubr.bf16.mxu0 0
      %3713 = vmatmul.mubr.bf16.gmra.mrb[0].mxu0 %v3465
      %v3714 = vpop.f32.mrb[0].mxu0
      %v3715 = vadd.f32 0.0, %v3714
      %v3716 = vpop.f32.mrb[0].mxu0
      %v3717 = vpop.f32.mrb[0].mxu0
      %v3718 = vadd.f32 0.0, %v3717
      %v3719 = vpop.f32.mrb[0].mxu0
      %3720 = vmatprep.mubr.bf16.mxu0 0
      %3721 = vmatmul.mubr.bf16.gmra.mrb[0].mxu0 %v3467
      %v3722 = vpop.f32.mrb[0].mxu0
      %v3723 = vadd.f32 0.0, %v3722
      %v3724 = vpop.f32.mrb[0].mxu0
      %v3725 = vpop.f32.mrb[0].mxu0
      %v3726 = vadd.f32 0.0, %v3725
      %v3727 = vpop.f32.mrb[0].mxu0
      %3728 = vmatprep.mubr.bf16.mxu0 0
      %3729 = vmatmul.mubr.bf16.gmra.mrb[0].mxu0 %v3469
      %v3730 = vpop.f32.mrb[0].mxu0
      %v3731 = vadd.f32 0.0, %v3730
      %v3732 = vpop.f32.mrb[0].mxu0
      %v3733 = vpop.f32.mrb[0].mxu0
      %v3734 = vadd.f32 0.0, %v3733
      %v3735 = vpop.f32.mrb[0].mxu0
      %3736 = vmatprep.mubr.bf16.mxu0 0
      %3737 = vmatmul.mubr.bf16.gmra.mrb[0].mxu0 %v3471
      %v3738 = vpop.f32.mrb[0].mxu0
      %v3739 = vadd.f32 0.0, %v3738
      %v3740 = vpop.f32.mrb[0].mxu0
      %v3741 = vpop.f32.mrb[0].mxu0
      %v3742 = vadd.f32 0.0, %v3741
      %v3743 = vpop.f32.mrb[0].mxu0
      %3744 = vmatprep.mubr.bf16.mxu0 0
      %3745 = vmatmul.mubr.bf16.gmra.mrb[0].mxu0 %v3473
      %v3746 = vpop.f32.mrb[0].mxu0
      %v3747 = vadd.f32 0.0, %v3746
      %v3748 = vpop.f32.mrb[0].mxu0
      %v3749 = vpop.f32.mrb[0].mxu0
      %v3750 = vadd.f32 0.0, %v3749
      %v3751 = vpop.f32.mrb[0].mxu0
      %3752 = vmatprep.mubr.bf16.mxu0 0
      %3753 = vmatmul.mubr.bf16.gmra.mrb[0].mxu0 %v3475
      %v3754 = vpop.f32.mrb[0].mxu0
      %v3755 = vadd.f32 0.0, %v3754
      %v3756 = vpop.f32.mrb[0].mxu0
      %v3757 = vpop.f32.mrb[0].mxu0
      %v3758 = vadd.f32 0.0, %v3757
      %v3759 = vpop.f32.mrb[0].mxu0
      %3760 = vmatprep.mubr.bf16.mxu0 0
      %3761 = vmatmul.mubr.bf16.gmra.mrb[0].mxu0 %v3477
      %v3762 = vpop.f32.mrb[0].mxu0
      %v3763 = vadd.f32 0.0, %v3762
      %v3764 = vpop.f32.mrb[0].mxu0
      %v3765 = vpop.f32.mrb[0].mxu0
      %v3766 = vadd.f32 0.0, %v3765
      %v3767 = vpop.f32.mrb[0].mxu0
      %3768 = vmatprep.mubr.bf16.mxu0 0
      %3769 = vmatmul.mubr.bf16.gmra.mrb[0].mxu0 %v3479
      %v3770 = vpop.f32.mrb[0].mxu0
      %v3771 = vadd.f32 0.0, %v3770
      %v3772 = vpop.f32.mrb[0].mxu0
      %v3773 = vpop.f32.mrb[0].mxu0
      %v3774 = vadd.f32 0.0, %v3773
      %v3775 = vpop.f32.mrb[0].mxu0
      %3776 = vmatprep.mubr.bf16.mxu0 0
      %3777 = vmatmul.mubr.bf16.gmra.mrb[0].mxu0 %v3481
      %v3778 = vpop.f32.mrb[0].mxu0
      %v3779 = vadd.f32 0.0, %v3778
      %v3780 = vpop.f32.mrb[0].mxu0
      %v3781 = vpop.f32.mrb[0].mxu0
      %v3782 = vadd.f32 0.0, %v3781
      %v3783 = vpop.f32.mrb[0].mxu0
      %3784 = vmatprep.mubr.bf16.mxu0 0
      %3785 = vmatmul.mubr.bf16.gmra.mrb[0].mxu0 %v3483
      %v3786 = vpop.f32.mrb[0].mxu0
      %v3787 = vadd.f32 0.0, %v3786
      %v3788 = vpop.f32.mrb[0].mxu0
      %v3789 = vpop.f32.mrb[0].mxu0
      %v3790 = vadd.f32 0.0, %v3789
      %v3791 = vpop.f32.mrb[0].mxu0
      %3792 = vmatprep.mubr.bf16.mxu0 0
      %3793 = vmatmul.mubr.bf16.gmra.mrb[0].mxu0 %v3485
      %v3794 = vpop.f32.mrb[0].mxu0
      %v3795 = vadd.f32 0.0, %v3794
      %v3796 = vpop.f32.mrb[0].mxu0
      %v3797 = vpop.f32.mrb[0].mxu0
      %v3798 = vadd.f32 0.0, %v3797
      %v3799 = vpop.f32.mrb[0].mxu0
      %3800 = vmatprep.mubr.bf16.mxu0 0
      %3801 = vmatmul.mubr.bf16.gmra.mrb[0].mxu0 %v3487
      %v3802 = vpop.f32.mrb[0].mxu0
      %v3803 = vadd.f32 0.0, %v3802
      %v3804 = vpop.f32.mrb[0].mxu0
      %v3805 = vpop.f32.mrb[0].mxu0
      %v3806 = vadd.f32 0.0, %v3805
      %v3807 = vpop.f32.mrb[0].mxu0
      %3808 = vmatprep.mubr.bf16.mxu0 0
      %3809 = vmatmul.mubr.bf16.gmra.mrb[0].mxu0 %v3489
      %v3810 = vpop.f32.mrb[0].mxu0
      %v3811 = vadd.f32 0.0, %v3810
      %v3812 = vpop.f32.mrb[0].mxu0
      %v3813 = vpop.f32.mrb[0].mxu0
      %v3814 = vadd.f32 0.0, %v3813
      %v3815 = vpop.f32.mrb[0].mxu0
      %3816 = vmatprep.mubr.bf16.mxu0 0
      %3817 = vmatmul.mubr.bf16.gmra.mrb[0].mxu0 %v3491
      %v3818 = vpop.f32.mrb[0].mxu0
      %v3819 = vadd.f32 0.0, %v3818
      %v3820 = vpop.f32.mrb[0].mxu0
      %v3821 = vpop.f32.mrb[0].mxu0
      %v3822 = vadd.f32 0.0, %v3821
      %v3823 = vpop.f32.mrb[0].mxu0
      %3824 = vmatprep.mubr.bf16.mxu0 0
      %3825 = vmatmul.mubr.bf16.gmra.mrb[0].mxu0 %v3493
      %v3826 = vpop.f32.mrb[0].mxu0
      %v3827 = vadd.f32 0.0, %v3826
      %v3828 = vpop.f32.mrb[0].mxu0
      %v3829 = vpop.f32.mrb[0].mxu0
      %v3830 = vadd.f32 0.0, %v3829
      %v3831 = vpop.f32.mrb[0].mxu0
      %3832 = vmatprep.mubr.bf16.mxu0 0
      %3833 = vmatmul.mubr.bf16.gmra.mrb[0].mxu0 %v3495
      %v3834 = vpop.f32.mrb[0].mxu0
      %v3835 = vadd.f32 0.0, %v3834
      %v3836 = vpop.f32.mrb[0].mxu0
      %v3837 = vpop.f32.mrb[0].mxu0
      %v3838 = vadd.f32 0.0, %v3837
      %v3839 = vpop.f32.mrb[0].mxu0
      %3840 = vmatprep.mubr.bf16.mxu0 0
      %3841 = vmatmul.mubr.bf16.gmra.mrb[0].mxu0 %v3497
      %v3842 = vpop.f32.mrb[0].mxu0
      %v3843 = vadd.f32 0.0, %v3842
      %v3844 = vpop.f32.mrb[0].mxu0
      %v3845 = vpop.f32.mrb[0].mxu0
      %v3846 = vadd.f32 0.0, %v3845
      %v3847 = vpop.f32.mrb[0].mxu0
      %3848 = vmatprep.mubr.bf16.mxu0 0
      %3849 = vmatmul.mubr.bf16.gmra.mrb[0].mxu0 %v3499
      %v3850 = vpop.f32.mrb[0].mxu0
      %v3851 = vadd.f32 0.0, %v3850
      %v3852 = vpop.f32.mrb[0].mxu0
      %v3853 = vpop.f32.mrb[0].mxu0
      %v3854 = vadd.f32 0.0, %v3853
      %v3855 = vpop.f32.mrb[0].mxu0
      %3856 = vmatprep.mubr.bf16.mxu0 0
      %3857 = vmatmul.mubr.bf16.gmra.mrb[0].mxu0 %v3501
      %v3858 = vpop.f32.mrb[0].mxu0
      %v3859 = vadd.f32 0.0, %v3858
      %v3860 = vpop.f32.mrb[0].mxu0
      %v3861 = vpop.f32.mrb[0].mxu0
      %v3862 = vadd.f32 0.0, %v3861
      %v3863 = vpop.f32.mrb[0].mxu0
      %3864 = vmatprep.mubr.bf16.mxu0 0
      %3865 = vmatmul.mubr.bf16.gmra.mrb[0].mxu0 %v3503
      %v3866 = vpop.f32.mrb[0].mxu0
      %v3867 = vadd.f32 0.0, %v3866
      %v3868 = vpop.f32.mrb[0].mxu0
      %v3869 = vpop.f32.mrb[0].mxu0
      %v3870 = vadd.f32 0.0, %v3869
      %v3871 = vpop.f32.mrb[0].mxu0
      %3872 = vdwg.mxu0
      %v3873 = vadd.f32 %v3354, %v3619
      %v3874 = vadd.f32 %v3355, %v3622
      %v3875 = vadd.f32 %v3356, %v3627
      %v3876 = vadd.f32 %v3357, %v3630
      %v3877 = vadd.f32 %v3358, %v3635
      %v3878 = vadd.f32 %v3359, %v3638
      %v3879 = vadd.f32 %v3360, %v3643
      %v3880 = vadd.f32 %v3361, %v3646
      %v3881 = vadd.f32 %v3362, %v3651
      %v3882 = vadd.f32 %v3363, %v3654
      %v3883 = vadd.f32 %v3364, %v3659
      %v3884 = vadd.f32 %v3365, %v3662
      %v3885 = vadd.f32 %v3366, %v3667
      %v3886 = vadd.f32 %v3367, %v3670
      %v3887 = vadd.f32 %v3368, %v3675
      %v3888 = vadd.f32 %v3369, %v3678
      %v3889 = vadd.f32 %v3370, %v3683
      %v3890 = vadd.f32 %v3371, %v3686
      %v3891 = vadd.f32 %v3372, %v3691
      %v3892 = vadd.f32 %v3373, %v3694
      %v3893 = vadd.f32 %v3374, %v3699
      %v3894 = vadd.f32 %v3375, %v3702
      %v3895 = vadd.f32 %v3376, %v3707
      %v3896 = vadd.f32 %v3377, %v3710
      %v3897 = vadd.f32 %v3378, %v3715
      %v3898 = vadd.f32 %v3379, %v3718
      %v3899 = vadd.f32 %v3380, %v3723
      %v3900 = vadd.f32 %v3381, %v3726
      %v3901 = vadd.f32 %v3382, %v3731
      %v3902 = vadd.f32 %v3383, %v3734
      %v3903 = vadd.f32 %v3384, %v3739
      %v3904 = vadd.f32 %v3385, %v3742
      %v3905 = vadd.f32 %v3386, %v3747
      %v3906 = vadd.f32 %v3387, %v3750
      %v3907 = vadd.f32 %v3388, %v3755
      %v3908 = vadd.f32 %v3389, %v3758
      %v3909 = vadd.f32 %v3390, %v3763
      %v3910 = vadd.f32 %v3391, %v3766
      %v3911 = vadd.f32 %v3392, %v3771
      %v3912 = vadd.f32 %v3393, %v3774
      %v3913 = vadd.f32 %v3394, %v3779
      %v3914 = vadd.f32 %v3395, %v3782
      %v3915 = vadd.f32 %v3396, %v3787
      %v3916 = vadd.f32 %v3397, %v3790
      %v3917 = vadd.f32 %v3398, %v3795
      %v3918 = vadd.f32 %v3399, %v3798
      %v3919 = vadd.f32 %v3400, %v3803
      %v3920 = vadd.f32 %v3401, %v3806
      %v3921 = vadd.f32 %v3402, %v3811
      %v3922 = vadd.f32 %v3403, %v3814
      %v3923 = vadd.f32 %v3404, %v3819
      %v3924 = vadd.f32 %v3405, %v3822
      %v3925 = vadd.f32 %v3406, %v3827
      %v3926 = vadd.f32 %v3407, %v3830
      %v3927 = vadd.f32 %v3408, %v3835
      %v3928 = vadd.f32 %v3409, %v3838
      %v3929 = vadd.f32 %v3410, %v3843
      %v3930 = vadd.f32 %v3411, %v3846
      %v3931 = vadd.f32 %v3412, %v3851
      %v3932 = vadd.f32 %v3413, %v3854
      %v3933 = vadd.f32 %v3414, %v3859
      %v3934 = vadd.f32 %v3415, %v3862
      %v3935 = vadd.f32 %v3416, %v3867
      %v3936 = vadd.f32 %v3417, %v3870
      %v3937 = vld [vmem:[%s500 + $0x10] sm:$0xfc]
      %v3938 = vld [vmem:[%s500 + $0x18] sm:$0xff]
      %v3939 = vld [vmem:[%s500 + $0x20] sm:$0xff]
      %v3940 = vld [vmem:[%s500 + $0x28] sm:$0xff]
      %v3941 = vld [vmem:[%s500 + $0x30] sm:$0xff]
      %v3942 = vld [vmem:[%s500 + $0x38] sm:$0xff]
      %v3943 = vld [vmem:[%s500 + $0x40] sm:$0xff]
      %v3944 = vld [vmem:[%s500 + $0x48] sm:$0xff]
      %v3945 = vld [vmem:[%s500 + $0x50] sm:$0xff]
      %v3946 = vld [vmem:[%s500 + $0x58] sm:$0xff]
      %v3947 = vld [vmem:[%s500 + $0x60] sm:$0xff]
      %v3948 = vld [vmem:[%s500 + $0x68] sm:$0xff]
      %v3949 = vld [vmem:[%s500 + $0x70] sm:$0xff]
      %v3950 = vld [vmem:[%s500 + $0x78] sm:$0xff]
      %v3951 = vld [vmem:[%s500 + $0x80] sm:$0xff]
      %v3952 = vld [vmem:[%s500 + $0x88] sm:$0xff]
      %v3953 = vld [vmem:[%s500 + $0x90] sm:$0xff]
      %v3954 = vld [vmem:[%s500 + $0x98] sm:$0xff]
      %v3955 = vld [vmem:[%s500 + $0xa0] sm:$0xff]
      %v3956 = vld [vmem:[%s500 + $0xa8] sm:$0xff]
      %v3957 = vld [vmem:[%s500 + $0xb0] sm:$0xff]
      %v3958 = vld [vmem:[%s500 + $0xb8] sm:$0xff]
      %v3959 = vld [vmem:[%s500 + $0xc0] sm:$0xff]
      %v3960 = vld [vmem:[%s500 + $0xc8] sm:$0xff]
      %v3961 = vld [vmem:[%s500 + $0xd0] sm:$0xff]
      %v3962 = vld [vmem:[%s500 + $0xd8] sm:$0xff]
      %v3963 = vld [vmem:[%s500 + $0xe0] sm:$0xff]
      %v3964 = vld [vmem:[%s500 + $0xe8] sm:$0xff]
      %v3965 = vld [vmem:[%s500 + $0xf0] sm:$0xff]
      %v3966 = vld [vmem:[%s500 + $0xf8] sm:$0xff]
      %v3967 = vld [vmem:[%s500 + $0x100] sm:$0xff]
      %v3968 = vld [vmem:[%s500 + $0x108] sm:$0xff]
      %v3969 = vld [vmem:[%s500 + $0x110] sm:$0x3]
      %s3970 = scalar_lea.vmem %s1, 384
      %v3971 = vld [vmem:[%s3970] sm:$0xf]
      %v3972 = vld [vmem:[%s3970 + $0x4] sm:$0xf]
      %v3973 = vld [vmem:[%s3970 + $0x8] sm:$0xf]
      %v3974 = vld [vmem:[%s3970 + $0xc] sm:$0xf]
      %v3975 = vld [vmem:[%s3970 + $0x10] sm:$0xf]
      %v3976 = vld [vmem:[%s3970 + $0x14] sm:$0xf]
      %v3977 = vld [vmem:[%s3970 + $0x18] sm:$0xf]
      %v3978 = vld [vmem:[%s3970 + $0x1c] sm:$0xf]
      %v3979 = vld [vmem:[%s3970 + $0x20] sm:$0xf]
      %v3980 = vld [vmem:[%s3970 + $0x24] sm:$0xf]
      %v3981 = vld [vmem:[%s3970 + $0x28] sm:$0xf]
      %v3982 = vld [vmem:[%s3970 + $0x2c] sm:$0xf]
      %v3983 = vld [vmem:[%s3970 + $0x30] sm:$0xf]
      %v3984 = vld [vmem:[%s3970 + $0x34] sm:$0xf]
      %v3985 = vld [vmem:[%s3970 + $0x38] sm:$0xf]
      %v3986 = vld [vmem:[%s3970 + $0x3c] sm:$0xf]
      %v4020 = vrot.slane %v3937, 2
      %v4021 = vrot.slane %v3938, 2
      %v4022 = vsel %vm3438, %v4020, %v4021
      %v4023 = vrot.slane %v3939, 2
      %v4024 = vsel %vm3438, %v4021, %v4023
      %v4025 = vrot.slane %v3940, 2
      %v4026 = vsel %vm3438, %v4023, %v4025
      %v4027 = vrot.slane %v3941, 2
      %v4028 = vsel %vm3438, %v4025, %v4027
      %v4029 = vrot.slane %v3942, 2
      %v4030 = vsel %vm3438, %v4027, %v4029
      %v4031 = vrot.slane %v3943, 2
      %v4032 = vsel %vm3438, %v4029, %v4031
      %v4033 = vrot.slane %v3944, 2
      %v4034 = vsel %vm3438, %v4031, %v4033
      %v4035 = vrot.slane %v3945, 2
      %v4036 = vsel %vm3438, %v4033, %v4035
      %v4037 = vrot.slane %v3946, 2
      %v4038 = vsel %vm3438, %v4035, %v4037
      %v4039 = vrot.slane %v3947, 2
      %v4040 = vsel %vm3438, %v4037, %v4039
      %v4041 = vrot.slane %v3948, 2
      %v4042 = vsel %vm3438, %v4039, %v4041
      %v4043 = vrot.slane %v3949, 2
      %v4044 = vsel %vm3438, %v4041, %v4043
      %v4045 = vrot.slane %v3950, 2
      %v4046 = vsel %vm3438, %v4043, %v4045
      %v4047 = vrot.slane %v3951, 2
      %v4048 = vsel %vm3438, %v4045, %v4047
      %v4049 = vrot.slane %v3952, 2
      %v4050 = vsel %vm3438, %v4047, %v4049
      %v4051 = vrot.slane %v3953, 2
      %v4052 = vsel %vm3438, %v4049, %v4051
      %v4053 = vrot.slane %v3954, 2
      %v4054 = vsel %vm3438, %v4051, %v4053
      %v4055 = vrot.slane %v3955, 2
      %v4056 = vsel %vm3438, %v4053, %v4055
      %v4057 = vrot.slane %v3956, 2
      %v4058 = vsel %vm3438, %v4055, %v4057
      %v4059 = vrot.slane %v3957, 2
      %v4060 = vsel %vm3438, %v4057, %v4059
      %v4061 = vrot.slane %v3958, 2
      %v4062 = vsel %vm3438, %v4059, %v4061
      %v4063 = vrot.slane %v3959, 2
      %v4064 = vsel %vm3438, %v4061, %v4063
      %v4065 = vrot.slane %v3960, 2
      %v4066 = vsel %vm3438, %v4063, %v4065
      %v4067 = vrot.slane %v3961, 2
      %v4068 = vsel %vm3438, %v4065, %v4067
      %v4069 = vrot.slane %v3962, 2
      %v4070 = vsel %vm3438, %v4067, %v4069
      %v4071 = vrot.slane %v3963, 2
      %v4072 = vsel %vm3438, %v4069, %v4071
      %v4073 = vrot.slane %v3964, 2
      %v4074 = vsel %vm3438, %v4071, %v4073
      %v4075 = vrot.slane %v3965, 2
      %v4076 = vsel %vm3438, %v4073, %v4075
      %v4077 = vrot.slane %v3966, 2
      %v4078 = vsel %vm3438, %v4075, %v4077
      %v4079 = vrot.slane %v3967, 2
      %v4080 = vsel %vm3438, %v4077, %v4079
      %v4081 = vrot.slane %v3968, 2
      %v4082 = vsel %vm3438, %v4079, %v4081
      %v4083 = vrot.slane %v3969, 2
      %v4084 = vsel %vm3438, %v4081, %v4083
      %v4133 = vunpack.c.l.b16 %v3971
      %v4134 = vunpack.c.l.b16 %v3972
      %v4135 = vunpack.c.l.b16 %v3973
      %v4136 = vunpack.c.l.b16 %v3974
      %v4137 = vunpack.c.l.b16 %v3975
      %v4138 = vunpack.c.l.b16 %v3976
      %v4139 = vunpack.c.l.b16 %v3977
      %v4140 = vunpack.c.l.b16 %v3978
      %v4141 = vunpack.c.l.b16 %v3979
      %v4142 = vunpack.c.l.b16 %v3980
      %v4143 = vunpack.c.l.b16 %v3981
      %v4144 = vunpack.c.l.b16 %v3982
      %v4145 = vunpack.c.l.b16 %v3983
      %v4146 = vunpack.c.l.b16 %v3984
      %v4147 = vunpack.c.l.b16 %v3985
      %v4148 = vunpack.c.l.b16 %v3986
      %v4149 = vpack.c.b16 %v4134, %v4133
      %v4150 = vpack.c.b16 %v4136, %v4135
      %v4151 = vpack.c.b16 %v4138, %v4137
      %v4152 = vpack.c.b16 %v4140, %v4139
      %v4153 = vpack.c.b16 %v4142, %v4141
      %v4154 = vpack.c.b16 %v4144, %v4143
      %v4155 = vpack.c.b16 %v4146, %v4145
      %v4156 = vpack.c.b16 %v4148, %v4147
      %4165 = vmatprep.subr.bf16.mxu0 0
      %4166 = vmatpush1.bf16.msra.mxu0 %v4149
      %4167 = vmatprep.subr.bf16.mxu0 0
      %4168 = vmatpush1.bf16.msra.mxu0 %v4150
      %4169 = vmatprep.subr.bf16.mxu0 0
      %4170 = vmatpush1.bf16.msra.mxu0 %v4151
      %4171 = vmatprep.subr.bf16.mxu0 0
      %4172 = vmatpush1.bf16.msra.mxu0 %v4152
      %4173 = vmatprep.subr.bf16.mxu0 0
      %4174 = vmatpush1.bf16.msra.mxu0 %v4153
      %4175 = vmatprep.subr.bf16.mxu0 0
      %4176 = vmatpush1.bf16.msra.mxu0 %v4154
      %4177 = vmatprep.subr.bf16.mxu0 0
      %4178 = vmatpush1.bf16.msra.mxu0 %v4155
      %4179 = vmatprep.subr.bf16.mxu0 0
      %4180 = vmatpush1.bf16.msra.mxu0 %v4156
      %4181 = vmatprep.subr.bf16.mxu0 0
      %4182 = vmatpush1.bf16.msra.mxu0 0
      %4183 = vmatprep.subr.bf16.mxu0 0
      %4184 = vmatpush1.bf16.msra.mxu0 0
      %4185 = vmatprep.subr.bf16.mxu0 0
      %4186 = vmatpush1.bf16.msra.mxu0 0
      %4187 = vmatprep.subr.bf16.mxu0 0
      %4188 = vmatpush1.bf16.msra.mxu0 0
      %4189 = vmatprep.subr.bf16.mxu0 0
      %4190 = vmatpush1.bf16.msra.mxu0 0
      %4191 = vmatprep.subr.bf16.mxu0 0
      %4192 = vmatpush1.bf16.msra.mxu0 0
      %4193 = vmatprep.subr.bf16.mxu0 0
      %4194 = vmatpush1.bf16.msra.mxu0 0
      %4195 = vmatprep.subr.bf16.mxu0 0
      %4196 = vmatpush1.bf16.msra.mxu0 0
      %4197 = vmatprep.mubr.bf16.mxu0 0
      %4198 = vmatmul.mubr.bf16.gmra.mrb[0].mxu0 %v4022
      %v4199 = vpop.f32.mrb[0].mxu0
      %v4200 = vadd.f32 0.0, %v4199
      %v4201 = vpop.f32.mrb[0].mxu0
      %v4202 = vpop.f32.mrb[0].mxu0
      %v4203 = vadd.f32 0.0, %v4202
      %v4204 = vpop.f32.mrb[0].mxu0
      %4205 = vmatprep.mubr.bf16.mxu0 0
      %4206 = vmatmul.mubr.bf16.gmra.mrb[0].mxu0 %v4024
      %v4207 = vpop.f32.mrb[0].mxu0
      %v4208 = vadd.f32 0.0, %v4207
      %v4209 = vpop.f32.mrb[0].mxu0
      %v4210 = vpop.f32.mrb[0].mxu0
      %v4211 = vadd.f32 0.0, %v4210
      %v4212 = vpop.f32.mrb[0].mxu0
      %4213 = vmatprep.mubr.bf16.mxu0 0
      %4214 = vmatmul.mubr.bf16.gmra.mrb[0].mxu0 %v4026
      %v4215 = vpop.f32.mrb[0].mxu0
      %v4216 = vadd.f32 0.0, %v4215
      %v4217 = vpop.f32.mrb[0].mxu0
      %v4218 = vpop.f32.mrb[0].mxu0
      %v4219 = vadd.f32 0.0, %v4218
      %v4220 = vpop.f32.mrb[0].mxu0
      %4221 = vmatprep.mubr.bf16.mxu0 0
      %4222 = vmatmul.mubr.bf16.gmra.mrb[0].mxu0 %v4028
      %v4223 = vpop.f32.mrb[0].mxu0
      %v4224 = vadd.f32 0.0, %v4223
      %v4225 = vpop.f32.mrb[0].mxu0
      %v4226 = vpop.f32.mrb[0].mxu0
      %v4227 = vadd.f32 0.0, %v4226
      %v4228 = vpop.f32.mrb[0].mxu0
      %4229 = vmatprep.mubr.bf16.mxu0 0
      %4230 = vmatmul.mubr.bf16.gmra.mrb[0].mxu0 %v4030
      %v4231 = vpop.f32.mrb[0].mxu0
      %v4232 = vadd.f32 0.0, %v4231
      %v4233 = vpop.f32.mrb[0].mxu0
      %v4234 = vpop.f32.mrb[0].mxu0
      %v4235 = vadd.f32 0.0, %v4234
      %v4236 = vpop.f32.mrb[0].mxu0
      %4237 = vmatprep.mubr.bf16.mxu0 0
      %4238 = vmatmul.mubr.bf16.gmra.mrb[0].mxu0 %v4032
      %v4239 = vpop.f32.mrb[0].mxu0
      %v4240 = vadd.f32 0.0, %v4239
      %v4241 = vpop.f32.mrb[0].mxu0
      %v4242 = vpop.f32.mrb[0].mxu0
      %v4243 = vadd.f32 0.0, %v4242
      %v4244 = vpop.f32.mrb[0].mxu0
      %4245 = vmatprep.mubr.bf16.mxu0 0
      %4246 = vmatmul.mubr.bf16.gmra.mrb[0].mxu0 %v4034
      %v4247 = vpop.f32.mrb[0].mxu0
      %v4248 = vadd.f32 0.0, %v4247
      %v4249 = vpop.f32.mrb[0].mxu0
      %v4250 = vpop.f32.mrb[0].mxu0
      %v4251 = vadd.f32 0.0, %v4250
      %v4252 = vpop.f32.mrb[0].mxu0
      %4253 = vmatprep.mubr.bf16.mxu0 0
      %4254 = vmatmul.mubr.bf16.gmra.mrb[0].mxu0 %v4036
      %v4255 = vpop.f32.mrb[0].mxu0
      %v4256 = vadd.f32 0.0, %v4255
      %v4257 = vpop.f32.mrb[0].mxu0
      %v4258 = vpop.f32.mrb[0].mxu0
      %v4259 = vadd.f32 0.0, %v4258
      %v4260 = vpop.f32.mrb[0].mxu0
      %4261 = vmatprep.mubr.bf16.mxu0 0
      %4262 = vmatmul.mubr.bf16.gmra.mrb[0].mxu0 %v4038
      %v4263 = vpop.f32.mrb[0].mxu0
      %v4264 = vadd.f32 0.0, %v4263
      %v4265 = vpop.f32.mrb[0].mxu0
      %v4266 = vpop.f32.mrb[0].mxu0
      %v4267 = vadd.f32 0.0, %v4266
      %v4268 = vpop.f32.mrb[0].mxu0
      %4269 = vmatprep.mubr.bf16.mxu0 0
      %4270 = vmatmul.mubr.bf16.gmra.mrb[0].mxu0 %v4040
      %v4271 = vpop.f32.mrb[0].mxu0
      %v4272 = vadd.f32 0.0, %v4271
      %v4273 = vpop.f32.mrb[0].mxu0
      %v4274 = vpop.f32.mrb[0].mxu0
      %v4275 = vadd.f32 0.0, %v4274
      %v4276 = vpop.f32.mrb[0].mxu0
      %4277 = vmatprep.mubr.bf16.mxu0 0
      %4278 = vmatmul.mubr.bf16.gmra.mrb[0].mxu0 %v4042
      %v4279 = vpop.f32.mrb[0].mxu0
      %v4280 = vadd.f32 0.0, %v4279
      %v4281 = vpop.f32.mrb[0].mxu0
      %v4282 = vpop.f32.mrb[0].mxu0
      %v4283 = vadd.f32 0.0, %v4282
      %v4284 = vpop.f32.mrb[0].mxu0
      %4285 = vmatprep.mubr.bf16.mxu0 0
      %4286 = vmatmul.mubr.bf16.gmra.mrb[0].mxu0 %v4044
      %v4287 = vpop.f32.mrb[0].mxu0
      %v4288 = vadd.f32 0.0, %v4287
      %v4289 = vpop.f32.mrb[0].mxu0
      %v4290 = vpop.f32.mrb[0].mxu0
      %v4291 = vadd.f32 0.0, %v4290
      %v4292 = vpop.f32.mrb[0].mxu0
      %4293 = vmatprep.mubr.bf16.mxu0 0
      %4294 = vmatmul.mubr.bf16.gmra.mrb[0].mxu0 %v4046
      %v4295 = vpop.f32.mrb[0].mxu0
      %v4296 = vadd.f32 0.0, %v4295
      %v4297 = vpop.f32.mrb[0].mxu0
      %v4298 = vpop.f32.mrb[0].mxu0
      %v4299 = vadd.f32 0.0, %v4298
      %v4300 = vpop.f32.mrb[0].mxu0
      %4301 = vmatprep.mubr.bf16.mxu0 0
      %4302 = vmatmul.mubr.bf16.gmra.mrb[0].mxu0 %v4048
      %v4303 = vpop.f32.mrb[0].mxu0
      %v4304 = vadd.f32 0.0, %v4303
      %v4305 = vpop.f32.mrb[0].mxu0
      %v4306 = vpop.f32.mrb[0].mxu0
      %v4307 = vadd.f32 0.0, %v4306
      %v4308 = vpop.f32.mrb[0].mxu0
      %4309 = vmatprep.mubr.bf16.mxu0 0
      %4310 = vmatmul.mubr.bf16.gmra.mrb[0].mxu0 %v4050
      %v4311 = vpop.f32.mrb[0].mxu0
      %v4312 = vadd.f32 0.0, %v4311
      %v4313 = vpop.f32.mrb[0].mxu0
      %v4314 = vpop.f32.mrb[0].mxu0
      %v4315 = vadd.f32 0.0, %v4314
      %v4316 = vpop.f32.mrb[0].mxu0
      %4317 = vmatprep.mubr.bf16.mxu0 0
      %4318 = vmatmul.mubr.bf16.gmra.mrb[0].mxu0 %v4052
      %v4319 = vpop.f32.mrb[0].mxu0
      %v4320 = vadd.f32 0.0, %v4319
      %v4321 = vpop.f32.mrb[0].mxu0
      %v4322 = vpop.f32.mrb[0].mxu0
      %v4323 = vadd.f32 0.0, %v4322
      %v4324 = vpop.f32.mrb[0].mxu0
      %4325 = vmatprep.mubr.bf16.mxu0 0
      %4326 = vmatmul.mubr.bf16.gmra.mrb[0].mxu0 %v4054
      %v4327 = vpop.f32.mrb[0].mxu0
      %v4328 = vadd.f32 0.0, %v4327
      %v4329 = vpop.f32.mrb[0].mxu0
      %v4330 = vpop.f32.mrb[0].mxu0
      %v4331 = vadd.f32 0.0, %v4330
      %v4332 = vpop.f32.mrb[0].mxu0
      %4333 = vmatprep.mubr.bf16.mxu0 0
      %4334 = vmatmul.mubr.bf16.gmra.mrb[0].mxu0 %v4056
      %v4335 = vpop.f32.mrb[0].mxu0
      %v4336 = vadd.f32 0.0, %v4335
      %v4337 = vpop.f32.mrb[0].mxu0
      %v4338 = vpop.f32.mrb[0].mxu0
      %v4339 = vadd.f32 0.0, %v4338
      %v4340 = vpop.f32.mrb[0].mxu0
      %4341 = vmatprep.mubr.bf16.mxu0 0
      %4342 = vmatmul.mubr.bf16.gmra.mrb[0].mxu0 %v4058
      %v4343 = vpop.f32.mrb[0].mxu0
      %v4344 = vadd.f32 0.0, %v4343
      %v4345 = vpop.f32.mrb[0].mxu0
      %v4346 = vpop.f32.mrb[0].mxu0
      %v4347 = vadd.f32 0.0, %v4346
      %v4348 = vpop.f32.mrb[0].mxu0
      %4349 = vmatprep.mubr.bf16.mxu0 0
      %4350 = vmatmul.mubr.bf16.gmra.mrb[0].mxu0 %v4060
      %v4351 = vpop.f32.mrb[0].mxu0
      %v4352 = vadd.f32 0.0, %v4351
      %v4353 = vpop.f32.mrb[0].mxu0
      %v4354 = vpop.f32.mrb[0].mxu0
      %v4355 = vadd.f32 0.0, %v4354
      %v4356 = vpop.f32.mrb[0].mxu0
      %4357 = vmatprep.mubr.bf16.mxu0 0
      %4358 = vmatmul.mubr.bf16.gmra.mrb[0].mxu0 %v4062
      %v4359 = vpop.f32.mrb[0].mxu0
      %v4360 = vadd.f32 0.0, %v4359
      %v4361 = vpop.f32.mrb[0].mxu0
      %v4362 = vpop.f32.mrb[0].mxu0
      %v4363 = vadd.f32 0.0, %v4362
      %v4364 = vpop.f32.mrb[0].mxu0
      %4365 = vmatprep.mubr.bf16.mxu0 0
      %4366 = vmatmul.mubr.bf16.gmra.mrb[0].mxu0 %v4064
      %v4367 = vpop.f32.mrb[0].mxu0
      %v4368 = vadd.f32 0.0, %v4367
      %v4369 = vpop.f32.mrb[0].mxu0
      %v4370 = vpop.f32.mrb[0].mxu0
      %v4371 = vadd.f32 0.0, %v4370
      %v4372 = vpop.f32.mrb[0].mxu0
      %4373 = vmatprep.mubr.bf16.mxu0 0
      %4374 = vmatmul.mubr.bf16.gmra.mrb[0].mxu0 %v4066
      %v4375 = vpop.f32.mrb[0].mxu0
      %v4376 = vadd.f32 0.0, %v4375
      %v4377 = vpop.f32.mrb[0].mxu0
      %v4378 = vpop.f32.mrb[0].mxu0
      %v4379 = vadd.f32 0.0, %v4378
      %v4380 = vpop.f32.mrb[0].mxu0
      %4381 = vmatprep.mubr.bf16.mxu0 0
      %4382 = vmatmul.mubr.bf16.gmra.mrb[0].mxu0 %v4068
      %v4383 = vpop.f32.mrb[0].mxu0
      %v4384 = vadd.f32 0.0, %v4383
      %v4385 = vpop.f32.mrb[0].mxu0
      %v4386 = vpop.f32.mrb[0].mxu0
      %v4387 = vadd.f32 0.0, %v4386
      %v4388 = vpop.f32.mrb[0].mxu0
      %4389 = vmatprep.mubr.bf16.mxu0 0
      %4390 = vmatmul.mubr.bf16.gmra.mrb[0].mxu0 %v4070
      %v4391 = vpop.f32.mrb[0].mxu0
      %v4392 = vadd.f32 0.0, %v4391
      %v4393 = vpop.f32.mrb[0].mxu0
      %v4394 = vpop.f32.mrb[0].mxu0
      %v4395 = vadd.f32 0.0, %v4394
      %v4396 = vpop.f32.mrb[0].mxu0
      %4397 = vmatprep.mubr.bf16.mxu0 0
      %4398 = vmatmul.mubr.bf16.gmra.mrb[0].mxu0 %v4072
      %v4399 = vpop.f32.mrb[0].mxu0
      %v4400 = vadd.f32 0.0, %v4399
      %v4401 = vpop.f32.mrb[0].mxu0
      %v4402 = vpop.f32.mrb[0].mxu0
      %v4403 = vadd.f32 0.0, %v4402
      %v4404 = vpop.f32.mrb[0].mxu0
      %4405 = vmatprep.mubr.bf16.mxu0 0
      %4406 = vmatmul.mubr.bf16.gmra.mrb[0].mxu0 %v4074
      %v4407 = vpop.f32.mrb[0].mxu0
      %v4408 = vadd.f32 0.0, %v4407
      %v4409 = vpop.f32.mrb[0].mxu0
      %v4410 = vpop.f32.mrb[0].mxu0
      %v4411 = vadd.f32 0.0, %v4410
      %v4412 = vpop.f32.mrb[0].mxu0
      %4413 = vmatprep.mubr.bf16.mxu0 0
      %4414 = vmatmul.mubr.bf16.gmra.mrb[0].mxu0 %v4076
      %v4415 = vpop.f32.mrb[0].mxu0
      %v4416 = vadd.f32 0.0, %v4415
      %v4417 = vpop.f32.mrb[0].mxu0
      %v4418 = vpop.f32.mrb[0].mxu0
      %v4419 = vadd.f32 0.0, %v4418
      %v4420 = vpop.f32.mrb[0].mxu0
      %4421 = vmatprep.mubr.bf16.mxu0 0
      %4422 = vmatmul.mubr.bf16.gmra.mrb[0].mxu0 %v4078
      %v4423 = vpop.f32.mrb[0].mxu0
      %v4424 = vadd.f32 0.0, %v4423
      %v4425 = vpop.f32.mrb[0].mxu0
      %v4426 = vpop.f32.mrb[0].mxu0
      %v4427 = vadd.f32 0.0, %v4426
      %v4428 = vpop.f32.mrb[0].mxu0
      %4429 = vmatprep.mubr.bf16.mxu0 0
      %4430 = vmatmul.mubr.bf16.gmra.mrb[0].mxu0 %v4080
      %v4431 = vpop.f32.mrb[0].mxu0
      %v4432 = vadd.f32 0.0, %v4431
      %v4433 = vpop.f32.mrb[0].mxu0
      %v4434 = vpop.f32.mrb[0].mxu0
      %v4435 = vadd.f32 0.0, %v4434
      %v4436 = vpop.f32.mrb[0].mxu0
      %4437 = vmatprep.mubr.bf16.mxu0 0
      %4438 = vmatmul.mubr.bf16.gmra.mrb[0].mxu0 %v4082
      %v4439 = vpop.f32.mrb[0].mxu0
      %v4440 = vadd.f32 0.0, %v4439
      %v4441 = vpop.f32.mrb[0].mxu0
      %v4442 = vpop.f32.mrb[0].mxu0
      %v4443 = vadd.f32 0.0, %v4442
      %v4444 = vpop.f32.mrb[0].mxu0
      %4445 = vmatprep.mubr.bf16.mxu0 0
      %4446 = vmatmul.mubr.bf16.gmra.mrb[0].mxu0 %v4084
      %v4447 = vpop.f32.mrb[0].mxu0
      %v4448 = vadd.f32 0.0, %v4447
      %v4449 = vpop.f32.mrb[0].mxu0
      %v4450 = vpop.f32.mrb[0].mxu0
      %v4451 = vadd.f32 0.0, %v4450
      %v4452 = vpop.f32.mrb[0].mxu0
      %4453 = vdwg.mxu0
      %v4454 = vadd.f32 %v3873, %v4200
      %v4455 = vadd.f32 %v3874, %v4203
      %v4456 = vadd.f32 %v3875, %v4208
      %v4457 = vadd.f32 %v3876, %v4211
      %v4458 = vadd.f32 %v3877, %v4216
      %v4459 = vadd.f32 %v3878, %v4219
      %v4460 = vadd.f32 %v3879, %v4224
      %v4461 = vadd.f32 %v3880, %v4227
      %v4462 = vadd.f32 %v3881, %v4232
      %v4463 = vadd.f32 %v3882, %v4235
      %v4464 = vadd.f32 %v3883, %v4240
      %v4465 = vadd.f32 %v3884, %v4243
      %v4466 = vadd.f32 %v3885, %v4248
      %v4467 = vadd.f32 %v3886, %v4251
      %v4468 = vadd.f32 %v3887, %v4256
      %v4469 = vadd.f32 %v3888, %v4259
      %v4470 = vadd.f32 %v3889, %v4264
      %v4471 = vadd.f32 %v3890, %v4267
      %v4472 = vadd.f32 %v3891, %v4272
      %v4473 = vadd.f32 %v3892, %v4275
      %v4474 = vadd.f32 %v3893, %v4280
      %v4475 = vadd.f32 %v3894, %v4283
      %v4476 = vadd.f32 %v3895, %v4288
      %v4477 = vadd.f32 %v3896, %v4291
      %v4478 = vadd.f32 %v3897, %v4296
      %v4479 = vadd.f32 %v3898, %v4299
      %v4480 = vadd.f32 %v3899, %v4304
      %v4481 = vadd.f32 %v3900, %v4307
      %v4482 = vadd.f32 %v3901, %v4312
      %v4483 = vadd.f32 %v3902, %v4315
      %v4484 = vadd.f32 %v3903, %v4320
      %v4485 = vadd.f32 %v3904, %v4323
      %v4486 = vadd.f32 %v3905, %v4328
      %v4487 = vadd.f32 %v3906, %v4331
      %v4488 = vadd.f32 %v3907, %v4336
      %v4489 = vadd.f32 %v3908, %v4339
      %v4490 = vadd.f32 %v3909, %v4344
      %v4491 = vadd.f32 %v3910, %v4347
      %v4492 = vadd.f32 %v3911, %v4352
      %v4493 = vadd.f32 %v3912, %v4355
      %v4494 = vadd.f32 %v3913, %v4360
      %v4495 = vadd.f32 %v3914, %v4363
      %v4496 = vadd.f32 %v3915, %v4368
      %v4497 = vadd.f32 %v3916, %v4371
      %v4498 = vadd.f32 %v3917, %v4376
      %v4499 = vadd.f32 %v3918, %v4379
      %v4500 = vadd.f32 %v3919, %v4384
      %v4501 = vadd.f32 %v3920, %v4387
      %v4502 = vadd.f32 %v3921, %v4392
      %v4503 = vadd.f32 %v3922, %v4395
      %v4504 = vadd.f32 %v3923, %v4400
      %v4505 = vadd.f32 %v3924, %v4403
      %v4506 = vadd.f32 %v3925, %v4408
      %v4507 = vadd.f32 %v3926, %v4411
      %v4508 = vadd.f32 %v3927, %v4416
      %v4509 = vadd.f32 %v3928, %v4419
      %v4510 = vadd.f32 %v3929, %v4424
      %v4511 = vadd.f32 %v3930, %v4427
      %v4512 = vadd.f32 %v3931, %v4432
      %v4513 = vadd.f32 %v3932, %v4435
      %v4514 = vadd.f32 %v3933, %v4440
      %v4515 = vadd.f32 %v3934, %v4443
      %v4516 = vadd.f32 %v3935, %v4448
      %v4517 = vadd.f32 %v3936, %v4451
      %v4518 = vld [vmem:[%s500 + $0x110] sm:$0x7]
      %s4519 = scalar_lea.vmem %s1, 448
      %v4520 = vld [vmem:[%s4519] sm:$0xf]
      %v4521 = vld [vmem:[%s4519 + $0x4] sm:$0xf]
      %v4522 = vld [vmem:[%s4519 + $0x8] sm:$0xf]
      %v4523 = vld [vmem:[%s4519 + $0xc] sm:$0xf]
      %v4524 = vld [vmem:[%s4519 + $0x10] sm:$0xf]
      %v4525 = vld [vmem:[%s4519 + $0x14] sm:$0xf]
      %v4526 = vld [vmem:[%s4519 + $0x18] sm:$0xf]
      %v4527 = vld [vmem:[%s4519 + $0x1c] sm:$0xf]
      %v4528 = vld [vmem:[%s4519 + $0x20] sm:$0xf]
      %v4529 = vld [vmem:[%s4519 + $0x24] sm:$0xf]
      %v4530 = vld [vmem:[%s4519 + $0x28] sm:$0xf]
      %v4531 = vld [vmem:[%s4519 + $0x2c] sm:$0xf]
      %v4532 = vld [vmem:[%s4519 + $0x30] sm:$0xf]
      %v4533 = vld [vmem:[%s4519 + $0x34] sm:$0xf]
      %v4534 = vld [vmem:[%s4519 + $0x38] sm:$0xf]
      %v4535 = vld [vmem:[%s4519 + $0x3c] sm:$0xf]
      %vm4536 = vsmask.f32 5376
      %v4538 = vshrl.u32 %v3937, 16
      %v4540 = vrot.slane %v4538, 2
      %v4541 = vshll.u32 %v3937, 16
      %v4543 = vrot.slane %v4541, 3
      %v4544 = vor.u32 %v4540, %v4543
      %v4546 = vshrl.u32 %v3938, 16
      %v4548 = vrot.slane %v4546, 2
      %v4549 = vshll.u32 %v3938, 16
      %v4551 = vrot.slane %v4549, 3
      %v4552 = vor.u32 %v4548, %v4551
      %v4553 = vsel %vm4536, %v4544, %v4552
      %v4555 = vshrl.u32 %v3939, 16
      %v4557 = vrot.slane %v4555, 2
      %v4558 = vshll.u32 %v3939, 16
      %v4560 = vrot.slane %v4558, 3
      %v4561 = vor.u32 %v4557, %v4560
      %v4562 = vsel %vm4536, %v4552, %v4561
      %v4564 = vshrl.u32 %v3940, 16
      %v4566 = vrot.slane %v4564, 2
      %v4567 = vshll.u32 %v3940, 16
      %v4569 = vrot.slane %v4567, 3
      %v4570 = vor.u32 %v4566, %v4569
      %v4571 = vsel %vm4536, %v4561, %v4570
      %v4573 = vshrl.u32 %v3941, 16
      %v4575 = vrot.slane %v4573, 2
      %v4576 = vshll.u32 %v3941, 16
      %v4578 = vrot.slane %v4576, 3
      %v4579 = vor.u32 %v4575, %v4578
      %v4580 = vsel %vm4536, %v4570, %v4579
      %v4582 = vshrl.u32 %v3942, 16
      %v4584 = vrot.slane %v4582, 2
      %v4585 = vshll.u32 %v3942, 16
      %v4587 = vrot.slane %v4585, 3
      %v4588 = vor.u32 %v4584, %v4587
      %v4589 = vsel %vm4536, %v4579, %v4588
      %v4591 = vshrl.u32 %v3943, 16
      %v4593 = vrot.slane %v4591, 2
      %v4594 = vshll.u32 %v3943, 16
      %v4596 = vrot.slane %v4594, 3
      %v4597 = vor.u32 %v4593, %v4596
      %v4598 = vsel %vm4536, %v4588, %v4597
      %v4600 = vshrl.u32 %v3944, 16
      %v4602 = vrot.slane %v4600, 2
      %v4603 = vshll.u32 %v3944, 16
      %v4605 = vrot.slane %v4603, 3
      %v4606 = vor.u32 %v4602, %v4605
      %v4607 = vsel %vm4536, %v4597, %v4606
      %v4609 = vshrl.u32 %v3945, 16
      %v4611 = vrot.slane %v4609, 2
      %v4612 = vshll.u32 %v3945, 16
      %v4614 = vrot.slane %v4612, 3
      %v4615 = vor.u32 %v4611, %v4614
      %v4616 = vsel %vm4536, %v4606, %v4615
      %v4618 = vshrl.u32 %v3946, 16
      %v4620 = vrot.slane %v4618, 2
      %v4621 = vshll.u32 %v3946, 16
      %v4623 = vrot.slane %v4621, 3
      %v4624 = vor.u32 %v4620, %v4623
      %v4625 = vsel %vm4536, %v4615, %v4624
      %v4627 = vshrl.u32 %v3947, 16
      %v4629 = vrot.slane %v4627, 2
      %v4630 = vshll.u32 %v3947, 16
      %v4632 = vrot.slane %v4630, 3
      %v4633 = vor.u32 %v4629, %v4632
      %v4634 = vsel %vm4536, %v4624, %v4633
      %v4636 = vshrl.u32 %v3948, 16
      %v4638 = vrot.slane %v4636, 2
      %v4639 = vshll.u32 %v3948, 16
      %v4641 = vrot.slane %v4639, 3
      %v4642 = vor.u32 %v4638, %v4641
      %v4643 = vsel %vm4536, %v4633, %v4642
      %v4645 = vshrl.u32 %v3949, 16
      %v4647 = vrot.slane %v4645, 2
      %v4648 = vshll.u32 %v3949, 16
      %v4650 = vrot.slane %v4648, 3
      %v4651 = vor.u32 %v4647, %v4650
      %v4652 = vsel %vm4536, %v4642, %v4651
      %v4654 = vshrl.u32 %v3950, 16
      %v4656 = vrot.slane %v4654, 2
      %v4657 = vshll.u32 %v3950, 16
      %v4659 = vrot.slane %v4657, 3
      %v4660 = vor.u32 %v4656, %v4659
      %v4661 = vsel %vm4536, %v4651, %v4660
      %v4663 = vshrl.u32 %v3951, 16
      %v4665 = vrot.slane %v4663, 2
      %v4666 = vshll.u32 %v3951, 16
      %v4668 = vrot.slane %v4666, 3
      %v4669 = vor.u32 %v4665, %v4668
      %v4670 = vsel %vm4536, %v4660, %v4669
      %v4672 = vshrl.u32 %v3952, 16
      %v4674 = vrot.slane %v4672, 2
      %v4675 = vshll.u32 %v3952, 16
      %v4677 = vrot.slane %v4675, 3
      %v4678 = vor.u32 %v4674, %v4677
      %v4679 = vsel %vm4536, %v4669, %v4678
      %v4681 = vshrl.u32 %v3953, 16
      %v4683 = vrot.slane %v4681, 2
      %v4684 = vshll.u32 %v3953, 16
      %v4686 = vrot.slane %v4684, 3
      %v4687 = vor.u32 %v4683, %v4686
      %v4688 = vsel %vm4536, %v4678, %v4687
      %v4690 = vshrl.u32 %v3954, 16
      %v4692 = vrot.slane %v4690, 2
      %v4693 = vshll.u32 %v3954, 16
      %v4695 = vrot.slane %v4693, 3
      %v4696 = vor.u32 %v4692, %v4695
      %v4697 = vsel %vm4536, %v4687, %v4696
      %v4699 = vshrl.u32 %v3955, 16
      %v4701 = vrot.slane %v4699, 2
      %v4702 = vshll.u32 %v3955, 16
      %v4704 = vrot.slane %v4702, 3
      %v4705 = vor.u32 %v4701, %v4704
      %v4706 = vsel %vm4536, %v4696, %v4705
      %v4708 = vshrl.u32 %v3956, 16
      %v4710 = vrot.slane %v4708, 2
      %v4711 = vshll.u32 %v3956, 16
      %v4713 = vrot.slane %v4711, 3
      %v4714 = vor.u32 %v4710, %v4713
      %v4715 = vsel %vm4536, %v4705, %v4714
      %v4717 = vshrl.u32 %v3957, 16
      %v4719 = vrot.slane %v4717, 2
      %v4720 = vshll.u32 %v3957, 16
      %v4722 = vrot.slane %v4720, 3
      %v4723 = vor.u32 %v4719, %v4722
      %v4724 = vsel %vm4536, %v4714, %v4723
      %v4726 = vshrl.u32 %v3958, 16
      %v4728 = vrot.slane %v4726, 2
      %v4729 = vshll.u32 %v3958, 16
      %v4731 = vrot.slane %v4729, 3
      %v4732 = vor.u32 %v4728, %v4731
      %v4733 = vsel %vm4536, %v4723, %v4732
      %v4735 = vshrl.u32 %v3959, 16
      %v4737 = vrot.slane %v4735, 2
      %v4738 = vshll.u32 %v3959, 16
      %v4740 = vrot.slane %v4738, 3
      %v4741 = vor.u32 %v4737, %v4740
      %v4742 = vsel %vm4536, %v4732, %v4741
      %v4744 = vshrl.u32 %v3960, 16
      %v4746 = vrot.slane %v4744, 2
      %v4747 = vshll.u32 %v3960, 16
      %v4749 = vrot.slane %v4747, 3
      %v4750 = vor.u32 %v4746, %v4749
      %v4751 = vsel %vm4536, %v4741, %v4750
      %v4753 = vshrl.u32 %v3961, 16
      %v4755 = vrot.slane %v4753, 2
      %v4756 = vshll.u32 %v3961, 16
      %v4758 = vrot.slane %v4756, 3
      %v4759 = vor.u32 %v4755, %v4758
      %v4760 = vsel %vm4536, %v4750, %v4759
      %v4762 = vshrl.u32 %v3962, 16
      %v4764 = vrot.slane %v4762, 2
      %v4765 = vshll.u32 %v3962, 16
      %v4767 = vrot.slane %v4765, 3
      %v4768 = vor.u32 %v4764, %v4767
      %v4769 = vsel %vm4536, %v4759, %v4768
      %v4771 = vshrl.u32 %v3963, 16
      %v4773 = vrot.slane %v4771, 2
      %v4774 = vshll.u32 %v3963, 16
      %v4776 = vrot.slane %v4774, 3
      %v4777 = vor.u32 %v4773, %v4776
      %v4778 = vsel %vm4536, %v4768, %v4777
      %v4780 = vshrl.u32 %v3964, 16
      %v4782 = vrot.slane %v4780, 2
      %v4783 = vshll.u32 %v3964, 16
      %v4785 = vrot.slane %v4783, 3
      %v4786 = vor.u32 %v4782, %v4785
      %v4787 = vsel %vm4536, %v4777, %v4786
      %v4789 = vshrl.u32 %v3965, 16
      %v4791 = vrot.slane %v4789, 2
      %v4792 = vshll.u32 %v3965, 16
      %v4794 = vrot.slane %v4792, 3
      %v4795 = vor.u32 %v4791, %v4794
      %v4796 = vsel %vm4536, %v4786, %v4795
      %v4798 = vshrl.u32 %v3966, 16
      %v4800 = vrot.slane %v4798, 2
      %v4801 = vshll.u32 %v3966, 16
      %v4803 = vrot.slane %v4801, 3
      %v4804 = vor.u32 %v4800, %v4803
      %v4805 = vsel %vm4536, %v4795, %v4804
      %v4807 = vshrl.u32 %v3967, 16
      %v4809 = vrot.slane %v4807, 2
      %v4810 = vshll.u32 %v3967, 16
      %v4812 = vrot.slane %v4810, 3
      %v4813 = vor.u32 %v4809, %v4812
      %v4814 = vsel %vm4536, %v4804, %v4813
      %v4816 = vshrl.u32 %v3968, 16
      %v4818 = vrot.slane %v4816, 2
      %v4819 = vshll.u32 %v3968, 16
      %v4821 = vrot.slane %v4819, 3
      %v4822 = vor.u32 %v4818, %v4821
      %v4823 = vsel %vm4536, %v4813, %v4822
      %v4825 = vshrl.u32 %v4518, 16
      %v4827 = vrot.slane %v4825, 2
      %v4828 = vshll.u32 %v4518, 16
      %v4830 = vrot.slane %v4828, 3
      %v4831 = vor.u32 %v4827, %v4830
      %v4832 = vsel %vm4536, %v4822, %v4831
      %v4881 = vunpack.c.l.b16 %v4520
      %v4882 = vunpack.c.l.b16 %v4521
      %v4883 = vunpack.c.l.b16 %v4522
      %v4884 = vunpack.c.l.b16 %v4523
      %v4885 = vunpack.c.l.b16 %v4524
      %v4886 = vunpack.c.l.b16 %v4525
      %v4887 = vunpack.c.l.b16 %v4526
      %v4888 = vunpack.c.l.b16 %v4527
      %v4889 = vunpack.c.l.b16 %v4528
      %v4890 = vunpack.c.l.b16 %v4529
      %v4891 = vunpack.c.l.b16 %v4530
      %v4892 = vunpack.c.l.b16 %v4531
      %v4893 = vunpack.c.l.b16 %v4532
      %v4894 = vunpack.c.l.b16 %v4533
      %v4895 = vunpack.c.l.b16 %v4534
      %v4896 = vunpack.c.l.b16 %v4535
      %v4897 = vpack.c.b16 %v4882, %v4881
      %v4898 = vpack.c.b16 %v4884, %v4883
      %v4899 = vpack.c.b16 %v4886, %v4885
      %v4900 = vpack.c.b16 %v4888, %v4887
      %v4901 = vpack.c.b16 %v4890, %v4889
      %v4902 = vpack.c.b16 %v4892, %v4891
      %v4903 = vpack.c.b16 %v4894, %v4893
      %v4904 = vpack.c.b16 %v4896, %v4895
      %4913 = vmatprep.subr.bf16.mxu0 0
      %4914 = vmatpush1.bf16.msra.mxu0 %v4897
      %4915 = vmatprep.subr.bf16.mxu0 0
      %4916 = vmatpush1.bf16.msra.mxu0 %v4898
      %4917 = vmatprep.subr.bf16.mxu0 0
      %4918 = vmatpush1.bf16.msra.mxu0 %v4899
      %4919 = vmatprep.subr.bf16.mxu0 0
      %4920 = vmatpush1.bf16.msra.mxu0 %v4900
      %4921 = vmatprep.subr.bf16.mxu0 0
      %4922 = vmatpush1.bf16.msra.mxu0 %v4901
      %4923 = vmatprep.subr.bf16.mxu0 0
      %4924 = vmatpush1.bf16.msra.mxu0 %v4902
      %4925 = vmatprep.subr.bf16.mxu0 0
      %4926 = vmatpush1.bf16.msra.mxu0 %v4903
      %4927 = vmatprep.subr.bf16.mxu0 0
      %4928 = vmatpush1.bf16.msra.mxu0 %v4904
      %4929 = vmatprep.subr.bf16.mxu0 0
      %4930 = vmatpush1.bf16.msra.mxu0 0
      %4931 = vmatprep.subr.bf16.mxu0 0
      %4932 = vmatpush1.bf16.msra.mxu0 0
      %4933 = vmatprep.subr.bf16.mxu0 0
      %4934 = vmatpush1.bf16.msra.mxu0 0
      %4935 = vmatprep.subr.bf16.mxu0 0
      %4936 = vmatpush1.bf16.msra.mxu0 0
      %4937 = vmatprep.subr.bf16.mxu0 0
      %4938 = vmatpush1.bf16.msra.mxu0 0
      %4939 = vmatprep.subr.bf16.mxu0 0
      %4940 = vmatpush1.bf16.msra.mxu0 0
      %4941 = vmatprep.subr.bf16.mxu0 0
      %4942 = vmatpush1.bf16.msra.mxu0 0
      %4943 = vmatprep.subr.bf16.mxu0 0
      %4944 = vmatpush1.bf16.msra.mxu0 0
      %4945 = vmatprep.mubr.bf16.mxu0 0
      %4946 = vmatmul.mubr.bf16.gmra.mrb[0].mxu0 %v4553
      %v4947 = vpop.f32.mrb[0].mxu0
      %v4948 = vadd.f32 0.0, %v4947
      %v4949 = vpop.f32.mrb[0].mxu0
      %v4950 = vpop.f32.mrb[0].mxu0
      %v4951 = vadd.f32 0.0, %v4950
      %v4952 = vpop.f32.mrb[0].mxu0
      %4953 = vmatprep.mubr.bf16.mxu0 0
      %4954 = vmatmul.mubr.bf16.gmra.mrb[0].mxu0 %v4562
      %v4955 = vpop.f32.mrb[0].mxu0
      %v4956 = vadd.f32 0.0, %v4955
      %v4957 = vpop.f32.mrb[0].mxu0
      %v4958 = vpop.f32.mrb[0].mxu0
      %v4959 = vadd.f32 0.0, %v4958
      %v4960 = vpop.f32.mrb[0].mxu0
      %4961 = vmatprep.mubr.bf16.mxu0 0
      %4962 = vmatmul.mubr.bf16.gmra.mrb[0].mxu0 %v4571
      %v4963 = vpop.f32.mrb[0].mxu0
      %v4964 = vadd.f32 0.0, %v4963
      %v4965 = vpop.f32.mrb[0].mxu0
      %v4966 = vpop.f32.mrb[0].mxu0
      %v4967 = vadd.f32 0.0, %v4966
      %v4968 = vpop.f32.mrb[0].mxu0
      %4969 = vmatprep.mubr.bf16.mxu0 0
      %4970 = vmatmul.mubr.bf16.gmra.mrb[0].mxu0 %v4580
      %v4971 = vpop.f32.mrb[0].mxu0
      %v4972 = vadd.f32 0.0, %v4971
      %v4973 = vpop.f32.mrb[0].mxu0
      %v4974 = vpop.f32.mrb[0].mxu0
      %v4975 = vadd.f32 0.0, %v4974
      %v4976 = vpop.f32.mrb[0].mxu0
      %4977 = vmatprep.mubr.bf16.mxu0 0
      %4978 = vmatmul.mubr.bf16.gmra.mrb[0].mxu0 %v4589
      %v4979 = vpop.f32.mrb[0].mxu0
      %v4980 = vadd.f32 0.0, %v4979
      %v4981 = vpop.f32.mrb[0].mxu0
      %v4982 = vpop.f32.mrb[0].mxu0
      %v4983 = vadd.f32 0.0, %v4982
      %v4984 = vpop.f32.mrb[0].mxu0
      %4985 = vmatprep.mubr.bf16.mxu0 0
      %4986 = vmatmul.mubr.bf16.gmra.mrb[0].mxu0 %v4598
      %v4987 = vpop.f32.mrb[0].mxu0
      %v4988 = vadd.f32 0.0, %v4987
      %v4989 = vpop.f32.mrb[0].mxu0
      %v4990 = vpop.f32.mrb[0].mxu0
      %v4991 = vadd.f32 0.0, %v4990
      %v4992 = vpop.f32.mrb[0].mxu0
      %4993 = vmatprep.mubr.bf16.mxu0 0
      %4994 = vmatmul.mubr.bf16.gmra.mrb[0].mxu0 %v4607
      %v4995 = vpop.f32.mrb[0].mxu0
      %v4996 = vadd.f32 0.0, %v4995
      %v4997 = vpop.f32.mrb[0].mxu0
      %v4998 = vpop.f32.mrb[0].mxu0
      %v4999 = vadd.f32 0.0, %v4998
      %v5000 = vpop.f32.mrb[0].mxu0
      %5001 = vmatprep.mubr.bf16.mxu0 0
      %5002 = vmatmul.mubr.bf16.gmra.mrb[0].mxu0 %v4616
      %v5003 = vpop.f32.mrb[0].mxu0
      %v5004 = vadd.f32 0.0, %v5003
      %v5005 = vpop.f32.mrb[0].mxu0
      %v5006 = vpop.f32.mrb[0].mxu0
      %v5007 = vadd.f32 0.0, %v5006
      %v5008 = vpop.f32.mrb[0].mxu0
      %5009 = vmatprep.mubr.bf16.mxu0 0
      %5010 = vmatmul.mubr.bf16.gmra.mrb[0].mxu0 %v4625
      %v5011 = vpop.f32.mrb[0].mxu0
      %v5012 = vadd.f32 0.0, %v5011
      %v5013 = vpop.f32.mrb[0].mxu0
      %v5014 = vpop.f32.mrb[0].mxu0
      %v5015 = vadd.f32 0.0, %v5014
      %v5016 = vpop.f32.mrb[0].mxu0
      %5017 = vmatprep.mubr.bf16.mxu0 0
      %5018 = vmatmul.mubr.bf16.gmra.mrb[0].mxu0 %v4634
      %v5019 = vpop.f32.mrb[0].mxu0
      %v5020 = vadd.f32 0.0, %v5019
      %v5021 = vpop.f32.mrb[0].mxu0
      %v5022 = vpop.f32.mrb[0].mxu0
      %v5023 = vadd.f32 0.0, %v5022
      %v5024 = vpop.f32.mrb[0].mxu0
      %5025 = vmatprep.mubr.bf16.mxu0 0
      %5026 = vmatmul.mubr.bf16.gmra.mrb[0].mxu0 %v4643
      %v5027 = vpop.f32.mrb[0].mxu0
      %v5028 = vadd.f32 0.0, %v5027
      %v5029 = vpop.f32.mrb[0].mxu0
      %v5030 = vpop.f32.mrb[0].mxu0
      %v5031 = vadd.f32 0.0, %v5030
      %v5032 = vpop.f32.mrb[0].mxu0
      %5033 = vmatprep.mubr.bf16.mxu0 0
      %5034 = vmatmul.mubr.bf16.gmra.mrb[0].mxu0 %v4652
      %v5035 = vpop.f32.mrb[0].mxu0
      %v5036 = vadd.f32 0.0, %v5035
      %v5037 = vpop.f32.mrb[0].mxu0
      %v5038 = vpop.f32.mrb[0].mxu0
      %v5039 = vadd.f32 0.0, %v5038
      %v5040 = vpop.f32.mrb[0].mxu0
      %5041 = vmatprep.mubr.bf16.mxu0 0
      %5042 = vmatmul.mubr.bf16.gmra.mrb[0].mxu0 %v4661
      %v5043 = vpop.f32.mrb[0].mxu0
      %v5044 = vadd.f32 0.0, %v5043
      %v5045 = vpop.f32.mrb[0].mxu0
      %v5046 = vpop.f32.mrb[0].mxu0
      %v5047 = vadd.f32 0.0, %v5046
      %v5048 = vpop.f32.mrb[0].mxu0
      %5049 = vmatprep.mubr.bf16.mxu0 0
      %5050 = vmatmul.mubr.bf16.gmra.mrb[0].mxu0 %v4670
      %v5051 = vpop.f32.mrb[0].mxu0
      %v5052 = vadd.f32 0.0, %v5051
      %v5053 = vpop.f32.mrb[0].mxu0
      %v5054 = vpop.f32.mrb[0].mxu0
      %v5055 = vadd.f32 0.0, %v5054
      %v5056 = vpop.f32.mrb[0].mxu0
      %5057 = vmatprep.mubr.bf16.mxu0 0
      %5058 = vmatmul.mubr.bf16.gmra.mrb[0].mxu0 %v4679
      %v5059 = vpop.f32.mrb[0].mxu0
      %v5060 = vadd.f32 0.0, %v5059
      %v5061 = vpop.f32.mrb[0].mxu0
      %v5062 = vpop.f32.mrb[0].mxu0
      %v5063 = vadd.f32 0.0, %v5062
      %v5064 = vpop.f32.mrb[0].mxu0
      %5065 = vmatprep.mubr.bf16.mxu0 0
      %5066 = vmatmul.mubr.bf16.gmra.mrb[0].mxu0 %v4688
      %v5067 = vpop.f32.mrb[0].mxu0
      %v5068 = vadd.f32 0.0, %v5067
      %v5069 = vpop.f32.mrb[0].mxu0
      %v5070 = vpop.f32.mrb[0].mxu0
      %v5071 = vadd.f32 0.0, %v5070
      %v5072 = vpop.f32.mrb[0].mxu0
      %5073 = vmatprep.mubr.bf16.mxu0 0
      %5074 = vmatmul.mubr.bf16.gmra.mrb[0].mxu0 %v4697
      %v5075 = vpop.f32.mrb[0].mxu0
      %v5076 = vadd.f32 0.0, %v5075
      %v5077 = vpop.f32.mrb[0].mxu0
      %v5078 = vpop.f32.mrb[0].mxu0
      %v5079 = vadd.f32 0.0, %v5078
      %v5080 = vpop.f32.mrb[0].mxu0
      %5081 = vmatprep.mubr.bf16.mxu0 0
      %5082 = vmatmul.mubr.bf16.gmra.mrb[0].mxu0 %v4706
      %v5083 = vpop.f32.mrb[0].mxu0
      %v5084 = vadd.f32 0.0, %v5083
      %v5085 = vpop.f32.mrb[0].mxu0
      %v5086 = vpop.f32.mrb[0].mxu0
      %v5087 = vadd.f32 0.0, %v5086
      %v5088 = vpop.f32.mrb[0].mxu0
      %5089 = vmatprep.mubr.bf16.mxu0 0
      %5090 = vmatmul.mubr.bf16.gmra.mrb[0].mxu0 %v4715
      %v5091 = vpop.f32.mrb[0].mxu0
      %v5092 = vadd.f32 0.0, %v5091
      %v5093 = vpop.f32.mrb[0].mxu0
      %v5094 = vpop.f32.mrb[0].mxu0
      %v5095 = vadd.f32 0.0, %v5094
      %v5096 = vpop.f32.mrb[0].mxu0
      %5097 = vmatprep.mubr.bf16.mxu0 0
      %5098 = vmatmul.mubr.bf16.gmra.mrb[0].mxu0 %v4724
      %v5099 = vpop.f32.mrb[0].mxu0
      %v5100 = vadd.f32 0.0, %v5099
      %v5101 = vpop.f32.mrb[0].mxu0
      %v5102 = vpop.f32.mrb[0].mxu0
      %v5103 = vadd.f32 0.0, %v5102
      %v5104 = vpop.f32.mrb[0].mxu0
      %5105 = vmatprep.mubr.bf16.mxu0 0
      %5106 = vmatmul.mubr.bf16.gmra.mrb[0].mxu0 %v4733
      %v5107 = vpop.f32.mrb[0].mxu0
      %v5108 = vadd.f32 0.0, %v5107
      %v5109 = vpop.f32.mrb[0].mxu0
      %v5110 = vpop.f32.mrb[0].mxu0
      %v5111 = vadd.f32 0.0, %v5110
      %v5112 = vpop.f32.mrb[0].mxu0
      %5113 = vmatprep.mubr.bf16.mxu0 0
      %5114 = vmatmul.mubr.bf16.gmra.mrb[0].mxu0 %v4742
      %v5115 = vpop.f32.mrb[0].mxu0
      %v5116 = vadd.f32 0.0, %v5115
      %v5117 = vpop.f32.mrb[0].mxu0
      %v5118 = vpop.f32.mrb[0].mxu0
      %v5119 = vadd.f32 0.0, %v5118
      %v5120 = vpop.f32.mrb[0].mxu0
      %5121 = vmatprep.mubr.bf16.mxu0 0
      %5122 = vmatmul.mubr.bf16.gmra.mrb[0].mxu0 %v4751
      %v5123 = vpop.f32.mrb[0].mxu0
      %v5124 = vadd.f32 0.0, %v5123
      %v5125 = vpop.f32.mrb[0].mxu0
      %v5126 = vpop.f32.mrb[0].mxu0
      %v5127 = vadd.f32 0.0, %v5126
      %v5128 = vpop.f32.mrb[0].mxu0
      %5129 = vmatprep.mubr.bf16.mxu0 0
      %5130 = vmatmul.mubr.bf16.gmra.mrb[0].mxu0 %v4760
      %v5131 = vpop.f32.mrb[0].mxu0
      %v5132 = vadd.f32 0.0, %v5131
      %v5133 = vpop.f32.mrb[0].mxu0
      %v5134 = vpop.f32.mrb[0].mxu0
      %v5135 = vadd.f32 0.0, %v5134
      %v5136 = vpop.f32.mrb[0].mxu0
      %5137 = vmatprep.mubr.bf16.mxu0 0
      %5138 = vmatmul.mubr.bf16.gmra.mrb[0].mxu0 %v4769
      %v5139 = vpop.f32.mrb[0].mxu0
      %v5140 = vadd.f32 0.0, %v5139
      %v5141 = vpop.f32.mrb[0].mxu0
      %v5142 = vpop.f32.mrb[0].mxu0
      %v5143 = vadd.f32 0.0, %v5142
      %v5144 = vpop.f32.mrb[0].mxu0
      %5145 = vmatprep.mubr.bf16.mxu0 0
      %5146 = vmatmul.mubr.bf16.gmra.mrb[0].mxu0 %v4778
      %v5147 = vpop.f32.mrb[0].mxu0
      %v5148 = vadd.f32 0.0, %v5147
      %v5149 = vpop.f32.mrb[0].mxu0
      %v5150 = vpop.f32.mrb[0].mxu0
      %v5151 = vadd.f32 0.0, %v5150
      %v5152 = vpop.f32.mrb[0].mxu0
      %5153 = vmatprep.mubr.bf16.mxu0 0
      %5154 = vmatmul.mubr.bf16.gmra.mrb[0].mxu0 %v4787
      %v5155 = vpop.f32.mrb[0].mxu0
      %v5156 = vadd.f32 0.0, %v5155
      %v5157 = vpop.f32.mrb[0].mxu0
      %v5158 = vpop.f32.mrb[0].mxu0
      %v5159 = vadd.f32 0.0, %v5158
      %v5160 = vpop.f32.mrb[0].mxu0
      %5161 = vmatprep.mubr.bf16.mxu0 0
      %5162 = vmatmul.mubr.bf16.gmra.mrb[0].mxu0 %v4796
      %v5163 = vpop.f32.mrb[0].mxu0
      %v5164 = vadd.f32 0.0, %v5163
      %v5165 = vpop.f32.mrb[0].mxu0
      %v5166 = vpop.f32.mrb[0].mxu0
      %v5167 = vadd.f32 0.0, %v5166
      %v5168 = vpop.f32.mrb[0].mxu0
      %5169 = vmatprep.mubr.bf16.mxu0 0
      %5170 = vmatmul.mubr.bf16.gmra.mrb[0].mxu0 %v4805
      %v5171 = vpop.f32.mrb[0].mxu0
      %v5172 = vadd.f32 0.0, %v5171
      %v5173 = vpop.f32.mrb[0].mxu0
      %v5174 = vpop.f32.mrb[0].mxu0
      %v5175 = vadd.f32 0.0, %v5174
      %v5176 = vpop.f32.mrb[0].mxu0
      %5177 = vmatprep.mubr.bf16.mxu0 0
      %5178 = vmatmul.mubr.bf16.gmra.mrb[0].mxu0 %v4814
      %v5179 = vpop.f32.mrb[0].mxu0
      %v5180 = vadd.f32 0.0, %v5179
      %v5181 = vpop.f32.mrb[0].mxu0
      %v5182 = vpop.f32.mrb[0].mxu0
      %v5183 = vadd.f32 0.0, %v5182
      %v5184 = vpop.f32.mrb[0].mxu0
      %5185 = vmatprep.mubr.bf16.mxu0 0
      %5186 = vmatmul.mubr.bf16.gmra.mrb[0].mxu0 %v4823
      %v5187 = vpop.f32.mrb[0].mxu0
      %v5188 = vadd.f32 0.0, %v5187
      %v5189 = vpop.f32.mrb[0].mxu0
      %v5190 = vpop.f32.mrb[0].mxu0
      %v5191 = vadd.f32 0.0, %v5190
      %v5192 = vpop.f32.mrb[0].mxu0
      %5193 = vmatprep.mubr.bf16.mxu0 0
      %5194 = vmatmul.mubr.bf16.gmra.mrb[0].mxu0 %v4832
      %v5195 = vpop.f32.mrb[0].mxu0
      %v5196 = vadd.f32 0.0, %v5195
      %v5197 = vpop.f32.mrb[0].mxu0
      %v5198 = vpop.f32.mrb[0].mxu0
      %v5199 = vadd.f32 0.0, %v5198
      %v5200 = vpop.f32.mrb[0].mxu0
      %5201 = vdwg.mxu0
      %v5202 = vadd.f32 %v4454, %v4948
      %v5203 = vadd.f32 %v4455, %v4951
      %v5204 = vadd.f32 %v4456, %v4956
      %v5205 = vadd.f32 %v4457, %v4959
      %v5206 = vadd.f32 %v4458, %v4964
      %v5207 = vadd.f32 %v4459, %v4967
      %v5208 = vadd.f32 %v4460, %v4972
      %v5209 = vadd.f32 %v4461, %v4975
      %v5210 = vadd.f32 %v4462, %v4980
      %v5211 = vadd.f32 %v4463, %v4983
      %v5212 = vadd.f32 %v4464, %v4988
      %v5213 = vadd.f32 %v4465, %v4991
      %v5214 = vadd.f32 %v4466, %v4996
      %v5215 = vadd.f32 %v4467, %v4999
      %v5216 = vadd.f32 %v4468, %v5004
      %v5217 = vadd.f32 %v4469, %v5007
      %v5218 = vadd.f32 %v4470, %v5012
      %v5219 = vadd.f32 %v4471, %v5015
      %v5220 = vadd.f32 %v4472, %v5020
      %v5221 = vadd.f32 %v4473, %v5023
      %v5222 = vadd.f32 %v4474, %v5028
      %v5223 = vadd.f32 %v4475, %v5031
      %v5224 = vadd.f32 %v4476, %v5036
      %v5225 = vadd.f32 %v4477, %v5039
      %v5226 = vadd.f32 %v4478, %v5044
      %v5227 = vadd.f32 %v4479, %v5047
      %v5228 = vadd.f32 %v4480, %v5052
      %v5229 = vadd.f32 %v4481, %v5055
      %v5230 = vadd.f32 %v4482, %v5060
      %v5231 = vadd.f32 %v4483, %v5063
      %v5232 = vadd.f32 %v4484, %v5068
      %v5233 = vadd.f32 %v4485, %v5071
      %v5234 = vadd.f32 %v4486, %v5076
      %v5235 = vadd.f32 %v4487, %v5079
      %v5236 = vadd.f32 %v4488, %v5084
      %v5237 = vadd.f32 %v4489, %v5087
      %v5238 = vadd.f32 %v4490, %v5092
      %v5239 = vadd.f32 %v4491, %v5095
      %v5240 = vadd.f32 %v4492, %v5100
      %v5241 = vadd.f32 %v4493, %v5103
      %v5242 = vadd.f32 %v4494, %v5108
      %v5243 = vadd.f32 %v4495, %v5111
      %v5244 = vadd.f32 %v4496, %v5116
      %v5245 = vadd.f32 %v4497, %v5119
      %v5246 = vadd.f32 %v4498, %v5124
      %v5247 = vadd.f32 %v4499, %v5127
      %v5248 = vadd.f32 %v4500, %v5132
      %v5249 = vadd.f32 %v4501, %v5135
      %v5250 = vadd.f32 %v4502, %v5140
      %v5251 = vadd.f32 %v4503, %v5143
      %v5252 = vadd.f32 %v4504, %v5148
      %v5253 = vadd.f32 %v4505, %v5151
      %v5254 = vadd.f32 %v4506, %v5156
      %v5255 = vadd.f32 %v4507, %v5159
      %v5256 = vadd.f32 %v4508, %v5164
      %v5257 = vadd.f32 %v4509, %v5167
      %v5258 = vadd.f32 %v4510, %v5172
      %v5259 = vadd.f32 %v4511, %v5175
      %v5260 = vadd.f32 %v4512, %v5180
      %v5261 = vadd.f32 %v4513, %v5183
      %v5262 = vadd.f32 %v4514, %v5188
      %v5263 = vadd.f32 %v4515, %v5191
      %v5264 = vadd.f32 %v4516, %v5196
      %v5265 = vadd.f32 %v4517, %v5199
      %v5266 = vld [vmem:[%s500 + $0x10] sm:$0xf8]
      %s5267 = scalar_lea.vmem %s1, 512
      %v5268 = vld [vmem:[%s5267] sm:$0xf]
      %v5269 = vld [vmem:[%s5267 + $0x4] sm:$0xf]
      %v5270 = vld [vmem:[%s5267 + $0x8] sm:$0xf]
      %v5271 = vld [vmem:[%s5267 + $0xc] sm:$0xf]
      %v5272 = vld [vmem:[%s5267 + $0x10] sm:$0xf]
      %v5273 = vld [vmem:[%s5267 + $0x14] sm:$0xf]
      %v5274 = vld [vmem:[%s5267 + $0x18] sm:$0xf]
      %v5275 = vld [vmem:[%s5267 + $0x1c] sm:$0xf]
      %v5276 = vld [vmem:[%s5267 + $0x20] sm:$0xf]
      %v5277 = vld [vmem:[%s5267 + $0x24] sm:$0xf]
      %v5278 = vld [vmem:[%s5267 + $0x28] sm:$0xf]
      %v5279 = vld [vmem:[%s5267 + $0x2c] sm:$0xf]
      %v5280 = vld [vmem:[%s5267 + $0x30] sm:$0xf]
      %v5281 = vld [vmem:[%s5267 + $0x34] sm:$0xf]
      %v5282 = vld [vmem:[%s5267 + $0x38] sm:$0xf]
      %v5283 = vld [vmem:[%s5267 + $0x3c] sm:$0xf]
      %vm5286 = vcmask 1044480
      %v5287 = vrot.slane %v5266, 3
      %v5288 = vrot.slane %v3938, 3
      %v5289 = vsel %vm5286, %v5287, %v5288
      %v5290 = vrot.slane %v3939, 3
      %v5291 = vsel %vm5286, %v5288, %v5290
      %v5292 = vrot.slane %v3940, 3
      %v5293 = vsel %vm5286, %v5290, %v5292
      %v5294 = vrot.slane %v3941, 3
      %v5295 = vsel %vm5286, %v5292, %v5294
      %v5296 = vrot.slane %v3942, 3
      %v5297 = vsel %vm5286, %v5294, %v5296
      %v5298 = vrot.slane %v3943, 3
      %v5299 = vsel %vm5286, %v5296, %v5298
      %v5300 = vrot.slane %v3944, 3
      %v5301 = vsel %vm5286, %v5298, %v5300
      %v5302 = vrot.slane %v3945, 3
      %v5303 = vsel %vm5286, %v5300, %v5302
      %v5304 = vrot.slane %v3946, 3
      %v5305 = vsel %vm5286, %v5302, %v5304
      %v5306 = vrot.slane %v3947, 3
      %v5307 = vsel %vm5286, %v5304, %v5306
      %v5308 = vrot.slane %v3948, 3
      %v5309 = vsel %vm5286, %v5306, %v5308
      %v5310 = vrot.slane %v3949, 3
      %v5311 = vsel %vm5286, %v5308, %v5310
      %v5312 = vrot.slane %v3950, 3
      %v5313 = vsel %vm5286, %v5310, %v5312
      %v5314 = vrot.slane %v3951, 3
      %v5315 = vsel %vm5286, %v5312, %v5314
      %v5316 = vrot.slane %v3952, 3
      %v5317 = vsel %vm5286, %v5314, %v5316
      %v5318 = vrot.slane %v3953, 3
      %v5319 = vsel %vm5286, %v5316, %v5318
      %v5320 = vrot.slane %v3954, 3
      %v5321 = vsel %vm5286, %v5318, %v5320
      %v5322 = vrot.slane %v3955, 3
      %v5323 = vsel %vm5286, %v5320, %v5322
      %v5324 = vrot.slane %v3956, 3
      %v5325 = vsel %vm5286, %v5322, %v5324
      %v5326 = vrot.slane %v3957, 3
      %v5327 = vsel %vm5286, %v5324, %v5326
      %v5328 = vrot.slane %v3958, 3
      %v5329 = vsel %vm5286, %v5326, %v5328
      %v5330 = vrot.slane %v3959, 3
      %v5331 = vsel %vm5286, %v5328, %v5330
      %v5332 = vrot.slane %v3960, 3
      %v5333 = vsel %vm5286, %v5330, %v5332
      %v5334 = vrot.slane %v3961, 3
      %v5335 = vsel %vm5286, %v5332, %v5334
      %v5336 = vrot.slane %v3962, 3
      %v5337 = vsel %vm5286, %v5334, %v5336
      %v5338 = vrot.slane %v3963, 3
      %v5339 = vsel %vm5286, %v5336, %v5338
      %v5340 = vrot.slane %v3964, 3
      %v5341 = vsel %vm5286, %v5338, %v5340
      %v5342 = vrot.slane %v3965, 3
      %v5343 = vsel %vm5286, %v5340, %v5342
      %v5344 = vrot.slane %v3966, 3
      %v5345 = vsel %vm5286, %v5342, %v5344
      %v5346 = vrot.slane %v3967, 3
      %v5347 = vsel %vm5286, %v5344, %v5346
      %v5348 = vrot.slane %v3968, 3
      %v5349 = vsel %vm5286, %v5346, %v5348
      %v5350 = vrot.slane %v4518, 3
      %v5351 = vsel %vm5286, %v5348, %v5350
      %v5400 = vunpack.c.l.b16 %v5268
      %v5401 = vunpack.c.l.b16 %v5269
      %v5402 = vunpack.c.l.b16 %v5270
      %v5403 = vunpack.c.l.b16 %v5271
      %v5404 = vunpack.c.l.b16 %v5272
      %v5405 = vunpack.c.l.b16 %v5273
      %v5406 = vunpack.c.l.b16 %v5274
      %v5407 = vunpack.c.l.b16 %v5275
      %v5408 = vunpack.c.l.b16 %v5276
      %v5409 = vunpack.c.l.b16 %v5277
      %v5410 = vunpack.c.l.b16 %v5278
      %v5411 = vunpack.c.l.b16 %v5279
      %v5412 = vunpack.c.l.b16 %v5280
      %v5413 = vunpack.c.l.b16 %v5281
      %v5414 = vunpack.c.l.b16 %v5282
      %v5415 = vunpack.c.l.b16 %v5283
      %v5416 = vpack.c.b16 %v5401, %v5400
      %v5417 = vpack.c.b16 %v5403, %v5402
      %v5418 = vpack.c.b16 %v5405, %v5404
      %v5419 = vpack.c.b16 %v5407, %v5406
      %v5420 = vpack.c.b16 %v5409, %v5408
      %v5421 = vpack.c.b16 %v5411, %v5410
      %v5422 = vpack.c.b16 %v5413, %v5412
      %v5423 = vpack.c.b16 %v5415, %v5414
      %5432 = vmatprep.subr.bf16.mxu0 0
      %5433 = vmatpush1.bf16.msra.mxu0 %v5416
      %5434 = vmatprep.subr.bf16.mxu0 0
      %5435 = vmatpush1.bf16.msra.mxu0 %v5417
      %5436 = vmatprep.subr.bf16.mxu0 0
      %5437 = vmatpush1.bf16.msra.mxu0 %v5418
      %5438 = vmatprep.subr.bf16.mxu0 0
      %5439 = vmatpush1.bf16.msra.mxu0 %v5419
      %5440 = vmatprep.subr.bf16.mxu0 0
      %5441 = vmatpush1.bf16.msra.mxu0 %v5420
      %5442 = vmatprep.subr.bf16.mxu0 0
      %5443 = vmatpush1.bf16.msra.mxu0 %v5421
      %5444 = vmatprep.subr.bf16.mxu0 0
      %5445 = vmatpush1.bf16.msra.mxu0 %v5422
      %5446 = vmatprep.subr.bf16.mxu0 0
      %5447 = vmatpush1.bf16.msra.mxu0 %v5423
      %5448 = vmatprep.subr.bf16.mxu0 0
      %5449 = vmatpush1.bf16.msra.mxu0 0
      %5450 = vmatprep.subr.bf16.mxu0 0
      %5451 = vmatpush1.bf16.msra.mxu0 0
      %5452 = vmatprep.subr.bf16.mxu0 0
      %5453 = vmatpush1.bf16.msra.mxu0 0
      %5454 = vmatprep.subr.bf16.mxu0 0
      %5455 = vmatpush1.bf16.msra.mxu0 0
      %5456 = vmatprep.subr.bf16.mxu0 0
      %5457 = vmatpush1.bf16.msra.mxu0 0
      %5458 = vmatprep.subr.bf16.mxu0 0
      %5459 = vmatpush1.bf16.msra.mxu0 0
      %5460 = vmatprep.subr.bf16.mxu0 0
      %5461 = vmatpush1.bf16.msra.mxu0 0
      %5462 = vmatprep.subr.bf16.mxu0 0
      %5463 = vmatpush1.bf16.msra.mxu0 0
      %5464 = vmatprep.mubr.bf16.mxu0 0
      %5465 = vmatmul.mubr.bf16.gmra.mrb[0].mxu0 %v5289
      %v5466 = vpop.f32.mrb[0].mxu0
      %v5467 = vadd.f32 0.0, %v5466
      %v5468 = vpop.f32.mrb[0].mxu0
      %v5469 = vpop.f32.mrb[0].mxu0
      %v5470 = vadd.f32 0.0, %v5469
      %v5471 = vpop.f32.mrb[0].mxu0
      %5472 = vmatprep.mubr.bf16.mxu0 0
      %5473 = vmatmul.mubr.bf16.gmra.mrb[0].mxu0 %v5291
      %v5474 = vpop.f32.mrb[0].mxu0
      %v5475 = vadd.f32 0.0, %v5474
      %v5476 = vpop.f32.mrb[0].mxu0
      %v5477 = vpop.f32.mrb[0].mxu0
      %v5478 = vadd.f32 0.0, %v5477
      %v5479 = vpop.f32.mrb[0].mxu0
      %5480 = vmatprep.mubr.bf16.mxu0 0
      %5481 = vmatmul.mubr.bf16.gmra.mrb[0].mxu0 %v5293
      %v5482 = vpop.f32.mrb[0].mxu0
      %v5483 = vadd.f32 0.0, %v5482
      %v5484 = vpop.f32.mrb[0].mxu0
      %v5485 = vpop.f32.mrb[0].mxu0
      %v5486 = vadd.f32 0.0, %v5485
      %v5487 = vpop.f32.mrb[0].mxu0
      %5488 = vmatprep.mubr.bf16.mxu0 0
      %5489 = vmatmul.mubr.bf16.gmra.mrb[0].mxu0 %v5295
      %v5490 = vpop.f32.mrb[0].mxu0
      %v5491 = vadd.f32 0.0, %v5490
      %v5492 = vpop.f32.mrb[0].mxu0
      %v5493 = vpop.f32.mrb[0].mxu0
      %v5494 = vadd.f32 0.0, %v5493
      %v5495 = vpop.f32.mrb[0].mxu0
      %5496 = vmatprep.mubr.bf16.mxu0 0
      %5497 = vmatmul.mubr.bf16.gmra.mrb[0].mxu0 %v5297
      %v5498 = vpop.f32.mrb[0].mxu0
      %v5499 = vadd.f32 0.0, %v5498
      %v5500 = vpop.f32.mrb[0].mxu0
      %v5501 = vpop.f32.mrb[0].mxu0
      %v5502 = vadd.f32 0.0, %v5501
      %v5503 = vpop.f32.mrb[0].mxu0
      %5504 = vmatprep.mubr.bf16.mxu0 0
      %5505 = vmatmul.mubr.bf16.gmra.mrb[0].mxu0 %v5299
      %v5506 = vpop.f32.mrb[0].mxu0
      %v5507 = vadd.f32 0.0, %v5506
      %v5508 = vpop.f32.mrb[0].mxu0
      %v5509 = vpop.f32.mrb[0].mxu0
      %v5510 = vadd.f32 0.0, %v5509
      %v5511 = vpop.f32.mrb[0].mxu0
      %5512 = vmatprep.mubr.bf16.mxu0 0
      %5513 = vmatmul.mubr.bf16.gmra.mrb[0].mxu0 %v5301
      %v5514 = vpop.f32.mrb[0].mxu0
      %v5515 = vadd.f32 0.0, %v5514
      %v5516 = vpop.f32.mrb[0].mxu0
      %v5517 = vpop.f32.mrb[0].mxu0
      %v5518 = vadd.f32 0.0, %v5517
      %v5519 = vpop.f32.mrb[0].mxu0
      %5520 = vmatprep.mubr.bf16.mxu0 0
      %5521 = vmatmul.mubr.bf16.gmra.mrb[0].mxu0 %v5303
      %v5522 = vpop.f32.mrb[0].mxu0
      %v5523 = vadd.f32 0.0, %v5522
      %v5524 = vpop.f32.mrb[0].mxu0
      %v5525 = vpop.f32.mrb[0].mxu0
      %v5526 = vadd.f32 0.0, %v5525
      %v5527 = vpop.f32.mrb[0].mxu0
      %5528 = vmatprep.mubr.bf16.mxu0 0
      %5529 = vmatmul.mubr.bf16.gmra.mrb[0].mxu0 %v5305
      %v5530 = vpop.f32.mrb[0].mxu0
      %v5531 = vadd.f32 0.0, %v5530
      %v5532 = vpop.f32.mrb[0].mxu0
      %v5533 = vpop.f32.mrb[0].mxu0
      %v5534 = vadd.f32 0.0, %v5533
      %v5535 = vpop.f32.mrb[0].mxu0
      %5536 = vmatprep.mubr.bf16.mxu0 0
      %5537 = vmatmul.mubr.bf16.gmra.mrb[0].mxu0 %v5307
      %v5538 = vpop.f32.mrb[0].mxu0
      %v5539 = vadd.f32 0.0, %v5538
      %v5540 = vpop.f32.mrb[0].mxu0
      %v5541 = vpop.f32.mrb[0].mxu0
      %v5542 = vadd.f32 0.0, %v5541
      %v5543 = vpop.f32.mrb[0].mxu0
      %5544 = vmatprep.mubr.bf16.mxu0 0
      %5545 = vmatmul.mubr.bf16.gmra.mrb[0].mxu0 %v5309
      %v5546 = vpop.f32.mrb[0].mxu0
      %v5547 = vadd.f32 0.0, %v5546
      %v5548 = vpop.f32.mrb[0].mxu0
      %v5549 = vpop.f32.mrb[0].mxu0
      %v5550 = vadd.f32 0.0, %v5549
      %v5551 = vpop.f32.mrb[0].mxu0
      %5552 = vmatprep.mubr.bf16.mxu0 0
      %5553 = vmatmul.mubr.bf16.gmra.mrb[0].mxu0 %v5311
      %v5554 = vpop.f32.mrb[0].mxu0
      %v5555 = vadd.f32 0.0, %v5554
      %v5556 = vpop.f32.mrb[0].mxu0
      %v5557 = vpop.f32.mrb[0].mxu0
      %v5558 = vadd.f32 0.0, %v5557
      %v5559 = vpop.f32.mrb[0].mxu0
      %5560 = vmatprep.mubr.bf16.mxu0 0
      %5561 = vmatmul.mubr.bf16.gmra.mrb[0].mxu0 %v5313
      %v5562 = vpop.f32.mrb[0].mxu0
      %v5563 = vadd.f32 0.0, %v5562
      %v5564 = vpop.f32.mrb[0].mxu0
      %v5565 = vpop.f32.mrb[0].mxu0
      %v5566 = vadd.f32 0.0, %v5565
      %v5567 = vpop.f32.mrb[0].mxu0
      %5568 = vmatprep.mubr.bf16.mxu0 0
      %5569 = vmatmul.mubr.bf16.gmra.mrb[0].mxu0 %v5315
      %v5570 = vpop.f32.mrb[0].mxu0
      %v5571 = vadd.f32 0.0, %v5570
      %v5572 = vpop.f32.mrb[0].mxu0
      %v5573 = vpop.f32.mrb[0].mxu0
      %v5574 = vadd.f32 0.0, %v5573
      %v5575 = vpop.f32.mrb[0].mxu0
      %5576 = vmatprep.mubr.bf16.mxu0 0
      %5577 = vmatmul.mubr.bf16.gmra.mrb[0].mxu0 %v5317
      %v5578 = vpop.f32.mrb[0].mxu0
      %v5579 = vadd.f32 0.0, %v5578
      %v5580 = vpop.f32.mrb[0].mxu0
      %v5581 = vpop.f32.mrb[0].mxu0
      %v5582 = vadd.f32 0.0, %v5581
      %v5583 = vpop.f32.mrb[0].mxu0
      %5584 = vmatprep.mubr.bf16.mxu0 0
      %5585 = vmatmul.mubr.bf16.gmra.mrb[0].mxu0 %v5319
      %v5586 = vpop.f32.mrb[0].mxu0
      %v5587 = vadd.f32 0.0, %v5586
      %v5588 = vpop.f32.mrb[0].mxu0
      %v5589 = vpop.f32.mrb[0].mxu0
      %v5590 = vadd.f32 0.0, %v5589
      %v5591 = vpop.f32.mrb[0].mxu0
      %5592 = vmatprep.mubr.bf16.mxu0 0
      %5593 = vmatmul.mubr.bf16.gmra.mrb[0].mxu0 %v5321
      %v5594 = vpop.f32.mrb[0].mxu0
      %v5595 = vadd.f32 0.0, %v5594
      %v5596 = vpop.f32.mrb[0].mxu0
      %v5597 = vpop.f32.mrb[0].mxu0
      %v5598 = vadd.f32 0.0, %v5597
      %v5599 = vpop.f32.mrb[0].mxu0
      %5600 = vmatprep.mubr.bf16.mxu0 0
      %5601 = vmatmul.mubr.bf16.gmra.mrb[0].mxu0 %v5323
      %v5602 = vpop.f32.mrb[0].mxu0
      %v5603 = vadd.f32 0.0, %v5602
      %v5604 = vpop.f32.mrb[0].mxu0
      %v5605 = vpop.f32.mrb[0].mxu0
      %v5606 = vadd.f32 0.0, %v5605
      %v5607 = vpop.f32.mrb[0].mxu0
      %5608 = vmatprep.mubr.bf16.mxu0 0
      %5609 = vmatmul.mubr.bf16.gmra.mrb[0].mxu0 %v5325
      %v5610 = vpop.f32.mrb[0].mxu0
      %v5611 = vadd.f32 0.0, %v5610
      %v5612 = vpop.f32.mrb[0].mxu0
      %v5613 = vpop.f32.mrb[0].mxu0
      %v5614 = vadd.f32 0.0, %v5613
      %v5615 = vpop.f32.mrb[0].mxu0
      %5616 = vmatprep.mubr.bf16.mxu0 0
      %5617 = vmatmul.mubr.bf16.gmra.mrb[0].mxu0 %v5327
      %v5618 = vpop.f32.mrb[0].mxu0
      %v5619 = vadd.f32 0.0, %v5618
      %v5620 = vpop.f32.mrb[0].mxu0
      %v5621 = vpop.f32.mrb[0].mxu0
      %v5622 = vadd.f32 0.0, %v5621
      %v5623 = vpop.f32.mrb[0].mxu0
      %5624 = vmatprep.mubr.bf16.mxu0 0
      %5625 = vmatmul.mubr.bf16.gmra.mrb[0].mxu0 %v5329
      %v5626 = vpop.f32.mrb[0].mxu0
      %v5627 = vadd.f32 0.0, %v5626
      %v5628 = vpop.f32.mrb[0].mxu0
      %v5629 = vpop.f32.mrb[0].mxu0
      %v5630 = vadd.f32 0.0, %v5629
      %v5631 = vpop.f32.mrb[0].mxu0
      %5632 = vmatprep.mubr.bf16.mxu0 0
      %5633 = vmatmul.mubr.bf16.gmra.mrb[0].mxu0 %v5331
      %v5634 = vpop.f32.mrb[0].mxu0
      %v5635 = vadd.f32 0.0, %v5634
      %v5636 = vpop.f32.mrb[0].mxu0
      %v5637 = vpop.f32.mrb[0].mxu0
      %v5638 = vadd.f32 0.0, %v5637
      %v5639 = vpop.f32.mrb[0].mxu0
      %5640 = vmatprep.mubr.bf16.mxu0 0
      %5641 = vmatmul.mubr.bf16.gmra.mrb[0].mxu0 %v5333
      %v5642 = vpop.f32.mrb[0].mxu0
      %v5643 = vadd.f32 0.0, %v5642
      %v5644 = vpop.f32.mrb[0].mxu0
      %v5645 = vpop.f32.mrb[0].mxu0
      %v5646 = vadd.f32 0.0, %v5645
      %v5647 = vpop.f32.mrb[0].mxu0
      %5648 = vmatprep.mubr.bf16.mxu0 0
      %5649 = vmatmul.mubr.bf16.gmra.mrb[0].mxu0 %v5335
      %v5650 = vpop.f32.mrb[0].mxu0
      %v5651 = vadd.f32 0.0, %v5650
      %v5652 = vpop.f32.mrb[0].mxu0
      %v5653 = vpop.f32.mrb[0].mxu0
      %v5654 = vadd.f32 0.0, %v5653
      %v5655 = vpop.f32.mrb[0].mxu0
      %5656 = vmatprep.mubr.bf16.mxu0 0
      %5657 = vmatmul.mubr.bf16.gmra.mrb[0].mxu0 %v5337
      %v5658 = vpop.f32.mrb[0].mxu0
      %v5659 = vadd.f32 0.0, %v5658
      %v5660 = vpop.f32.mrb[0].mxu0
      %v5661 = vpop.f32.mrb[0].mxu0
      %v5662 = vadd.f32 0.0, %v5661
      %v5663 = vpop.f32.mrb[0].mxu0
      %5664 = vmatprep.mubr.bf16.mxu0 0
      %5665 = vmatmul.mubr.bf16.gmra.mrb[0].mxu0 %v5339
      %v5666 = vpop.f32.mrb[0].mxu0
      %v5667 = vadd.f32 0.0, %v5666
      %v5668 = vpop.f32.mrb[0].mxu0
      %v5669 = vpop.f32.mrb[0].mxu0
      %v5670 = vadd.f32 0.0, %v5669
      %v5671 = vpop.f32.mrb[0].mxu0
      %5672 = vmatprep.mubr.bf16.mxu0 0
      %5673 = vmatmul.mubr.bf16.gmra.mrb[0].mxu0 %v5341
      %v5674 = vpop.f32.mrb[0].mxu0
      %v5675 = vadd.f32 0.0, %v5674
      %v5676 = vpop.f32.mrb[0].mxu0
      %v5677 = vpop.f32.mrb[0].mxu0
      %v5678 = vadd.f32 0.0, %v5677
      %v5679 = vpop.f32.mrb[0].mxu0
      %5680 = vmatprep.mubr.bf16.mxu0 0
      %5681 = vmatmul.mubr.bf16.gmra.mrb[0].mxu0 %v5343
      %v5682 = vpop.f32.mrb[0].mxu0
      %v5683 = vadd.f32 0.0, %v5682
      %v5684 = vpop.f32.mrb[0].mxu0
      %v5685 = vpop.f32.mrb[0].mxu0
      %v5686 = vadd.f32 0.0, %v5685
      %v5687 = vpop.f32.mrb[0].mxu0
      %5688 = vmatprep.mubr.bf16.mxu0 0
      %5689 = vmatmul.mubr.bf16.gmra.mrb[0].mxu0 %v5345
      %v5690 = vpop.f32.mrb[0].mxu0
      %v5691 = vadd.f32 0.0, %v5690
      %v5692 = vpop.f32.mrb[0].mxu0
      %v5693 = vpop.f32.mrb[0].mxu0
      %v5694 = vadd.f32 0.0, %v5693
      %v5695 = vpop.f32.mrb[0].mxu0
      %5696 = vmatprep.mubr.bf16.mxu0 0
      %5697 = vmatmul.mubr.bf16.gmra.mrb[0].mxu0 %v5347
      %v5698 = vpop.f32.mrb[0].mxu0
      %v5699 = vadd.f32 0.0, %v5698
      %v5700 = vpop.f32.mrb[0].mxu0
      %v5701 = vpop.f32.mrb[0].mxu0
      %v5702 = vadd.f32 0.0, %v5701
      %v5703 = vpop.f32.mrb[0].mxu0
      %5704 = vmatprep.mubr.bf16.mxu0 0
      %5705 = vmatmul.mubr.bf16.gmra.mrb[0].mxu0 %v5349
      %v5706 = vpop.f32.mrb[0].mxu0
      %v5707 = vadd.f32 0.0, %v5706
      %v5708 = vpop.f32.mrb[0].mxu0
      %v5709 = vpop.f32.mrb[0].mxu0
      %v5710 = vadd.f32 0.0, %v5709
      %v5711 = vpop.f32.mrb[0].mxu0
      %5712 = vmatprep.mubr.bf16.mxu0 0
      %5713 = vmatmul.mubr.bf16.gmra.mrb[0].mxu0 %v5351
      %v5714 = vpop.f32.mrb[0].mxu0
      %v5715 = vadd.f32 0.0, %v5714
      %v5716 = vpop.f32.mrb[0].mxu0
      %v5717 = vpop.f32.mrb[0].mxu0
      %v5718 = vadd.f32 0.0, %v5717
      %v5719 = vpop.f32.mrb[0].mxu0
      %5720 = vdwg.mxu0
      %v5721 = vadd.f32 %v5202, %v5467
      %v5722 = vadd.f32 %v5203, %v5470
      %v5723 = vadd.f32 %v5204, %v5475
      %v5724 = vadd.f32 %v5205, %v5478
      %v5725 = vadd.f32 %v5206, %v5483
      %v5726 = vadd.f32 %v5207, %v5486
      %v5727 = vadd.f32 %v5208, %v5491
      %v5728 = vadd.f32 %v5209, %v5494
      %v5729 = vadd.f32 %v5210, %v5499
      %v5730 = vadd.f32 %v5211, %v5502
      %v5731 = vadd.f32 %v5212, %v5507
      %v5732 = vadd.f32 %v5213, %v5510
      %v5733 = vadd.f32 %v5214, %v5515
      %v5734 = vadd.f32 %v5215, %v5518
      %v5735 = vadd.f32 %v5216, %v5523
      %v5736 = vadd.f32 %v5217, %v5526
      %v5737 = vadd.f32 %v5218, %v5531
      %v5738 = vadd.f32 %v5219, %v5534
      %v5739 = vadd.f32 %v5220, %v5539
      %v5740 = vadd.f32 %v5221, %v5542
      %v5741 = vadd.f32 %v5222, %v5547
      %v5742 = vadd.f32 %v5223, %v5550
      %v5743 = vadd.f32 %v5224, %v5555
      %v5744 = vadd.f32 %v5225, %v5558
      %v5745 = vadd.f32 %v5226, %v5563
      %v5746 = vadd.f32 %v5227, %v5566
      %v5747 = vadd.f32 %v5228, %v5571
      %v5748 = vadd.f32 %v5229, %v5574
      %v5749 = vadd.f32 %v5230, %v5579
      %v5750 = vadd.f32 %v5231, %v5582
      %v5751 = vadd.f32 %v5232, %v5587
      %v5752 = vadd.f32 %v5233, %v5590
      %v5753 = vadd.f32 %v5234, %v5595
      %v5754 = vadd.f32 %v5235, %v5598
      %v5755 = vadd.f32 %v5236, %v5603
      %v5756 = vadd.f32 %v5237, %v5606
      %v5757 = vadd.f32 %v5238, %v5611
      %v5758 = vadd.f32 %v5239, %v5614
      %v5759 = vadd.f32 %v5240, %v5619
      %v5760 = vadd.f32 %v5241, %v5622
      %v5761 = vadd.f32 %v5242, %v5627
      %v5762 = vadd.f32 %v5243, %v5630
      %v5763 = vadd.f32 %v5244, %v5635
      %v5764 = vadd.f32 %v5245, %v5638
      %v5765 = vadd.f32 %v5246, %v5643
      %v5766 = vadd.f32 %v5247, %v5646
      %v5767 = vadd.f32 %v5248, %v5651
      %v5768 = vadd.f32 %v5249, %v5654
      %v5769 = vadd.f32 %v5250, %v5659
      %v5770 = vadd.f32 %v5251, %v5662
      %v5771 = vadd.f32 %v5252, %v5667
      %v5772 = vadd.f32 %v5253, %v5670
      %v5773 = vadd.f32 %v5254, %v5675
      %v5774 = vadd.f32 %v5255, %v5678
      %v5775 = vadd.f32 %v5256, %v5683
      %v5776 = vadd.f32 %v5257, %v5686
      %v5777 = vadd.f32 %v5258, %v5691
      %v5778 = vadd.f32 %v5259, %v5694
      %v5779 = vadd.f32 %v5260, %v5699
      %v5780 = vadd.f32 %v5261, %v5702
      %v5781 = vadd.f32 %v5262, %v5707
      %v5782 = vadd.f32 %v5263, %v5710
      %v5783 = vadd.f32 %v5264, %v5715
      %v5784 = vadd.f32 %v5265, %v5718
      %v5785 = vpack.c.bf16 %v5722, %v5721
      %v5786 = vpack.c.bf16 %v5724, %v5723
      %v5787 = vpack.c.bf16 %v5726, %v5725
      %v5788 = vpack.c.bf16 %v5728, %v5727
      %v5789 = vpack.c.bf16 %v5730, %v5729
      %v5790 = vpack.c.bf16 %v5732, %v5731
      %v5791 = vpack.c.bf16 %v5734, %v5733
      %v5792 = vpack.c.bf16 %v5736, %v5735
      %v5793 = vpack.c.bf16 %v5738, %v5737
      %v5794 = vpack.c.bf16 %v5740, %v5739
      %v5795 = vpack.c.bf16 %v5742, %v5741
      %v5796 = vpack.c.bf16 %v5744, %v5743
      %v5797 = vpack.c.bf16 %v5746, %v5745
      %v5798 = vpack.c.bf16 %v5748, %v5747
      %v5799 = vpack.c.bf16 %v5750, %v5749
      %v5800 = vpack.c.bf16 %v5752, %v5751
      %v5801 = vpack.c.bf16 %v5754, %v5753
      %v5802 = vpack.c.bf16 %v5756, %v5755
      %v5803 = vpack.c.bf16 %v5758, %v5757
      %v5804 = vpack.c.bf16 %v5760, %v5759
      %v5805 = vpack.c.bf16 %v5762, %v5761
      %v5806 = vpack.c.bf16 %v5764, %v5763
      %v5807 = vpack.c.bf16 %v5766, %v5765
      %v5808 = vpack.c.bf16 %v5768, %v5767
      %v5809 = vpack.c.bf16 %v5770, %v5769
      %v5810 = vpack.c.bf16 %v5772, %v5771
      %v5811 = vpack.c.bf16 %v5774, %v5773
      %v5812 = vpack.c.bf16 %v5776, %v5775
      %v5813 = vpack.c.bf16 %v5778, %v5777
      %v5814 = vpack.c.bf16 %v5780, %v5779
      %v5815 = vpack.c.bf16 %v5782, %v5781
      %v5816 = vpack.c.bf16 %v5784, %v5783
      %v5849 = vunpack.c.l.b16 %v5785
      %v5850 = vunpack.c.h.b16 %v5785
      %v5851 = vunpack.c.l.b16 %v5786
      %v5852 = vunpack.c.h.b16 %v5786
      %v5853 = vunpack.c.l.b16 %v5787
      %v5854 = vunpack.c.h.b16 %v5787
      %v5855 = vunpack.c.l.b16 %v5788
      %v5856 = vunpack.c.h.b16 %v5788
      %v5857 = vunpack.c.l.b16 %v5789
      %v5858 = vunpack.c.h.b16 %v5789
      %v5859 = vunpack.c.l.b16 %v5790
      %v5860 = vunpack.c.h.b16 %v5790
      %v5861 = vunpack.c.l.b16 %v5791
      %v5862 = vunpack.c.h.b16 %v5791
      %v5863 = vunpack.c.l.b16 %v5792
      %v5864 = vunpack.c.h.b16 %v5792
      %v5865 = vunpack.c.l.b16 %v5793
      %v5866 = vunpack.c.h.b16 %v5793
      %v5867 = vunpack.c.l.b16 %v5794
      %v5868 = vunpack.c.h.b16 %v5794
      %v5869 = vunpack.c.l.b16 %v5795
      %v5870 = vunpack.c.h.b16 %v5795
      %v5871 = vunpack.c.l.b16 %v5796
      %v5872 = vunpack.c.h.b16 %v5796
      %v5873 = vunpack.c.l.b16 %v5797
      %v5874 = vunpack.c.h.b16 %v5797
      %v5875 = vunpack.c.l.b16 %v5798
      %v5876 = vunpack.c.h.b16 %v5798
      %v5877 = vunpack.c.l.b16 %v5799
      %v5878 = vunpack.c.h.b16 %v5799
      %v5879 = vunpack.c.l.b16 %v5800
      %v5880 = vunpack.c.h.b16 %v5800
      %v5881 = vunpack.c.l.b16 %v5801
      %v5882 = vunpack.c.h.b16 %v5801
      %v5883 = vunpack.c.l.b16 %v5802
      %v5884 = vunpack.c.h.b16 %v5802
      %v5885 = vunpack.c.l.b16 %v5803
      %v5886 = vunpack.c.h.b16 %v5803
      %v5887 = vunpack.c.l.b16 %v5804
      %v5888 = vunpack.c.h.b16 %v5804
      %v5889 = vunpack.c.l.b16 %v5805
      %v5890 = vunpack.c.h.b16 %v5805
      %v5891 = vunpack.c.l.b16 %v5806
      %v5892 = vunpack.c.h.b16 %v5806
      %v5893 = vunpack.c.l.b16 %v5807
      %v5894 = vunpack.c.h.b16 %v5807
      %v5895 = vunpack.c.l.b16 %v5808
      %v5896 = vunpack.c.h.b16 %v5808
      %v5897 = vunpack.c.l.b16 %v5809
      %v5898 = vunpack.c.h.b16 %v5809
      %v5899 = vunpack.c.l.b16 %v5810
      %v5900 = vunpack.c.h.b16 %v5810
      %v5901 = vunpack.c.l.b16 %v5811
      %v5902 = vunpack.c.h.b16 %v5811
      %v5903 = vunpack.c.l.b16 %v5812
      %v5904 = vunpack.c.h.b16 %v5812
      %v5905 = vunpack.c.l.b16 %v5813
      %v5906 = vunpack.c.h.b16 %v5813
      %v5907 = vunpack.c.l.b16 %v5814
      %v5908 = vunpack.c.h.b16 %v5814
      %v5909 = vunpack.c.l.b16 %v5815
      %v5910 = vunpack.c.h.b16 %v5815
      %v5911 = vunpack.c.l.b16 %v5816
      %v5912 = vunpack.c.h.b16 %v5816
      %v5913 = vpack.c.b16 %v5849, %v5849
      %v5914 = vpack.c.b16 %v5850, %v5850
      %v5915 = vpack.c.b16 %v5851, %v5851
      %v5916 = vpack.c.b16 %v5852, %v5852
      %v5917 = vpack.c.b16 %v5853, %v5853
      %v5918 = vpack.c.b16 %v5854, %v5854
      %v5919 = vpack.c.b16 %v5855, %v5855
      %v5920 = vpack.c.b16 %v5856, %v5856
      %v5921 = vpack.c.b16 %v5857, %v5857
      %v5922 = vpack.c.b16 %v5858, %v5858
      %v5923 = vpack.c.b16 %v5859, %v5859
      %v5924 = vpack.c.b16 %v5860, %v5860
      %v5925 = vpack.c.b16 %v5861, %v5861
      %v5926 = vpack.c.b16 %v5862, %v5862
      %v5927 = vpack.c.b16 %v5863, %v5863
      %v5928 = vpack.c.b16 %v5864, %v5864
      %v5929 = vpack.c.b16 %v5865, %v5865
      %v5930 = vpack.c.b16 %v5866, %v5866
      %v5931 = vpack.c.b16 %v5867, %v5867
      %v5932 = vpack.c.b16 %v5868, %v5868
      %v5933 = vpack.c.b16 %v5869, %v5869
      %v5934 = vpack.c.b16 %v5870, %v5870
      %v5935 = vpack.c.b16 %v5871, %v5871
      %v5936 = vpack.c.b16 %v5872, %v5872
      %v5937 = vpack.c.b16 %v5873, %v5873
      %v5938 = vpack.c.b16 %v5874, %v5874
      %v5939 = vpack.c.b16 %v5875, %v5875
      %v5940 = vpack.c.b16 %v5876, %v5876
      %v5941 = vpack.c.b16 %v5877, %v5877
      %v5942 = vpack.c.b16 %v5878, %v5878
      %v5943 = vpack.c.b16 %v5879, %v5879
      %v5944 = vpack.c.b16 %v5880, %v5880
      %v5945 = vpack.c.b16 %v5881, %v5881
      %v5946 = vpack.c.b16 %v5882, %v5882
      %v5947 = vpack.c.b16 %v5883, %v5883
      %v5948 = vpack.c.b16 %v5884, %v5884
      %v5949 = vpack.c.b16 %v5885, %v5885
      %v5950 = vpack.c.b16 %v5886, %v5886
      %v5951 = vpack.c.b16 %v5887, %v5887
      %v5952 = vpack.c.b16 %v5888, %v5888
      %v5953 = vpack.c.b16 %v5889, %v5889
      %v5954 = vpack.c.b16 %v5890, %v5890
      %v5955 = vpack.c.b16 %v5891, %v5891
      %v5956 = vpack.c.b16 %v5892, %v5892
      %v5957 = vpack.c.b16 %v5893, %v5893
      %v5958 = vpack.c.b16 %v5894, %v5894
      %v5959 = vpack.c.b16 %v5895, %v5895
      %v5960 = vpack.c.b16 %v5896, %v5896
      %v5961 = vpack.c.b16 %v5897, %v5897
      %v5962 = vpack.c.b16 %v5898, %v5898
      %v5963 = vpack.c.b16 %v5899, %v5899
      %v5964 = vpack.c.b16 %v5900, %v5900
      %v5965 = vpack.c.b16 %v5901, %v5901
      %v5966 = vpack.c.b16 %v5902, %v5902
      %v5967 = vpack.c.b16 %v5903, %v5903
      %v5968 = vpack.c.b16 %v5904, %v5904
      %v5969 = vpack.c.b16 %v5905, %v5905
      %v5970 = vpack.c.b16 %v5906, %v5906
      %v5971 = vpack.c.b16 %v5907, %v5907
      %v5972 = vpack.c.b16 %v5908, %v5908
      %v5973 = vpack.c.b16 %v5909, %v5909
      %v5974 = vpack.c.b16 %v5910, %v5910
      %v5975 = vpack.c.b16 %v5911, %v5911
      %v5976 = vpack.c.b16 %v5912, %v5912
      %6041 = vst [vmem:[%s236] sm:$0xf] %v5913
      %6042 = vst [vmem:[%s236 + $0x4] sm:$0xf] %v5914
      %6043 = vst [vmem:[%s236 + $0x8] sm:$0xf] %v5915
      %6044 = vst [vmem:[%s236 + $0xc] sm:$0xf] %v5916
      %6045 = vst [vmem:[%s236 + $0x10] sm:$0xf] %v5917
      %6046 = vst [vmem:[%s236 + $0x14] sm:$0xf] %v5918
      %6047 = vst [vmem:[%s236 + $0x18] sm:$0xf] %v5919
      %6048 = vst [vmem:[%s236 + $0x1c] sm:$0xf] %v5920
      %6049 = vst [vmem:[%s236 + $0x20] sm:$0xf] %v5921
      %6050 = vst [vmem:[%s236 + $0x24] sm:$0xf] %v5922
      %6051 = vst [vmem:[%s236 + $0x28] sm:$0xf] %v5923
      %6052 = vst [vmem:[%s236 + $0x2c] sm:$0xf] %v5924
      %6053 = vst [vmem:[%s236 + $0x30] sm:$0xf] %v5925
      %6054 = vst [vmem:[%s236 + $0x34] sm:$0xf] %v5926
      %6055 = vst [vmem:[%s236 + $0x38] sm:$0xf] %v5927
      %6056 = vst [vmem:[%s236 + $0x3c] sm:$0xf] %v5928
      %6057 = vst [vmem:[%s236 + $0x40] sm:$0xf] %v5929
      %6058 = vst [vmem:[%s236 + $0x44] sm:$0xf] %v5930
      %6059 = vst [vmem:[%s236 + $0x48] sm:$0xf] %v5931
      %6060 = vst [vmem:[%s236 + $0x4c] sm:$0xf] %v5932
      %6061 = vst [vmem:[%s236 + $0x50] sm:$0xf] %v5933
      %6062 = vst [vmem:[%s236 + $0x54] sm:$0xf] %v5934
      %6063 = vst [vmem:[%s236 + $0x58] sm:$0xf] %v5935
      %6064 = vst [vmem:[%s236 + $0x5c] sm:$0xf] %v5936
      %6065 = vst [vmem:[%s236 + $0x60] sm:$0xf] %v5937
      %6066 = vst [vmem:[%s236 + $0x64] sm:$0xf] %v5938
      %6067 = vst [vmem:[%s236 + $0x68] sm:$0xf] %v5939
      %6068 = vst [vmem:[%s236 + $0x6c] sm:$0xf] %v5940
      %6069 = vst [vmem:[%s236 + $0x70] sm:$0xf] %v5941
      %6070 = vst [vmem:[%s236 + $0x74] sm:$0xf] %v5942
      %6071 = vst [vmem:[%s236 + $0x78] sm:$0xf] %v5943
      %6072 = vst [vmem:[%s236 + $0x7c] sm:$0xf] %v5944
      %6073 = vst [vmem:[%s236 + $0x80] sm:$0xf] %v5945
      %6074 = vst [vmem:[%s236 + $0x84] sm:$0xf] %v5946
      %6075 = vst [vmem:[%s236 + $0x88] sm:$0xf] %v5947
      %6076 = vst [vmem:[%s236 + $0x8c] sm:$0xf] %v5948
      %6077 = vst [vmem:[%s236 + $0x90] sm:$0xf] %v5949
      %6078 = vst [vmem:[%s236 + $0x94] sm:$0xf] %v5950
      %6079 = vst [vmem:[%s236 + $0x98] sm:$0xf] %v5951
      %6080 = vst [vmem:[%s236 + $0x9c] sm:$0xf] %v5952
      %6081 = vst [vmem:[%s236 + $0xa0] sm:$0xf] %v5953
      %6082 = vst [vmem:[%s236 + $0xa4] sm:$0xf] %v5954
      %6083 = vst [vmem:[%s236 + $0xa8] sm:$0xf] %v5955
      %6084 = vst [vmem:[%s236 + $0xac] sm:$0xf] %v5956
      %6085 = vst [vmem:[%s236 + $0xb0] sm:$0xf] %v5957
      %6086 = vst [vmem:[%s236 + $0xb4] sm:$0xf] %v5958
      %6087 = vst [vmem:[%s236 + $0xb8] sm:$0xf] %v5959
      %6088 = vst [vmem:[%s236 + $0xbc] sm:$0xf] %v5960
      %6089 = vst [vmem:[%s236 + $0xc0] sm:$0xf] %v5961
      %6090 = vst [vmem:[%s236 + $0xc4] sm:$0xf] %v5962
      %6091 = vst [vmem:[%s236 + $0xc8] sm:$0xf] %v5963
      %6092 = vst [vmem:[%s236 + $0xcc] sm:$0xf] %v5964
      %6093 = vst [vmem:[%s236 + $0xd0] sm:$0xf] %v5965
      %6094 = vst [vmem:[%s236 + $0xd4] sm:$0xf] %v5966
      %6095 = vst [vmem:[%s236 + $0xd8] sm:$0xf] %v5967
      %6096 = vst [vmem:[%s236 + $0xdc] sm:$0xf] %v5968
      %6097 = vst [vmem:[%s236 + $0xe0] sm:$0xf] %v5969
      %6098 = vst [vmem:[%s236 + $0xe4] sm:$0xf] %v5970
      %6099 = vst [vmem:[%s236 + $0xe8] sm:$0xf] %v5971
      %6100 = vst [vmem:[%s236 + $0xec] sm:$0xf] %v5972
      %6101 = vst [vmem:[%s236 + $0xf0] sm:$0xf] %v5973
      %6102 = vst [vmem:[%s236 + $0xf4] sm:$0xf] %v5974
      %6103 = vst [vmem:[%s236 + $0xf8] sm:$0xf] %v5975
      %6104 = vst [vmem:[%s236 + $0xfc] sm:$0xf] %v5976
      %v6105 = vld [vmem:[%s228] sm:$0xff]
      %v6106 = vld [vmem:[%s228 + $0x8] sm:$0xff]
      %v6107 = vld [vmem:[%s228 + $0x10] sm:$0xff]
      %v6108 = vld [vmem:[%s228 + $0x18] sm:$0xff]
      %v6109 = vld [vmem:[%s228 + $0x20] sm:$0xff]
      %v6110 = vld [vmem:[%s228 + $0x28] sm:$0xff]
      %v6111 = vld [vmem:[%s228 + $0x30] sm:$0xff]
      %v6112 = vld [vmem:[%s228 + $0x38] sm:$0xff]
      %v6113 = vld [vmem:[%s228 + $0x40] sm:$0xff]
      %v6114 = vld [vmem:[%s228 + $0x48] sm:$0xff]
      %v6115 = vld [vmem:[%s228 + $0x50] sm:$0xff]
      %v6116 = vld [vmem:[%s228 + $0x58] sm:$0xff]
      %v6117 = vld [vmem:[%s228 + $0x60] sm:$0xff]
      %v6118 = vld [vmem:[%s228 + $0x68] sm:$0xff]
      %v6119 = vld [vmem:[%s228 + $0x70] sm:$0xff]
      %v6120 = vld [vmem:[%s228 + $0x78] sm:$0xff]
      %v6121 = vld [vmem:[%s228 + $0x80] sm:$0xff]
      %v6122 = vld [vmem:[%s228 + $0x88] sm:$0xff]
      %v6123 = vld [vmem:[%s228 + $0x90] sm:$0xff]
      %v6124 = vld [vmem:[%s228 + $0x98] sm:$0xff]
      %v6125 = vld [vmem:[%s228 + $0xa0] sm:$0xff]
      %v6126 = vld [vmem:[%s228 + $0xa8] sm:$0xff]
      %v6127 = vld [vmem:[%s228 + $0xb0] sm:$0xff]
      %v6128 = vld [vmem:[%s228 + $0xb8] sm:$0xff]
      %v6129 = vld [vmem:[%s228 + $0xc0] sm:$0xff]
      %v6130 = vld [vmem:[%s228 + $0xc8] sm:$0xff]
      %v6131 = vld [vmem:[%s228 + $0xd0] sm:$0xff]
      %v6132 = vld [vmem:[%s228 + $0xd8] sm:$0xff]
      %v6133 = vld [vmem:[%s228 + $0xe0] sm:$0xff]
      %v6134 = vld [vmem:[%s228 + $0xe8] sm:$0xff]
      %v6135 = vld [vmem:[%s228 + $0xf0] sm:$0xff]
      %v6136 = vld [vmem:[%s228 + $0xf8] sm:$0xff]
      %v6137 = vld [vmem:[%s228 + $0x100] sm:$0xff]
      %v6138 = vld [vmem:[%s228 + $0x108] sm:$0xff]
      %v6139 = vld [vmem:[%s228 + $0x110] sm:$0xff]
      %v6140 = vld [vmem:[%s228 + $0x118] sm:$0xff]
      %v6141 = vld [vmem:[%s228 + $0x120] sm:$0xff]
      %v6142 = vld [vmem:[%s228 + $0x128] sm:$0xff]
      %v6143 = vld [vmem:[%s228 + $0x130] sm:$0xff]
      %v6144 = vld [vmem:[%s228 + $0x138] sm:$0xff]
      %v6145 = vld [vmem:[%s228 + $0x140] sm:$0xff]
      %v6146 = vld [vmem:[%s228 + $0x148] sm:$0xff]
      %v6147 = vld [vmem:[%s228 + $0x150] sm:$0xff]
      %v6148 = vld [vmem:[%s228 + $0x158] sm:$0xff]
      %v6149 = vld [vmem:[%s228 + $0x160] sm:$0xff]
      %v6150 = vld [vmem:[%s228 + $0x168] sm:$0xff]
      %v6151 = vld [vmem:[%s228 + $0x170] sm:$0xff]
      %v6152 = vld [vmem:[%s228 + $0x178] sm:$0xff]
      %v6153 = vld [vmem:[%s228 + $0x180] sm:$0xff]
      %v6154 = vld [vmem:[%s228 + $0x188] sm:$0xff]
      %v6155 = vld [vmem:[%s228 + $0x190] sm:$0xff]
      %v6156 = vld [vmem:[%s228 + $0x198] sm:$0xff]
      %v6157 = vld [vmem:[%s228 + $0x1a0] sm:$0xff]
      %v6158 = vld [vmem:[%s228 + $0x1a8] sm:$0xff]
      %v6159 = vld [vmem:[%s228 + $0x1b0] sm:$0xff]
      %v6160 = vld [vmem:[%s228 + $0x1b8] sm:$0xff]
      %v6161 = vld [vmem:[%s228 + $0x1c0] sm:$0xff]
      %v6162 = vld [vmem:[%s228 + $0x1c8] sm:$0xff]
      %v6163 = vld [vmem:[%s228 + $0x1d0] sm:$0xff]
      %v6164 = vld [vmem:[%s228 + $0x1d8] sm:$0xff]
      %v6165 = vld [vmem:[%s228 + $0x1e0] sm:$0xff]
      %v6166 = vld [vmem:[%s228 + $0x1e8] sm:$0xff]
      %v6167 = vld [vmem:[%s228 + $0x1f0] sm:$0xff]
      %v6168 = vld [vmem:[%s228 + $0x1f8] sm:$0xff]
      %6170 = vset.pattern.permute.xlu0 0
      %6171 = vperm.xlu0 %6170, %v6105
      %v6172 = vpop.permute.xlu0 %6171
      %6175 = vset.pattern.permute.xlu0 0
      %6176 = vperm.xlu0 %6175, %v6106
      %v6177 = vpop.permute.xlu0 %6176
      %6180 = vset.pattern.permute.xlu0 0
      %6181 = vperm.xlu0 %6180, %v6107
      %v6182 = vpop.permute.xlu0 %6181
      %6185 = vset.pattern.permute.xlu0 0
      %6186 = vperm.xlu0 %6185, %v6108
      %v6187 = vpop.permute.xlu0 %6186
      %6190 = vset.pattern.permute.xlu0 0
      %6191 = vperm.xlu0 %6190, %v6109
      %v6192 = vpop.permute.xlu0 %6191
      %6195 = vset.pattern.permute.xlu0 0
      %6196 = vperm.xlu0 %6195, %v6110
      %v6197 = vpop.permute.xlu0 %6196
      %6200 = vset.pattern.permute.xlu0 0
      %6201 = vperm.xlu0 %6200, %v6111
      %v6202 = vpop.permute.xlu0 %6201
      %6205 = vset.pattern.permute.xlu0 0
      %6206 = vperm.xlu0 %6205, %v6112
      %v6207 = vpop.permute.xlu0 %6206
      %6210 = vset.pattern.permute.xlu0 0
      %6211 = vperm.xlu0 %6210, %v6113
      %v6212 = vpop.permute.xlu0 %6211
      %6215 = vset.pattern.permute.xlu0 0
      %6216 = vperm.xlu0 %6215, %v6114
      %v6217 = vpop.permute.xlu0 %6216
      %6220 = vset.pattern.permute.xlu0 0
      %6221 = vperm.xlu0 %6220, %v6115
      %v6222 = vpop.permute.xlu0 %6221
      %6225 = vset.pattern.permute.xlu0 0
      %6226 = vperm.xlu0 %6225, %v6116
      %v6227 = vpop.permute.xlu0 %6226
      %6230 = vset.pattern.permute.xlu0 0
      %6231 = vperm.xlu0 %6230, %v6117
      %v6232 = vpop.permute.xlu0 %6231
      %6235 = vset.pattern.permute.xlu0 0
      %6236 = vperm.xlu0 %6235, %v6118
      %v6237 = vpop.permute.xlu0 %6236
      %6240 = vset.pattern.permute.xlu0 0
      %6241 = vperm.xlu0 %6240, %v6119
      %v6242 = vpop.permute.xlu0 %6241
      %6245 = vset.pattern.permute.xlu0 0
      %6246 = vperm.xlu0 %6245, %v6120
      %v6247 = vpop.permute.xlu0 %6246
      %6250 = vset.pattern.permute.xlu0 0
      %6251 = vperm.xlu0 %6250, %v6121
      %v6252 = vpop.permute.xlu0 %6251
      %6255 = vset.pattern.permute.xlu0 0
      %6256 = vperm.xlu0 %6255, %v6122
      %v6257 = vpop.permute.xlu0 %6256
      %6260 = vset.pattern.permute.xlu0 0
      %6261 = vperm.xlu0 %6260, %v6123
      %v6262 = vpop.permute.xlu0 %6261
      %6265 = vset.pattern.permute.xlu0 0
      %6266 = vperm.xlu0 %6265, %v6124
      %v6267 = vpop.permute.xlu0 %6266
      %6270 = vset.pattern.permute.xlu0 0
      %6271 = vperm.xlu0 %6270, %v6125
      %v6272 = vpop.permute.xlu0 %6271
      %6275 = vset.pattern.permute.xlu0 0
      %6276 = vperm.xlu0 %6275, %v6126
      %v6277 = vpop.permute.xlu0 %6276
      %6280 = vset.pattern.permute.xlu0 0
      %6281 = vperm.xlu0 %6280, %v6127
      %v6282 = vpop.permute.xlu0 %6281
      %6285 = vset.pattern.permute.xlu0 0
      %6286 = vperm.xlu0 %6285, %v6128
      %v6287 = vpop.permute.xlu0 %6286
      %6290 = vset.pattern.permute.xlu0 0
      %6291 = vperm.xlu0 %6290, %v6129
      %v6292 = vpop.permute.xlu0 %6291
      %6295 = vset.pattern.permute.xlu0 0
      %6296 = vperm.xlu0 %6295, %v6130
      %v6297 = vpop.permute.xlu0 %6296
      %6300 = vset.pattern.permute.xlu0 0
      %6301 = vperm.xlu0 %6300, %v6131
      %v6302 = vpop.permute.xlu0 %6301
      %6305 = vset.pattern.permute.xlu0 0
      %6306 = vperm.xlu0 %6305, %v6132
      %v6307 = vpop.permute.xlu0 %6306
      %6310 = vset.pattern.permute.xlu0 0
      %6311 = vperm.xlu0 %6310, %v6133
      %v6312 = vpop.permute.xlu0 %6311
      %6315 = vset.pattern.permute.xlu0 0
      %6316 = vperm.xlu0 %6315, %v6134
      %v6317 = vpop.permute.xlu0 %6316
      %6320 = vset.pattern.permute.xlu0 0
      %6321 = vperm.xlu0 %6320, %v6135
      %v6322 = vpop.permute.xlu0 %6321
      %6325 = vset.pattern.permute.xlu0 0
      %6326 = vperm.xlu0 %6325, %v6136
      %v6327 = vpop.permute.xlu0 %6326
      %6330 = vset.pattern.permute.xlu0 0
      %6331 = vperm.xlu0 %6330, %v6137
      %v6332 = vpop.permute.xlu0 %6331
      %6335 = vset.pattern.permute.xlu0 0
      %6336 = vperm.xlu0 %6335, %v6138
      %v6337 = vpop.permute.xlu0 %6336
      %6340 = vset.pattern.permute.xlu0 0
      %6341 = vperm.xlu0 %6340, %v6139
      %v6342 = vpop.permute.xlu0 %6341
      %6345 = vset.pattern.permute.xlu0 0
      %6346 = vperm.xlu0 %6345, %v6140
      %v6347 = vpop.permute.xlu0 %6346
      %6350 = vset.pattern.permute.xlu0 0
      %6351 = vperm.xlu0 %6350, %v6141
      %v6352 = vpop.permute.xlu0 %6351
      %6355 = vset.pattern.permute.xlu0 0
      %6356 = vperm.xlu0 %6355, %v6142
      %v6357 = vpop.permute.xlu0 %6356
      %6360 = vset.pattern.permute.xlu0 0
      %6361 = vperm.xlu0 %6360, %v6143
      %v6362 = vpop.permute.xlu0 %6361
      %6365 = vset.pattern.permute.xlu0 0
      %6366 = vperm.xlu0 %6365, %v6144
      %v6367 = vpop.permute.xlu0 %6366
      %6370 = vset.pattern.permute.xlu0 0
      %6371 = vperm.xlu0 %6370, %v6145
      %v6372 = vpop.permute.xlu0 %6371
      %6375 = vset.pattern.permute.xlu0 0
      %6376 = vperm.xlu0 %6375, %v6146
      %v6377 = vpop.permute.xlu0 %6376
      %6380 = vset.pattern.permute.xlu0 0
      %6381 = vperm.xlu0 %6380, %v6147
      %v6382 = vpop.permute.xlu0 %6381
      %6385 = vset.pattern.permute.xlu0 0
      %6386 = vperm.xlu0 %6385, %v6148
      %v6387 = vpop.permute.xlu0 %6386
      %6390 = vset.pattern.permute.xlu0 0
      %6391 = vperm.xlu0 %6390, %v6149
      %v6392 = vpop.permute.xlu0 %6391
      %6395 = vset.pattern.permute.xlu0 0
      %6396 = vperm.xlu0 %6395, %v6150
      %v6397 = vpop.permute.xlu0 %6396
      %6400 = vset.pattern.permute.xlu0 0
      %6401 = vperm.xlu0 %6400, %v6151
      %v6402 = vpop.permute.xlu0 %6401
      %6405 = vset.pattern.permute.xlu0 0
      %6406 = vperm.xlu0 %6405, %v6152
      %v6407 = vpop.permute.xlu0 %6406
      %6410 = vset.pattern.permute.xlu0 0
      %6411 = vperm.xlu0 %6410, %v6153
      %v6412 = vpop.permute.xlu0 %6411
      %6415 = vset.pattern.permute.xlu0 0
      %6416 = vperm.xlu0 %6415, %v6154
      %v6417 = vpop.permute.xlu0 %6416
      %6420 = vset.pattern.permute.xlu0 0
      %6421 = vperm.xlu0 %6420, %v6155
      %v6422 = vpop.permute.xlu0 %6421
      %6425 = vset.pattern.permute.xlu0 0
      %6426 = vperm.xlu0 %6425, %v6156
      %v6427 = vpop.permute.xlu0 %6426
      %6430 = vset.pattern.permute.xlu0 0
      %6431 = vperm.xlu0 %6430, %v6157
      %v6432 = vpop.permute.xlu0 %6431
      %6435 = vset.pattern.permute.xlu0 0
      %6436 = vperm.xlu0 %6435, %v6158
      %v6437 = vpop.permute.xlu0 %6436
      %6440 = vset.pattern.permute.xlu0 0
      %6441 = vperm.xlu0 %6440, %v6159
      %v6442 = vpop.permute.xlu0 %6441
      %6445 = vset.pattern.permute.xlu0 0
      %6446 = vperm.xlu0 %6445, %v6160
      %v6447 = vpop.permute.xlu0 %6446
      %6450 = vset.pattern.permute.xlu0 0
      %6451 = vperm.xlu0 %6450, %v6161
      %v6452 = vpop.permute.xlu0 %6451
      %6455 = vset.pattern.permute.xlu0 0
      %6456 = vperm.xlu0 %6455, %v6162
      %v6457 = vpop.permute.xlu0 %6456
      %6460 = vset.pattern.permute.xlu0 0
      %6461 = vperm.xlu0 %6460, %v6163
      %v6462 = vpop.permute.xlu0 %6461
      %6465 = vset.pattern.permute.xlu0 0
      %6466 = vperm.xlu0 %6465, %v6164
      %v6467 = vpop.permute.xlu0 %6466
      %6470 = vset.pattern.permute.xlu0 0
      %6471 = vperm.xlu0 %6470, %v6165
      %v6472 = vpop.permute.xlu0 %6471
      %6475 = vset.pattern.permute.xlu0 0
      %6476 = vperm.xlu0 %6475, %v6166
      %v6477 = vpop.permute.xlu0 %6476
      %6480 = vset.pattern.permute.xlu0 0
      %6481 = vperm.xlu0 %6480, %v6167
      %v6482 = vpop.permute.xlu0 %6481
      %6485 = vset.pattern.permute.xlu0 0
      %6486 = vperm.xlu0 %6485, %v6168
      %v6487 = vpop.permute.xlu0 %6486
      %v6489 = vmul.f32 %v5721, %v6172
      %v6490 = vmul.f32 %v5722, %v6177
      %v6491 = vmul.f32 %v5723, %v6182
      %v6492 = vmul.f32 %v5724, %v6187
      %v6493 = vmul.f32 %v5725, %v6192
      %v6494 = vmul.f32 %v5726, %v6197
      %v6495 = vmul.f32 %v5727, %v6202
      %v6496 = vmul.f32 %v5728, %v6207
      %v6497 = vmul.f32 %v5729, %v6212
      %v6498 = vmul.f32 %v5730, %v6217
      %v6499 = vmul.f32 %v5731, %v6222
      %v6500 = vmul.f32 %v5732, %v6227
      %v6501 = vmul.f32 %v5733, %v6232
      %v6502 = vmul.f32 %v5734, %v6237
      %v6503 = vmul.f32 %v5735, %v6242
      %v6504 = vmul.f32 %v5736, %v6247
      %v6505 = vmul.f32 %v5737, %v6252
      %v6506 = vmul.f32 %v5738, %v6257
      %v6507 = vmul.f32 %v5739, %v6262
      %v6508 = vmul.f32 %v5740, %v6267
      %v6509 = vmul.f32 %v5741, %v6272
      %v6510 = vmul.f32 %v5742, %v6277
      %v6511 = vmul.f32 %v5743, %v6282
      %v6512 = vmul.f32 %v5744, %v6287
      %v6513 = vmul.f32 %v5745, %v6292
      %v6514 = vmul.f32 %v5746, %v6297
      %v6515 = vmul.f32 %v5747, %v6302
      %v6516 = vmul.f32 %v5748, %v6307
      %v6517 = vmul.f32 %v5749, %v6312
      %v6518 = vmul.f32 %v5750, %v6317
      %v6519 = vmul.f32 %v5751, %v6322
      %v6520 = vmul.f32 %v5752, %v6327
      %v6521 = vmul.f32 %v5753, %v6332
      %v6522 = vmul.f32 %v5754, %v6337
      %v6523 = vmul.f32 %v5755, %v6342
      %v6524 = vmul.f32 %v5756, %v6347
      %v6525 = vmul.f32 %v5757, %v6352
      %v6526 = vmul.f32 %v5758, %v6357
      %v6527 = vmul.f32 %v5759, %v6362
      %v6528 = vmul.f32 %v5760, %v6367
      %v6529 = vmul.f32 %v5761, %v6372
      %v6530 = vmul.f32 %v5762, %v6377
      %v6531 = vmul.f32 %v5763, %v6382
      %v6532 = vmul.f32 %v5764, %v6387
      %v6533 = vmul.f32 %v5765, %v6392
      %v6534 = vmul.f32 %v5766, %v6397
      %v6535 = vmul.f32 %v5767, %v6402
      %v6536 = vmul.f32 %v5768, %v6407
      %v6537 = vmul.f32 %v5769, %v6412
      %v6538 = vmul.f32 %v5770, %v6417
      %v6539 = vmul.f32 %v5771, %v6422
      %v6540 = vmul.f32 %v5772, %v6427
      %v6541 = vmul.f32 %v5773, %v6432
      %v6542 = vmul.f32 %v5774, %v6437
      %v6543 = vmul.f32 %v5775, %v6442
      %v6544 = vmul.f32 %v5776, %v6447
      %v6545 = vmul.f32 %v5777, %v6452
      %v6546 = vmul.f32 %v5778, %v6457
      %v6547 = vmul.f32 %v5779, %v6462
      %v6548 = vmul.f32 %v5780, %v6467
      %v6549 = vmul.f32 %v5781, %v6472
      %v6550 = vmul.f32 %v5782, %v6477
      %v6551 = vmul.f32 %v5783, %v6482
      %v6552 = vmul.f32 %v5784, %v6487
      %v6553 = vld [vmem:[%s242] sm:$0xff]
      %v6554 = vadd.f32 %v6489, %v6490
      %v6555 = vadd.f32 %v6554, %v6491
      %v6556 = vadd.f32 %v6555, %v6492
      %v6557 = vadd.f32 %v6556, %v6493
      %v6558 = vadd.f32 %v6557, %v6494
      %v6559 = vadd.f32 %v6558, %v6495
      %v6560 = vadd.f32 %v6559, %v6496
      %v6561 = vadd.f32 %v6560, %v6497
      %v6562 = vadd.f32 %v6561, %v6498
      %v6563 = vadd.f32 %v6562, %v6499
      %v6564 = vadd.f32 %v6563, %v6500
      %v6565 = vadd.f32 %v6564, %v6501
      %v6566 = vadd.f32 %v6565, %v6502
      %v6567 = vadd.f32 %v6566, %v6503
      %v6568 = vadd.f32 %v6567, %v6504
      %v6569 = vadd.f32 %v6568, %v6505
      %v6570 = vadd.f32 %v6569, %v6506
      %v6571 = vadd.f32 %v6570, %v6507
      %v6572 = vadd.f32 %v6571, %v6508
      %v6573 = vadd.f32 %v6572, %v6509
      %v6574 = vadd.f32 %v6573, %v6510
      %v6575 = vadd.f32 %v6574, %v6511
      %v6576 = vadd.f32 %v6575, %v6512
      %v6577 = vadd.f32 %v6576, %v6513
      %v6578 = vadd.f32 %v6577, %v6514
      %v6579 = vadd.f32 %v6578, %v6515
      %v6580 = vadd.f32 %v6579, %v6516
      %v6581 = vadd.f32 %v6580, %v6517
      %v6582 = vadd.f32 %v6581, %v6518
      %v6583 = vadd.f32 %v6582, %v6519
      %v6584 = vadd.f32 %v6583, %v6520
      %v6585 = vadd.f32 %v6584, %v6521
      %v6586 = vadd.f32 %v6585, %v6522
      %v6587 = vadd.f32 %v6586, %v6523
      %v6588 = vadd.f32 %v6587, %v6524
      %v6589 = vadd.f32 %v6588, %v6525
      %v6590 = vadd.f32 %v6589, %v6526
      %v6591 = vadd.f32 %v6590, %v6527
      %v6592 = vadd.f32 %v6591, %v6528
      %v6593 = vadd.f32 %v6592, %v6529
      %v6594 = vadd.f32 %v6593, %v6530
      %v6595 = vadd.f32 %v6594, %v6531
      %v6596 = vadd.f32 %v6595, %v6532
      %v6597 = vadd.f32 %v6596, %v6533
      %v6598 = vadd.f32 %v6597, %v6534
      %v6599 = vadd.f32 %v6598, %v6535
      %v6600 = vadd.f32 %v6599, %v6536
      %v6601 = vadd.f32 %v6600, %v6537
      %v6602 = vadd.f32 %v6601, %v6538
      %v6603 = vadd.f32 %v6602, %v6539
      %v6604 = vadd.f32 %v6603, %v6540
      %v6605 = vadd.f32 %v6604, %v6541
      %v6606 = vadd.f32 %v6605, %v6542
      %v6607 = vadd.f32 %v6606, %v6543
      %v6608 = vadd.f32 %v6607, %v6544
      %v6609 = vadd.f32 %v6608, %v6545
      %v6610 = vadd.f32 %v6609, %v6546
      %v6611 = vadd.f32 %v6610, %v6547
      %v6612 = vadd.f32 %v6611, %v6548
      %v6613 = vadd.f32 %v6612, %v6549
      %v6614 = vadd.f32 %v6613, %v6550
      %v6615 = vadd.f32 %v6614, %v6551
      %v6616 = vadd.f32 %v6615, %v6552
      %v6617 = vrot.slane %v6616, 4
      %v6618 = vadd.f32 %v6616, %v6617
      %v6619 = vrot.slane %v6618, 2
      %v6620 = vadd.f32 %v6618, %v6619
      %v6621 = vrot.slane %v6620, 1
      %v6622 = vadd.f32 %v6620, %v6621
      %v6623 = vadd.f32 %v6553, %v6622
      %6624 = vst [vmem:[%s242] sm:$0xff] %v6623
      %v6625 = vld [vmem:[%s246] sm:$0xff]
      %v6626 = vmul.f32 %v6489, %v5721
      %v6627 = vmul.f32 %v6490, %v5722
      %v6628 = vmul.f32 %v6491, %v5723
      %v6629 = vmul.f32 %v6492, %v5724
      %v6630 = vmul.f32 %v6493, %v5725
      %v6631 = vmul.f32 %v6494, %v5726
      %v6632 = vmul.f32 %v6495, %v5727
      %v6633 = vmul.f32 %v6496, %v5728
      %v6634 = vmul.f32 %v6497, %v5729
      %v6635 = vmul.f32 %v6498, %v5730
      %v6636 = vmul.f32 %v6499, %v5731
      %v6637 = vmul.f32 %v6500, %v5732
      %v6638 = vmul.f32 %v6501, %v5733
      %v6639 = vmul.f32 %v6502, %v5734
      %v6640 = vmul.f32 %v6503, %v5735
      %v6641 = vmul.f32 %v6504, %v5736
      %v6642 = vmul.f32 %v6505, %v5737
      %v6643 = vmul.f32 %v6506, %v5738
      %v6644 = vmul.f32 %v6507, %v5739
      %v6645 = vmul.f32 %v6508, %v5740
      %v6646 = vmul.f32 %v6509, %v5741
      %v6647 = vmul.f32 %v6510, %v5742
      %v6648 = vmul.f32 %v6511, %v5743
      %v6649 = vmul.f32 %v6512, %v5744
      %v6650 = vmul.f32 %v6513, %v5745
      %v6651 = vmul.f32 %v6514, %v5746
      %v6652 = vmul.f32 %v6515, %v5747
      %v6653 = vmul.f32 %v6516, %v5748
      %v6654 = vmul.f32 %v6517, %v5749
      %v6655 = vmul.f32 %v6518, %v5750
      %v6656 = vmul.f32 %v6519, %v5751
      %v6657 = vmul.f32 %v6520, %v5752
      %v6658 = vmul.f32 %v6521, %v5753
      %v6659 = vmul.f32 %v6522, %v5754
      %v6660 = vmul.f32 %v6523, %v5755
      %v6661 = vmul.f32 %v6524, %v5756
      %v6662 = vmul.f32 %v6525, %v5757
      %v6663 = vmul.f32 %v6526, %v5758
      %v6664 = vmul.f32 %v6527, %v5759
      %v6665 = vmul.f32 %v6528, %v5760
      %v6666 = vmul.f32 %v6529, %v5761
      %v6667 = vmul.f32 %v6530, %v5762
      %v6668 = vmul.f32 %v6531, %v5763
      %v6669 = vmul.f32 %v6532, %v5764
      %v6670 = vmul.f32 %v6533, %v5765
      %v6671 = vmul.f32 %v6534, %v5766
      %v6672 = vmul.f32 %v6535, %v5767
      %v6673 = vmul.f32 %v6536, %v5768
      %v6674 = vmul.f32 %v6537, %v5769
      %v6675 = vmul.f32 %v6538, %v5770
      %v6676 = vmul.f32 %v6539, %v5771
      %v6677 = vmul.f32 %v6540, %v5772
      %v6678 = vmul.f32 %v6541, %v5773
      %v6679 = vmul.f32 %v6542, %v5774
      %v6680 = vmul.f32 %v6543, %v5775
      %v6681 = vmul.f32 %v6544, %v5776
      %v6682 = vmul.f32 %v6545, %v5777
      %v6683 = vmul.f32 %v6546, %v5778
      %v6684 = vmul.f32 %v6547, %v5779
      %v6685 = vmul.f32 %v6548, %v5780
      %v6686 = vmul.f32 %v6549, %v5781
      %v6687 = vmul.f32 %v6550, %v5782
      %v6688 = vmul.f32 %v6551, %v5783
      %v6689 = vmul.f32 %v6552, %v5784
      %v6690 = vadd.f32 %v6626, %v6627
      %v6691 = vadd.f32 %v6690, %v6628
      %v6692 = vadd.f32 %v6691, %v6629
      %v6693 = vadd.f32 %v6692, %v6630
      %v6694 = vadd.f32 %v6693, %v6631
      %v6695 = vadd.f32 %v6694, %v6632
      %v6696 = vadd.f32 %v6695, %v6633
      %v6697 = vadd.f32 %v6696, %v6634
      %v6698 = vadd.f32 %v6697, %v6635
      %v6699 = vadd.f32 %v6698, %v6636
      %v6700 = vadd.f32 %v6699, %v6637
      %v6701 = vadd.f32 %v6700, %v6638
      %v6702 = vadd.f32 %v6701, %v6639
      %v6703 = vadd.f32 %v6702, %v6640
      %v6704 = vadd.f32 %v6703, %v6641
      %v6705 = vadd.f32 %v6704, %v6642
      %v6706 = vadd.f32 %v6705, %v6643
      %v6707 = vadd.f32 %v6706, %v6644
      %v6708 = vadd.f32 %v6707, %v6645
      %v6709 = vadd.f32 %v6708, %v6646
      %v6710 = vadd.f32 %v6709, %v6647
      %v6711 = vadd.f32 %v6710, %v6648
      %v6712 = vadd.f32 %v6711, %v6649
      %v6713 = vadd.f32 %v6712, %v6650
      %v6714 = vadd.f32 %v6713, %v6651
      %v6715 = vadd.f32 %v6714, %v6652
      %v6716 = vadd.f32 %v6715, %v6653
      %v6717 = vadd.f32 %v6716, %v6654
      %v6718 = vadd.f32 %v6717, %v6655
      %v6719 = vadd.f32 %v6718, %v6656
      %v6720 = vadd.f32 %v6719, %v6657
      %v6721 = vadd.f32 %v6720, %v6658
      %v6722 = vadd.f32 %v6721, %v6659
      %v6723 = vadd.f32 %v6722, %v6660
      %v6724 = vadd.f32 %v6723, %v6661
      %v6725 = vadd.f32 %v6724, %v6662
      %v6726 = vadd.f32 %v6725, %v6663
      %v6727 = vadd.f32 %v6726, %v6664
      %v6728 = vadd.f32 %v6727, %v6665
      %v6729 = vadd.f32 %v6728, %v6666
      %v6730 = vadd.f32 %v6729, %v6667
      %v6731 = vadd.f32 %v6730, %v6668
      %v6732 = vadd.f32 %v6731, %v6669
      %v6733 = vadd.f32 %v6732, %v6670
      %v6734 = vadd.f32 %v6733, %v6671
      %v6735 = vadd.f32 %v6734, %v6672
      %v6736 = vadd.f32 %v6735, %v6673
      %v6737 = vadd.f32 %v6736, %v6674
      %v6738 = vadd.f32 %v6737, %v6675
      %v6739 = vadd.f32 %v6738, %v6676
      %v6740 = vadd.f32 %v6739, %v6677
      %v6741 = vadd.f32 %v6740, %v6678
      %v6742 = vadd.f32 %v6741, %v6679
      %v6743 = vadd.f32 %v6742, %v6680
      %v6744 = vadd.f32 %v6743, %v6681
      %v6745 = vadd.f32 %v6744, %v6682
      %v6746 = vadd.f32 %v6745, %v6683
      %v6747 = vadd.f32 %v6746, %v6684
      %v6748 = vadd.f32 %v6747, %v6685
      %v6749 = vadd.f32 %v6748, %v6686
      %v6750 = vadd.f32 %v6749, %v6687
      %v6751 = vadd.f32 %v6750, %v6688
      %v6752 = vadd.f32 %v6751, %v6689
      %v6753 = vrot.slane %v6752, 4
      %v6754 = vadd.f32 %v6752, %v6753
      %v6755 = vrot.slane %v6754, 2
      %v6756 = vadd.f32 %v6754, %v6755
      %v6757 = vrot.slane %v6756, 1
      %v6758 = vadd.f32 %v6756, %v6757
      %v6759 = vadd.f32 %v6625, %v6758
      %6760 = vst [vmem:[%s246] sm:$0xff] %v6759
      %s6761 = sadd.s32 %s21, %s22
      %s6762 = smul.u32 64, %s6761
      %p6763 = scmp.lt.s32.totalorder %s6762, 127
      %s6764 = scalar_select %p6763, %s6762, 127
      %s6765 = smul.addr %s6764, 4
      %s6766 = scalar_lea.vmem %s3, %s6765
      %p6767 = scmp.lt.s32.totalorder %s21, 1
      %s6768 = scalar_select %p6767, %s21, 1
      %s6769 = smul.addr %s6768, 8
      %s6770 = scalar_lea.vmem %s4, %s6769
      %p6771 = scmp.lt.s32.totalorder %s21, 1
      %s6772 = scalar_select %p6771, %s21, 1
      %s6773 = smul.addr %s6772, 8
      %s6774 = scalar_lea.vmem %s5, %s6773
      // Predicated region
      $region105: #{basic_conv2d.1} parent=27 // pred_check
        %p6775 = pneg %p98
      $region106: #{basic_conv2d.1} parent=27 // pred_check_branch
        %6777 = sbr.rel (%p6775) target = $region108
      $region107: #{basic_conv2d.1} parent=27 // pred_region
        %s6778 = sadd.s32 %s21, %s22
        %s6779 = smul.u32 64, %s6778
      $region108: #{basic_conv2d.1} parent=27 // pred_fallthru
        _
      // Predicated region
      $region109: #{basic_conv2d.1} parent=27 // pred_check
        %p6780 = pneg %p124
      $region110: #{basic_conv2d.1} parent=27 // pred_check_branch
        %6782 = sbr.rel (%p6780) target = $region112
      $region111: #{basic_conv2d.1} parent=27 // pred_region
        _
      $region112: #{basic_conv2d.1} parent=27 // pred_fallthru
        _
      // Predicated region
      $region113: #{basic_conv2d.1} parent=27 // pred_check
        %p6783 = pneg %p150
      $region114: #{basic_conv2d.1} parent=27 // pred_check_branch
        %6785 = sbr.rel (%p6783) target = $region116
      $region115: #{basic_conv2d.1} parent=27 // pred_region
        _
      $region116: #{basic_conv2d.1} parent=27 // pred_fallthru
        _
    $region28: #{basic_conv2d.1} parent=5 // pred_fallthru
      _
    %p6786 = scmp.le.s32.totalorder 2, %s12
    // Predicated region
    $region117: #{basic_conv2d.1} parent=5 // pred_check
      %p6787 = pneg %p6786
    $region118: #{basic_conv2d.1} parent=5 // pred_check_branch
      %6789 = sbr.rel (%p6787) target = $region120
    $region119: #{basic_conv2d.1} parent=5 // pred_region
      %s6790 = ssub.s32 %s12, 2
      // Predicated region
      $region121: #{basic_conv2d.1} parent=119 // pred_check
        %p6791 = pneg %p104
      $region122: #{basic_conv2d.1} parent=119 // pred_check_branch
        %6793 = sbr.rel (%p6791) target = $region124
      $region123: #{basic_conv2d.1} parent=119 // pred_region
        %s6794 = sadd.s32 %s23, %s24
        %s6795 = smul.u32 64, %s6794
        %p6796 = scmp.lt.s32.totalorder %s6795, 127
        %s6797 = scalar_select %p6796, %s6795, 127
        %s6798 = smul.addr %s6797, 4
        %s6799 = scalar_lea.vmem %s3, %s6798
      $region124: #{basic_conv2d.1} parent=119 // pred_fallthru
        _
      // Predicated region
      $region125: #{basic_conv2d.1} parent=119 // pred_check
        %p6800 = pneg %p130
      $region126: #{basic_conv2d.1} parent=119 // pred_check_branch
        %6802 = sbr.rel (%p6800) target = $region128
      $region127: #{basic_conv2d.1} parent=119 // pred_region
        %p6803 = scmp.lt.s32.totalorder %s23, 1
        %s6804 = scalar_select %p6803, %s23, 1
        %s6805 = smul.addr %s6804, 8
        %s6806 = scalar_lea.vmem %s4, %s6805
      $region128: #{basic_conv2d.1} parent=119 // pred_fallthru
        _
      // Predicated region
      $region129: #{basic_conv2d.1} parent=119 // pred_check
        %p6807 = pneg %p156
      $region130: #{basic_conv2d.1} parent=119 // pred_check_branch
        %6809 = sbr.rel (%p6807) target = $region132
      $region131: #{basic_conv2d.1} parent=119 // pred_region
        %p6810 = scmp.lt.s32.totalorder %s23, 1
        %s6811 = scalar_select %p6810, %s23, 1
        %s6812 = smul.addr %s6811, 8
        %s6813 = scalar_lea.vmem %s5, %s6812
      $region132: #{basic_conv2d.1} parent=119 // pred_fallthru
        _
    $region120: #{basic_conv2d.1} parent=5 // pred_fallthru
      _
  $region6: #{basic_conv2d.1} parent=0 // loop_footer
    %s16 = sadd.s32 1, %s12
  $region7: #{basic_conv2d.1} parent=0 // loop_footer_branch
    %11 = sbr.rel target = $region3
  $region8: #{basic_conv2d.1} parent=0 // loop_exit
    _
  %6814 = vsyncmov [#allocation3]
  %s6815 = vpop.sfrf %6814
  %p6816 = scmp.eq.s32.totalorder %s6815, 0
  %p6817 = pneg %p6816
  %6819 = shalt.err (%p6817)
  %s6820 = scalar_lea.sflag [#allocation3], 1
  %6821 = vsyncmov %s6820
  %s6822 = vpop.sfrf %6821
  %p6823 = scmp.eq.s32.totalorder %s6822, 0
  %p6824 = pneg %p6823
  %6826 = shalt.err (%p6824)

</llo_original>
